<compile_context>
chip_gen: v7x
topology: tpu7x:2x2x1
jax: 0.10.0
libtpu: 0.0.40
codegen_flags: <defaults>
</compile_context>

<pallas_src>
import math

import jax
import jax.numpy as jnp
from jax.experimental import pallas as pl
from jax.experimental.pallas import tpu as pltpu

# Model hyper-parameters (small, consistent with the module's __init__)
X_DIM = 8             # attention sequence length (query & key length)
Y_DIM = 32            # embed dim of nn.MultiheadAttention
NUM_HEADS = 4
HEAD_DIM = Y_DIM // NUM_HEADS
IN_DIM = 768          # hard-coded 768 in the PyTorch module
HID_DIM = 768
OUT_DIM = 2
OUT_PAD = 128         # lane-dense padded output width


def attnnet_kernel(xy_ref,
                   wl_ref, bl_ref,
                   wq_ref, bq_ref, wkv_ref, bkv_ref,
                   wo_ref, bo_ref,
                   w1_ref, b1_ref, w2_ref, b2_ref,
                   o_ref):
    """Whole forward pass of AttnNet for the full (small) batch, in VMEM."""
    # ---- shared Linear(768 -> X*Y): x and y batched through ONE matmul ----
    xyl = jnp.dot(xy_ref[...], wl_ref[...],
                  preferred_element_type=jnp.float32) + bl_ref[...]   # (2B, X*Y)
    B2 = xyl.shape[0]
    B = B2 // 2
    xyr = xyl.reshape(B2, X_DIM, Y_DIM)       # single split reshape for both
    xr = xyr[:B]                              # query source     (B, L, E)
    yr = xyr[B:]                              # key/value source (B, L, E)

    # ---- MultiheadAttention in_proj: q from x, fused (k|v) from y ----------
    q = jnp.einsum('ble,ef->blf', xr, wq_ref[...],
                   preferred_element_type=jnp.float32) + bq_ref[...]      # (B,L,E)
    kv = jnp.einsum('ble,ef->blf', yr, wkv_ref[...],
                    preferred_element_type=jnp.float32) + bkv_ref[...]    # (B,L,2E)
    k = kv[:, :, :Y_DIM]
    v = kv[:, :, Y_DIM:]

    # ---- per-head SDPA with out_proj folded in (no lane-axis concat) -------
    wo = wo_ref[...]                          # (E, E), (in, out) layout
    scale = 1.0 / math.sqrt(HEAD_DIM)
    a = jnp.zeros((B, X_DIM, Y_DIM), jnp.float32)
    for h in range(NUM_HEADS):
        lo = h * HEAD_DIM
        hi = lo + HEAD_DIM
        qh = q[:, :, lo:hi] * scale           # (B, L, d)
        kh = k[:, :, lo:hi]
        vh = v[:, :, lo:hi]
        s = jnp.einsum('bld,bmd->blm', qh, kh,
                       preferred_element_type=jnp.float32)        # (B, L, L)
        s = s - jnp.max(s, axis=-1, keepdims=True)
        p = jnp.exp(s)
        p = p * pl.reciprocal(jnp.sum(p, axis=-1, keepdims=True), approx=True)
        oh = jnp.einsum('blm,bmd->bld', p, vh,
                        preferred_element_type=jnp.float32)       # (B, L, d)
        # out_proj block for this head: concat(heads) @ Wo == sum_h oh @ Wo[h]
        a = a + jnp.einsum('bld,de->ble', oh, wo[lo:hi, :],
                           preferred_element_type=jnp.float32)
    a = a + bo_ref[...]
    a2 = a.reshape(B, X_DIM * Y_DIM).astype(jnp.bfloat16)          # (B, X*Y)

    # ---- MLP head: Linear -> ReLU -> Linear (lane-dense padded output) -----
    h1 = jnp.dot(a2, w1_ref[...], preferred_element_type=jnp.float32) + b1_ref[...]
    h1 = jnp.maximum(h1, 0.0).astype(jnp.bfloat16)
    out = jnp.dot(h1, w2_ref[...], preferred_element_type=jnp.float32) + b2_ref[...]
    o_ref[...] = out                                               # (B, OUT_PAD)


def attnnet_forward(x, y, params):
    B = x.shape[0]
    # stack x and y so the shared linear is one matmul; bf16 activations
    xy = jnp.concatenate([x, y], axis=0).astype(jnp.bfloat16)      # (2B, 768)
    args = (xy,
            params['wl'], params['bl'],
            params['wq'], params['bq'],
            params['wkv'], params['bkv'],
            params['wo'], params['bo'],
            params['w1'], params['b1'],
            params['w2p'], params['b2p'])
    vmem = pl.BlockSpec(memory_space=pltpu.MemorySpace.VMEM)
    out_pad = pl.pallas_call(
        attnnet_kernel,
        out_shape=jax.ShapeDtypeStruct((B, OUT_PAD), jnp.float32),
        in_specs=[vmem] * len(args),
        out_specs=vmem,
        compiler_params=pltpu.CompilerParams(vmem_limit_bytes=16 << 20),
    )(*args)
    return out_pad[:, :OUT_DIM]


def init_params(key):
    """Deterministic synthetic parameters (shapes from AttnNet.__init__)."""
    ks = jax.random.split(key, 14)

    def w(k, shape, scale=0.02):
        return (scale * jax.random.normal(k, shape)).astype(jnp.float32)

    E = Y_DIM
    XY = X_DIM * Y_DIM

    wk = w(ks[4], (E, E)); bk = w(ks[5], (1, E))
    wv = w(ks[6], (E, E)); bv = w(ks[7], (1, E))
    w2 = w(ks[12], (HID_DIM, OUT_DIM)); b2 = w(ks[13], (1, OUT_DIM))
    # zero-pad final Linear to a lane-dense 128-wide output
    w2p = jnp.zeros((HID_DIM, OUT_PAD), jnp.float32).at[:, :OUT_DIM].set(w2)
    b2p = jnp.zeros((1, OUT_PAD), jnp.float32).at[:, :OUT_DIM].set(b2)

    return dict(
        # nn.Linear(768, x_dim*y_dim), transposed (in, out), bf16 (big weight)
        wl=w(ks[0], (IN_DIM, XY)).astype(jnp.bfloat16), bl=w(ks[1], (1, XY)),
        # MultiheadAttention in_proj: q separate, k|v fused (E, 2E)
        wq=w(ks[2], (E, E)), bq=w(ks[3], (1, E)),
        wkv=jnp.concatenate([wk, wv], axis=1),
        bkv=jnp.concatenate([bk, bv], axis=1),
        # MultiheadAttention out_proj, transposed (E, E)
        wo=w(ks[8], (E, E)), bo=w(ks[9], (1, E)),
        # net: Linear(XY,768) -> ReLU -> Linear(768,2), transposed; big ones bf16
        w1=w(ks[10], (XY, HID_DIM)).astype(jnp.bfloat16), b1=w(ks[11], (1, HID_DIM)),
        w2p=w2p.astype(jnp.bfloat16), b2p=b2p,
    )


def reference_forward(x, y, p):
    """Pure-JAX reference matching PyTorch AttnNet.forward semantics.

    Uses the same bf16-quantized big weights / activations as the kernel
    (upcast to f32) so the comparison isolates kernel bugs, not quantization.
    """
    B = x.shape[0]
    wl = p['wl'].astype(jnp.float32)
    w1 = p['w1'].astype(jnp.float32)
    w2 = p['w2p'].astype(jnp.float32)[:, :OUT_DIM]
    b2 = p['b2p'][:, :OUT_DIM]
    xq = x.astype(jnp.bfloat16).astype(jnp.float32)
    yq = y.astype(jnp.bfloat16).astype(jnp.float32)

    xl = xq @ wl + p['bl']
    yl = yq @ wl + p['bl']
    xr = xl.reshape(B, X_DIM, Y_DIM)
    yr = yl.reshape(B, X_DIM, Y_DIM)

    wk = p['wkv'][:, :Y_DIM]; wv = p['wkv'][:, Y_DIM:]
    bk = p['bkv'][:, :Y_DIM]; bv = p['bkv'][:, Y_DIM:]
    q = jnp.einsum('ble,ef->blf', xr, p['wq']) + p['bq']
    k = jnp.einsum('ble,ef->blf', yr, wk) + bk
    v = jnp.einsum('ble,ef->blf', yr, wv) + bv

    qh = q.reshape(B, X_DIM, NUM_HEADS, HEAD_DIM).transpose(0, 2, 1, 3)
    kh = k.reshape(B, X_DIM, NUM_HEADS, HEAD_DIM).transpose(0, 2, 1, 3)
    vh = v.reshape(B, X_DIM, NUM_HEADS, HEAD_DIM).transpose(0, 2, 1, 3)
    s = jnp.einsum('bhld,bhmd->bhlm', qh, kh) / math.sqrt(HEAD_DIM)
    attn = jax.nn.softmax(s, axis=-1)
    ah = jnp.einsum('bhlm,bhmd->bhld', attn, vh)
    a = ah.transpose(0, 2, 1, 3).reshape(B, X_DIM, Y_DIM)
    a = jnp.einsum('ble,ef->blf', a, p['wo']) + p['bo']
    a = a.reshape(B, X_DIM * Y_DIM)

    h1 = jnp.maximum(a @ w1 + p['b1'], 0.0)
    return h1 @ w2 + b2


if __name__ == "__main__":
    key = jax.random.PRNGKey(0)
    pkey, xkey, ykey = jax.random.split(key, 3)
    params = init_params(pkey)

    B = 2
    x = jax.random.normal(xkey, (B, IN_DIM), dtype=jnp.float32)
    y = jax.random.normal(ykey, (B, IN_DIM), dtype=jnp.float32)

    out = attnnet_forward(x, y, params)
    jax.block_until_ready(out)

    ref = reference_forward(x, y, params)
    assert out.shape == (B, OUT_DIM), out.shape
    assert jnp.allclose(out, ref, atol=2e-3, rtol=2e-2), (out, ref)
    print("KERNEL_OK")
</pallas_src>

<mosaic_0001>
module attributes {stable_mosaic.version = 11 : i64} {
  func.func @attnnet_kernel(%arg0: memref<4x768xbf16, #tpu.memory_space<vmem>>, %arg1: memref<768x256xbf16, #tpu.memory_space<vmem>>, %arg2: memref<1x256xf32, #tpu.memory_space<vmem>>, %arg3: memref<32x32xf32, #tpu.memory_space<vmem>>, %arg4: memref<1x32xf32, #tpu.memory_space<vmem>>, %arg5: memref<32x64xf32, #tpu.memory_space<vmem>>, %arg6: memref<1x64xf32, #tpu.memory_space<vmem>>, %arg7: memref<32x32xf32, #tpu.memory_space<vmem>>, %arg8: memref<1x32xf32, #tpu.memory_space<vmem>>, %arg9: memref<256x768xbf16, #tpu.memory_space<vmem>>, %arg10: memref<1x768xf32, #tpu.memory_space<vmem>>, %arg11: memref<768x128xbf16, #tpu.memory_space<vmem>>, %arg12: memref<1x128xf32, #tpu.memory_space<vmem>>, %arg13: memref<2x128xf32, #tpu.memory_space<vmem>>) attributes {dimension_semantics = [], scalar_prefetch = 0 : i64, scratch_operands = 0 : i64, tpu.core_type = #tpu.core_type<tc>} {
    %c0 = arith.constant 0 : index
    %c0_0 = arith.constant 0 : index
    %0 = vector.load %arg0[%c0, %c0_0] : memref<4x768xbf16, #tpu.memory_space<vmem>>, vector<4x768xbf16>
    %c0_1 = arith.constant 0 : index
    %c0_2 = arith.constant 0 : index
    %1 = vector.load %arg1[%c0_1, %c0_2] : memref<768x256xbf16, #tpu.memory_space<vmem>>, vector<768x256xbf16>
    %cst = arith.constant dense<0.000000e+00> : vector<4x256xf32>
    %2 = tpu.matmul %0, %1, %cst {dimension_numbers = #tpu.dot_dimension_numbers<[1], [0], [0], [1], [0, 0, 1, 1], [], []>} : vector<4x768xbf16>, vector<768x256xbf16>, vector<4x256xf32> -> vector<4x256xf32>
    %c0_3 = arith.constant 0 : index
    %c0_4 = arith.constant 0 : index
    %3 = vector.load %arg2[%c0_3, %c0_4] : memref<1x256xf32, #tpu.memory_space<vmem>>, vector<1x256xf32>
    %4 = vector.broadcast %3 : vector<1x256xf32> to vector<4x256xf32>
    %5 = arith.addf %2, %4 : vector<4x256xf32>
    %6 = vector.shape_cast %5 : vector<4x256xf32> to vector<4x8x32xf32>
    %7 = vector.extract_strided_slice %6 {offsets = [0, 0, 0], sizes = [2, 8, 32], strides = [1, 1, 1]} : vector<4x8x32xf32> to vector<2x8x32xf32>
    %8 = vector.extract_strided_slice %6 {offsets = [2, 0, 0], sizes = [2, 8, 32], strides = [1, 1, 1]} : vector<4x8x32xf32> to vector<2x8x32xf32>
    %c0_5 = arith.constant 0 : index
    %c0_6 = arith.constant 0 : index
    %9 = vector.load %arg3[%c0_5, %c0_6] : memref<32x32xf32, #tpu.memory_space<vmem>>, vector<32x32xf32>
    "tpu.trace_start"() <{level = 10 : i32, message = "ble,ef->blf"}> : () -> ()
    %cst_7 = arith.constant dense<0.000000e+00> : vector<2x8x32xf32>
    %10 = tpu.matmul %7, %9, %cst_7 {dimension_numbers = #tpu.dot_dimension_numbers<[2], [0], [0, 1], [1], [0, 0, 0, 1, 1, 1], [], []>} : vector<2x8x32xf32>, vector<32x32xf32>, vector<2x8x32xf32> -> vector<2x8x32xf32>
    "tpu.trace_stop"() : () -> ()
    %c0_8 = arith.constant 0 : index
    %c0_9 = arith.constant 0 : index
    %11 = vector.load %arg4[%c0_8, %c0_9] : memref<1x32xf32, #tpu.memory_space<vmem>>, vector<1x32xf32>
    %12 = vector.shape_cast %11 : vector<1x32xf32> to vector<1x1x32xf32>
    %13 = vector.broadcast %12 : vector<1x1x32xf32> to vector<2x8x32xf32>
    %14 = arith.addf %10, %13 : vector<2x8x32xf32>
    %c0_10 = arith.constant 0 : index
    %c0_11 = arith.constant 0 : index
    %15 = vector.load %arg5[%c0_10, %c0_11] : memref<32x64xf32, #tpu.memory_space<vmem>>, vector<32x64xf32>
    "tpu.trace_start"() <{level = 10 : i32, message = "ble,ef->blf"}> : () -> ()
    %cst_12 = arith.constant dense<0.000000e+00> : vector<2x8x64xf32>
    %16 = tpu.matmul %8, %15, %cst_12 {dimension_numbers = #tpu.dot_dimension_numbers<[2], [0], [0, 1], [1], [0, 0, 0, 1, 1, 1], [], []>} : vector<2x8x32xf32>, vector<32x64xf32>, vector<2x8x64xf32> -> vector<2x8x64xf32>
    "tpu.trace_stop"() : () -> ()
    %c0_13 = arith.constant 0 : index
    %c0_14 = arith.constant 0 : index
    %17 = vector.load %arg6[%c0_13, %c0_14] : memref<1x64xf32, #tpu.memory_space<vmem>>, vector<1x64xf32>
    %18 = vector.shape_cast %17 : vector<1x64xf32> to vector<1x1x64xf32>
    %19 = vector.broadcast %18 : vector<1x1x64xf32> to vector<2x8x64xf32>
    %20 = arith.addf %16, %19 : vector<2x8x64xf32>
    %21 = vector.extract_strided_slice %20 {offsets = [0, 0, 0], sizes = [2, 8, 32], strides = [1, 1, 1]} : vector<2x8x64xf32> to vector<2x8x32xf32>
    %22 = vector.extract_strided_slice %20 {offsets = [0, 0, 32], sizes = [2, 8, 32], strides = [1, 1, 1]} : vector<2x8x64xf32> to vector<2x8x32xf32>
    %c0_15 = arith.constant 0 : index
    %c0_16 = arith.constant 0 : index
    %23 = vector.load %arg7[%c0_15, %c0_16] : memref<32x32xf32, #tpu.memory_space<vmem>>, vector<32x32xf32>
    %cst_17 = arith.constant 0.000000e+00 : f32
    %24 = vector.broadcast %cst_17 : f32 to vector<2x8x32xf32>
    %25 = vector.extract_strided_slice %14 {offsets = [0, 0, 0], sizes = [2, 8, 8], strides = [1, 1, 1]} : vector<2x8x32xf32> to vector<2x8x8xf32>
    %cst_18 = arith.constant 0.353553385 : f32
    %26 = vector.broadcast %cst_18 : f32 to vector<2x8x8xf32>
    %27 = arith.mulf %25, %26 : vector<2x8x8xf32>
    %28 = vector.extract_strided_slice %21 {offsets = [0, 0, 0], sizes = [2, 8, 8], strides = [1, 1, 1]} : vector<2x8x32xf32> to vector<2x8x8xf32>
    %29 = vector.extract_strided_slice %22 {offsets = [0, 0, 0], sizes = [2, 8, 8], strides = [1, 1, 1]} : vector<2x8x32xf32> to vector<2x8x8xf32>
    "tpu.trace_start"() <{level = 10 : i32, message = "bld,bmd->blm"}> : () -> ()
    %cst_19 = arith.constant dense<0.000000e+00> : vector<2x8x8xf32>
    %30 = tpu.matmul %27, %28, %cst_19 {dimension_numbers = #tpu.dot_dimension_numbers<[2], [2], [1], [1], [0, 0, 0, 1, 1, 1], [0], [0]>} : vector<2x8x8xf32>, vector<2x8x8xf32>, vector<2x8x8xf32> -> vector<2x8x8xf32>
    "tpu.trace_stop"() : () -> ()
    %cst_20 = arith.constant dense<0xFF800000> : vector<2x8xf32>
    %31 = vector.multi_reduction <maximumf>, %30, %cst_20 [2] : vector<2x8x8xf32> to vector<2x8xf32>
    %32 = vector.shape_cast %31 : vector<2x8xf32> to vector<2x8x1xf32>
    %33 = vector.broadcast %32 : vector<2x8x1xf32> to vector<2x8x8xf32>
    %34 = arith.subf %30, %33 : vector<2x8x8xf32>
    %35 = math.exp %34 : vector<2x8x8xf32>
    %cst_21 = arith.constant dense<0.000000e+00> : vector<2x8xf32>
    %36 = vector.multi_reduction <add>, %35, %cst_21 [2] : vector<2x8x8xf32> to vector<2x8xf32>
    %37 = vector.shape_cast %36 : vector<2x8xf32> to vector<2x8x1xf32>
    %38 = tpu.reciprocal %37 {approx = true} : vector<2x8x1xf32> -> vector<2x8x1xf32>
    %39 = vector.broadcast %38 : vector<2x8x1xf32> to vector<2x8x8xf32>
    %40 = arith.mulf %35, %39 : vector<2x8x8xf32>
    "tpu.trace_start"() <{level = 10 : i32, message = "blm,bmd->bld"}> : () -> ()
    %cst_22 = arith.constant dense<0.000000e+00> : vector<2x8x8xf32>
    %41 = tpu.matmul %40, %29, %cst_22 {dimension_numbers = #tpu.dot_dimension_numbers<[2], [1], [1], [2], [0, 0, 0, 1, 1, 2], [0], [0]>} : vector<2x8x8xf32>, vector<2x8x8xf32>, vector<2x8x8xf32> -> vector<2x8x8xf32>
    "tpu.trace_stop"() : () -> ()
    %42 = vector.extract_strided_slice %23 {offsets = [0, 0], sizes = [8, 32], strides = [1, 1]} : vector<32x32xf32> to vector<8x32xf32>
    "tpu.trace_start"() <{level = 10 : i32, message = "bld,de->ble"}> : () -> ()
    %cst_23 = arith.constant dense<0.000000e+00> : vector<2x8x32xf32>
    %43 = tpu.matmul %41, %42, %cst_23 {dimension_numbers = #tpu.dot_dimension_numbers<[2], [0], [0, 1], [1], [0, 0, 0, 1, 1, 1], [], []>} : vector<2x8x8xf32>, vector<8x32xf32>, vector<2x8x32xf32> -> vector<2x8x32xf32>
    "tpu.trace_stop"() : () -> ()
    %44 = arith.addf %24, %43 : vector<2x8x32xf32>
    %45 = vector.extract_strided_slice %14 {offsets = [0, 0, 8], sizes = [2, 8, 8], strides = [1, 1, 1]} : vector<2x8x32xf32> to vector<2x8x8xf32>
    %cst_24 = arith.constant 0.353553385 : f32
    %46 = vector.broadcast %cst_24 : f32 to vector<2x8x8xf32>
    %47 = arith.mulf %45, %46 : vector<2x8x8xf32>
    %48 = vector.extract_strided_slice %21 {offsets = [0, 0, 8], sizes = [2, 8, 8], strides = [1, 1, 1]} : vector<2x8x32xf32> to vector<2x8x8xf32>
    %49 = vector.extract_strided_slice %22 {offsets = [0, 0, 8], sizes = [2, 8, 8], strides = [1, 1, 1]} : vector<2x8x32xf32> to vector<2x8x8xf32>
    "tpu.trace_start"() <{level = 10 : i32, message = "bld,bmd->blm"}> : () -> ()
    %cst_25 = arith.constant dense<0.000000e+00> : vector<2x8x8xf32>
    %50 = tpu.matmul %47, %48, %cst_25 {dimension_numbers = #tpu.dot_dimension_numbers<[2], [2], [1], [1], [0, 0, 0, 1, 1, 1], [0], [0]>} : vector<2x8x8xf32>, vector<2x8x8xf32>, vector<2x8x8xf32> -> vector<2x8x8xf32>
    "tpu.trace_stop"() : () -> ()
    %cst_26 = arith.constant dense<0xFF800000> : vector<2x8xf32>
    %51 = vector.multi_reduction <maximumf>, %50, %cst_26 [2] : vector<2x8x8xf32> to vector<2x8xf32>
    %52 = vector.shape_cast %51 : vector<2x8xf32> to vector<2x8x1xf32>
    %53 = vector.broadcast %52 : vector<2x8x1xf32> to vector<2x8x8xf32>
    %54 = arith.subf %50, %53 : vector<2x8x8xf32>
    %55 = math.exp %54 : vector<2x8x8xf32>
    %cst_27 = arith.constant dense<0.000000e+00> : vector<2x8xf32>
    %56 = vector.multi_reduction <add>, %55, %cst_27 [2] : vector<2x8x8xf32> to vector<2x8xf32>
    %57 = vector.shape_cast %56 : vector<2x8xf32> to vector<2x8x1xf32>
    %58 = tpu.reciprocal %57 {approx = true} : vector<2x8x1xf32> -> vector<2x8x1xf32>
    %59 = vector.broadcast %58 : vector<2x8x1xf32> to vector<2x8x8xf32>
    %60 = arith.mulf %55, %59 : vector<2x8x8xf32>
    "tpu.trace_start"() <{level = 10 : i32, message = "blm,bmd->bld"}> : () -> ()
    %cst_28 = arith.constant dense<0.000000e+00> : vector<2x8x8xf32>
    %61 = tpu.matmul %60, %49, %cst_28 {dimension_numbers = #tpu.dot_dimension_numbers<[2], [1], [1], [2], [0, 0, 0, 1, 1, 2], [0], [0]>} : vector<2x8x8xf32>, vector<2x8x8xf32>, vector<2x8x8xf32> -> vector<2x8x8xf32>
    "tpu.trace_stop"() : () -> ()
    %62 = vector.extract_strided_slice %23 {offsets = [8, 0], sizes = [8, 32], strides = [1, 1]} : vector<32x32xf32> to vector<8x32xf32>
    "tpu.trace_start"() <{level = 10 : i32, message = "bld,de->ble"}> : () -> ()
    %cst_29 = arith.constant dense<0.000000e+00> : vector<2x8x32xf32>
    %63 = tpu.matmul %61, %62, %cst_29 {dimension_numbers = #tpu.dot_dimension_numbers<[2], [0], [0, 1], [1], [0, 0, 0, 1, 1, 1], [], []>} : vector<2x8x8xf32>, vector<8x32xf32>, vector<2x8x32xf32> -> vector<2x8x32xf32>
    "tpu.trace_stop"() : () -> ()
    %64 = arith.addf %44, %63 : vector<2x8x32xf32>
    %65 = vector.extract_strided_slice %14 {offsets = [0, 0, 16], sizes = [2, 8, 8], strides = [1, 1, 1]} : vector<2x8x32xf32> to vector<2x8x8xf32>
    %cst_30 = arith.constant 0.353553385 : f32
    %66 = vector.broadcast %cst_30 : f32 to vector<2x8x8xf32>
    %67 = arith.mulf %65, %66 : vector<2x8x8xf32>
    %68 = vector.extract_strided_slice %21 {offsets = [0, 0, 16], sizes = [2, 8, 8], strides = [1, 1, 1]} : vector<2x8x32xf32> to vector<2x8x8xf32>
    %69 = vector.extract_strided_slice %22 {offsets = [0, 0, 16], sizes = [2, 8, 8], strides = [1, 1, 1]} : vector<2x8x32xf32> to vector<2x8x8xf32>
    "tpu.trace_start"() <{level = 10 : i32, message = "bld,bmd->blm"}> : () -> ()
    %cst_31 = arith.constant dense<0.000000e+00> : vector<2x8x8xf32>
    %70 = tpu.matmul %67, %68, %cst_31 {dimension_numbers = #tpu.dot_dimension_numbers<[2], [2], [1], [1], [0, 0, 0, 1, 1, 1], [0], [0]>} : vector<2x8x8xf32>, vector<2x8x8xf32>, vector<2x8x8xf32> -> vector<2x8x8xf32>
    "tpu.trace_stop"() : () -> ()
    %cst_32 = arith.constant dense<0xFF800000> : vector<2x8xf32>
    %71 = vector.multi_reduction <maximumf>, %70, %cst_32 [2] : vector<2x8x8xf32> to vector<2x8xf32>
    %72 = vector.shape_cast %71 : vector<2x8xf32> to vector<2x8x1xf32>
    %73 = vector.broadcast %72 : vector<2x8x1xf32> to vector<2x8x8xf32>
    %74 = arith.subf %70, %73 : vector<2x8x8xf32>
    %75 = math.exp %74 : vector<2x8x8xf32>
    %cst_33 = arith.constant dense<0.000000e+00> : vector<2x8xf32>
    %76 = vector.multi_reduction <add>, %75, %cst_33 [2] : vector<2x8x8xf32> to vector<2x8xf32>
    %77 = vector.shape_cast %76 : vector<2x8xf32> to vector<2x8x1xf32>
    %78 = tpu.reciprocal %77 {approx = true} : vector<2x8x1xf32> -> vector<2x8x1xf32>
    %79 = vector.broadcast %78 : vector<2x8x1xf32> to vector<2x8x8xf32>
    %80 = arith.mulf %75, %79 : vector<2x8x8xf32>
    "tpu.trace_start"() <{level = 10 : i32, message = "blm,bmd->bld"}> : () -> ()
    %cst_34 = arith.constant dense<0.000000e+00> : vector<2x8x8xf32>
    %81 = tpu.matmul %80, %69, %cst_34 {dimension_numbers = #tpu.dot_dimension_numbers<[2], [1], [1], [2], [0, 0, 0, 1, 1, 2], [0], [0]>} : vector<2x8x8xf32>, vector<2x8x8xf32>, vector<2x8x8xf32> -> vector<2x8x8xf32>
    "tpu.trace_stop"() : () -> ()
    %82 = vector.extract_strided_slice %23 {offsets = [16, 0], sizes = [8, 32], strides = [1, 1]} : vector<32x32xf32> to vector<8x32xf32>
    "tpu.trace_start"() <{level = 10 : i32, message = "bld,de->ble"}> : () -> ()
    %cst_35 = arith.constant dense<0.000000e+00> : vector<2x8x32xf32>
    %83 = tpu.matmul %81, %82, %cst_35 {dimension_numbers = #tpu.dot_dimension_numbers<[2], [0], [0, 1], [1], [0, 0, 0, 1, 1, 1], [], []>} : vector<2x8x8xf32>, vector<8x32xf32>, vector<2x8x32xf32> -> vector<2x8x32xf32>
    "tpu.trace_stop"() : () -> ()
    %84 = arith.addf %64, %83 : vector<2x8x32xf32>
    %85 = vector.extract_strided_slice %14 {offsets = [0, 0, 24], sizes = [2, 8, 8], strides = [1, 1, 1]} : vector<2x8x32xf32> to vector<2x8x8xf32>
    %cst_36 = arith.constant 0.353553385 : f32
    %86 = vector.broadcast %cst_36 : f32 to vector<2x8x8xf32>
    %87 = arith.mulf %85, %86 : vector<2x8x8xf32>
    %88 = vector.extract_strided_slice %21 {offsets = [0, 0, 24], sizes = [2, 8, 8], strides = [1, 1, 1]} : vector<2x8x32xf32> to vector<2x8x8xf32>
    %89 = vector.extract_strided_slice %22 {offsets = [0, 0, 24], sizes = [2, 8, 8], strides = [1, 1, 1]} : vector<2x8x32xf32> to vector<2x8x8xf32>
    "tpu.trace_start"() <{level = 10 : i32, message = "bld,bmd->blm"}> : () -> ()
    %cst_37 = arith.constant dense<0.000000e+00> : vector<2x8x8xf32>
    %90 = tpu.matmul %87, %88, %cst_37 {dimension_numbers = #tpu.dot_dimension_numbers<[2], [2], [1], [1], [0, 0, 0, 1, 1, 1], [0], [0]>} : vector<2x8x8xf32>, vector<2x8x8xf32>, vector<2x8x8xf32> -> vector<2x8x8xf32>
    "tpu.trace_stop"() : () -> ()
    %cst_38 = arith.constant dense<0xFF800000> : vector<2x8xf32>
    %91 = vector.multi_reduction <maximumf>, %90, %cst_38 [2] : vector<2x8x8xf32> to vector<2x8xf32>
    %92 = vector.shape_cast %91 : vector<2x8xf32> to vector<2x8x1xf32>
    %93 = vector.broadcast %92 : vector<2x8x1xf32> to vector<2x8x8xf32>
    %94 = arith.subf %90, %93 : vector<2x8x8xf32>
    %95 = math.exp %94 : vector<2x8x8xf32>
    %cst_39 = arith.constant dense<0.000000e+00> : vector<2x8xf32>
    %96 = vector.multi_reduction <add>, %95, %cst_39 [2] : vector<2x8x8xf32> to vector<2x8xf32>
    %97 = vector.shape_cast %96 : vector<2x8xf32> to vector<2x8x1xf32>
    %98 = tpu.reciprocal %97 {approx = true} : vector<2x8x1xf32> -> vector<2x8x1xf32>
    %99 = vector.broadcast %98 : vector<2x8x1xf32> to vector<2x8x8xf32>
    %100 = arith.mulf %95, %99 : vector<2x8x8xf32>
    "tpu.trace_start"() <{level = 10 : i32, message = "blm,bmd->bld"}> : () -> ()
    %cst_40 = arith.constant dense<0.000000e+00> : vector<2x8x8xf32>
    %101 = tpu.matmul %100, %89, %cst_40 {dimension_numbers = #tpu.dot_dimension_numbers<[2], [1], [1], [2], [0, 0, 0, 1, 1, 2], [0], [0]>} : vector<2x8x8xf32>, vector<2x8x8xf32>, vector<2x8x8xf32> -> vector<2x8x8xf32>
    "tpu.trace_stop"() : () -> ()
    %102 = vector.extract_strided_slice %23 {offsets = [24, 0], sizes = [8, 32], strides = [1, 1]} : vector<32x32xf32> to vector<8x32xf32>
    "tpu.trace_start"() <{level = 10 : i32, message = "bld,de->ble"}> : () -> ()
    %cst_41 = arith.constant dense<0.000000e+00> : vector<2x8x32xf32>
    %103 = tpu.matmul %101, %102, %cst_41 {dimension_numbers = #tpu.dot_dimension_numbers<[2], [0], [0, 1], [1], [0, 0, 0, 1, 1, 1], [], []>} : vector<2x8x8xf32>, vector<8x32xf32>, vector<2x8x32xf32> -> vector<2x8x32xf32>
    "tpu.trace_stop"() : () -> ()
    %104 = arith.addf %84, %103 : vector<2x8x32xf32>
    %c0_42 = arith.constant 0 : index
    %c0_43 = arith.constant 0 : index
    %105 = vector.load %arg8[%c0_42, %c0_43] : memref<1x32xf32, #tpu.memory_space<vmem>>, vector<1x32xf32>
    %106 = vector.shape_cast %105 : vector<1x32xf32> to vector<1x1x32xf32>
    %107 = vector.broadcast %106 : vector<1x1x32xf32> to vector<2x8x32xf32>
    %108 = arith.addf %104, %107 : vector<2x8x32xf32>
    %109 = vector.shape_cast %108 : vector<2x8x32xf32> to vector<2x256xf32>
    %110 = arith.truncf %109 : vector<2x256xf32> to vector<2x256xbf16>
    %c0_44 = arith.constant 0 : index
    %c0_45 = arith.constant 0 : index
    %111 = vector.load %arg9[%c0_44, %c0_45] : memref<256x768xbf16, #tpu.memory_space<vmem>>, vector<256x768xbf16>
    %cst_46 = arith.constant dense<0.000000e+00> : vector<2x768xf32>
    %112 = tpu.matmul %110, %111, %cst_46 {dimension_numbers = #tpu.dot_dimension_numbers<[1], [0], [0], [1], [0, 0, 1, 1], [], []>} : vector<2x256xbf16>, vector<256x768xbf16>, vector<2x768xf32> -> vector<2x768xf32>
    %c0_47 = arith.constant 0 : index
    %c0_48 = arith.constant 0 : index
    %113 = vector.load %arg10[%c0_47, %c0_48] : memref<1x768xf32, #tpu.memory_space<vmem>>, vector<1x768xf32>
    %114 = vector.broadcast %113 : vector<1x768xf32> to vector<2x768xf32>
    %115 = arith.addf %112, %114 : vector<2x768xf32>
    %cst_49 = arith.constant 0.000000e+00 : f32
    %116 = vector.broadcast %cst_49 : f32 to vector<2x768xf32>
    %117 = arith.maximumf %115, %116 : vector<2x768xf32>
    %118 = arith.truncf %117 : vector<2x768xf32> to vector<2x768xbf16>
    %c0_50 = arith.constant 0 : index
    %c0_51 = arith.constant 0 : index
    %119 = vector.load %arg11[%c0_50, %c0_51] : memref<768x128xbf16, #tpu.memory_space<vmem>>, vector<768x128xbf16>
    %cst_52 = arith.constant dense<0.000000e+00> : vector<2x128xf32>
    %120 = tpu.matmul %118, %119, %cst_52 {dimension_numbers = #tpu.dot_dimension_numbers<[1], [0], [0], [1], [0, 0, 1, 1], [], []>} : vector<2x768xbf16>, vector<768x128xbf16>, vector<2x128xf32> -> vector<2x128xf32>
    %c0_53 = arith.constant 0 : index
    %c0_54 = arith.constant 0 : index
    %121 = vector.load %arg12[%c0_53, %c0_54] : memref<1x128xf32, #tpu.memory_space<vmem>>, vector<1x128xf32>
    %122 = vector.broadcast %121 : vector<1x128xf32> to vector<2x128xf32>
    %123 = arith.addf %120, %122 : vector<2x128xf32>
    %c0_55 = arith.constant 0 : index
    %c0_56 = arith.constant 0 : index
    %124 = vector.load %arg13[%c0_55, %c0_56] : memref<2x128xf32, #tpu.memory_space<vmem>>, vector<2x128xf32>
    tpu.vector_store %arg13[%c0_55, %c0_56], %123 {strides = array<i32>} : memref<2x128xf32, #tpu.memory_space<vmem>>, vector<2x128xf32>,
    return
  }
}

</mosaic_0001>

<llo_original>
// kernel: tpu_custom_call.1
$region0: #{tpu_custom_call.1}
  #allocation0 [shape = 'u32[]', space=smem, size = 0x4, offset = 0x4, fixed_abs, tag = 'smem constant byte address 0x4 - core index']
  #allocation1 [shape = 'u32[144,128]{1,0:T(1,128)}', space=vmem, size = 0x12000, scoped, tag = 'internal scratch']
  %s0 = inlined_call_operand.hbm [shape: bf16[4,768], index: 0, kind: input, shape index: {}]
  %s1 = inlined_call_operand.hbm [shape: bf16[768,256], index: 1, kind: input, shape index: {}]
  %s2 = inlined_call_operand.vmem [shape: f32[1,256], index: 2, kind: input, shape index: {}]
  %s3 = inlined_call_operand.hbm [shape: f32[32,32], index: 3, kind: input, shape index: {}]
  %s4 = inlined_call_operand.vmem [shape: f32[1,32], index: 4, kind: input, shape index: {}]
  %s5 = inlined_call_operand.hbm [shape: f32[32,64], index: 5, kind: input, shape index: {}]
  %s6 = inlined_call_operand.vmem [shape: f32[1,64], index: 6, kind: input, shape index: {}]
  %s7 = inlined_call_operand.hbm [shape: f32[32,32], index: 7, kind: input, shape index: {}]
  %s8 = inlined_call_operand.vmem [shape: f32[1,32], index: 8, kind: input, shape index: {}]
  %s9 = inlined_call_operand.hbm [shape: bf16[256,768], index: 9, kind: input, shape index: {}]
  %s10 = inlined_call_operand.vmem [shape: f32[1,768], index: 10, kind: input, shape index: {}]
  %s11 = inlined_call_operand.hbm [shape: bf16[768,128], index: 11, kind: input, shape index: {}]
  %s12 = inlined_call_operand.vmem [shape: f32[1,128], index: 12, kind: input, shape index: {}]
  %s13 = inlined_call_operand.hbm [shape: f32[2,128], index: 13, kind: output, shape index: {}]
  %s14 = sld [smem:[#allocation0]]
  $region90: #{tpu_custom_call.1} parent=0
    _
  %s16 = ssub.s32 1, %s14
  %s17 = scalar_select 0, %s16, %s14
  $region1: #{tpu_custom_call.1} parent=0
    #allocation2 [shape = 'u8[6144]{0}', space=vmem, size = 0x1800, scoped, tag = 'input window, operand 0, single buffered']
    #allocation3 [shape = 's32[1]{0}', space=sflag, size = 0x4, scoped, tag = 'scoped memory for tpu_custom_call.1']
    #allocation4 [shape = 's32[1]{0}', space=sflag, size = 0x4, scoped, tag = 'scoped memory for tpu_custom_call.1']
    #allocation5 [shape = 'u8[393216]{0}', space=vmem, size = 0x60000, scoped, tag = 'input window, operand 1, single buffered']
    #allocation6 [shape = 's32[1]{0}', space=sflag, size = 0x4, scoped, tag = 'scoped memory for tpu_custom_call.1']
    #allocation7 [shape = 'u8[16384]{0}', space=vmem, size = 0x4000, scoped, tag = 'input window, operand 3, single buffered']
    #allocation8 [shape = 'u8[16384]{0}', space=vmem, size = 0x4000, scoped, tag = 'input window, operand 5, single buffered']
    #allocation9 [shape = 's32[1]{0}', space=sflag, size = 0x4, scoped, tag = 'scoped memory for tpu_custom_call.1']
    #allocation10 [shape = 'u8[16384]{0}', space=vmem, size = 0x4000, scoped, tag = 'input window, operand 7, single buffered']
    #allocation11 [shape = 'u8[393216]{0}', space=vmem, size = 0x60000, scoped, tag = 'input window, operand 9, single buffered']
    #allocation12 [shape = 's32[1]{0}', space=sflag, size = 0x4, scoped, tag = 'scoped memory for tpu_custom_call.1']
    #allocation13 [shape = 'u8[196608]{0}', space=vmem, size = 0x30000, scoped, tag = 'input window, operand 11, single buffered']
    #allocation14 [shape = 'u8[1024]{0}', space=vmem, size = 0x400, scoped, tag = 'output window, operand 0, single buffered']
    %18 = vsyncpa [#allocation3], 0
    %19 = vsyncpa [#allocation6], 0
    %20 = vsyncpa [#allocation9], 0
    %21 = vsyncpa [#allocation12], 0
    %22 = vsyncpa [#allocation4], 0
    // Predicated region
    $region2: #{tpu_custom_call.1} parent=1 // pred_check
      _
    $region3: #{tpu_custom_call.1} parent=1 // pred_check_branch
      %24 = sbr.rel (0) target = $region5
    $region4: #{tpu_custom_call.1} parent=1 // pred_region
      %s26 = ssub.s32 192, 192
      %27 = vsyncadd [#allocation3], %s26
      %s29 = sshll.u32 [#allocation2], 4
      %s30 = int_to_ptr.vmem [resolvable:$true] %s29
      %32 = dma.hbm_to_vmem [thread:$0]  %s0, 192, %s30, [#allocation3]
    $region5: #{tpu_custom_call.1} parent=1 // pred_fallthru
      _
    // Predicated region
    $region6: #{tpu_custom_call.1} parent=1 // pred_check
      _
    $region7: #{tpu_custom_call.1} parent=1 // pred_check_branch
      %34 = sbr.rel (0) target = $region9
    $region8: #{tpu_custom_call.1} parent=1 // pred_region
      %s36 = ssub.s32 12288, 12288
      %37 = vsyncadd [#allocation6], %s36
      %s38 = sshll.u32 [#allocation5], 4
      %s39 = int_to_ptr.vmem [resolvable:$true] %s38
      %44 = dma.hbm_to_vmem [thread:$0]  %s1, 12288, %s39, [#allocation6], 128, 128, 8
    $region9: #{tpu_custom_call.1} parent=1 // pred_fallthru
      _
    // Predicated region
    $region10: #{tpu_custom_call.1} parent=1 // pred_check
      _
    $region11: #{tpu_custom_call.1} parent=1 // pred_check_branch
      %46 = sbr.rel (0) target = $region13
    $region12: #{tpu_custom_call.1} parent=1 // pred_region
      _
    $region13: #{tpu_custom_call.1} parent=1 // pred_fallthru
      _
    // Predicated region
    $region14: #{tpu_custom_call.1} parent=1 // pred_check
      _
    $region15: #{tpu_custom_call.1} parent=1 // pred_check_branch
      %48 = sbr.rel (0) target = $region17
    $region16: #{tpu_custom_call.1} parent=1 // pred_region
      %s50 = ssub.s32 512, 512
      %51 = vsyncadd [#allocation6], %s50
      %s52 = sshll.u32 [#allocation7], 4
      %s53 = int_to_ptr.vmem [resolvable:$true] %s52
      %58 = dma.hbm_to_vmem [thread:$0]  %s3, 512, %s53, [#allocation6], 128, 128, 8
    $region17: #{tpu_custom_call.1} parent=1 // pred_fallthru
      _
    // Predicated region
    $region18: #{tpu_custom_call.1} parent=1 // pred_check
      _
    $region19: #{tpu_custom_call.1} parent=1 // pred_check_branch
      %60 = sbr.rel (0) target = $region21
    $region20: #{tpu_custom_call.1} parent=1 // pred_region
      _
    $region21: #{tpu_custom_call.1} parent=1 // pred_fallthru
      _
    // Predicated region
    $region22: #{tpu_custom_call.1} parent=1 // pred_check
      _
    $region23: #{tpu_custom_call.1} parent=1 // pred_check_branch
      %62 = sbr.rel (0) target = $region25
    $region24: #{tpu_custom_call.1} parent=1 // pred_region
      %s64 = ssub.s32 512, 512
      %65 = vsyncadd [#allocation9], %s64
      %s66 = sshll.u32 [#allocation8], 4
      %s67 = int_to_ptr.vmem [resolvable:$true] %s66
      %72 = dma.hbm_to_vmem [thread:$0]  %s5, 512, %s67, [#allocation9], 128, 128, 8
    $region25: #{tpu_custom_call.1} parent=1 // pred_fallthru
      _
    // Predicated region
    $region26: #{tpu_custom_call.1} parent=1 // pred_check
      _
    $region27: #{tpu_custom_call.1} parent=1 // pred_check_branch
      %74 = sbr.rel (0) target = $region29
    $region28: #{tpu_custom_call.1} parent=1 // pred_region
      _
    $region29: #{tpu_custom_call.1} parent=1 // pred_fallthru
      _
    // Predicated region
    $region30: #{tpu_custom_call.1} parent=1 // pred_check
      _
    $region31: #{tpu_custom_call.1} parent=1 // pred_check_branch
      %76 = sbr.rel (0) target = $region33
    $region32: #{tpu_custom_call.1} parent=1 // pred_region
      %s78 = ssub.s32 512, 512
      %79 = vsyncadd [#allocation9], %s78
      %s80 = sshll.u32 [#allocation10], 4
      %s81 = int_to_ptr.vmem [resolvable:$true] %s80
      %86 = dma.hbm_to_vmem [thread:$0]  %s7, 512, %s81, [#allocation9], 128, 128, 8
    $region33: #{tpu_custom_call.1} parent=1 // pred_fallthru
      _
    // Predicated region
    $region34: #{tpu_custom_call.1} parent=1 // pred_check
      _
    $region35: #{tpu_custom_call.1} parent=1 // pred_check_branch
      %88 = sbr.rel (0) target = $region37
    $region36: #{tpu_custom_call.1} parent=1 // pred_region
      _
    $region37: #{tpu_custom_call.1} parent=1 // pred_fallthru
      _
    // Predicated region
    $region38: #{tpu_custom_call.1} parent=1 // pred_check
      _
    $region39: #{tpu_custom_call.1} parent=1 // pred_check_branch
      %90 = sbr.rel (0) target = $region41
    $region40: #{tpu_custom_call.1} parent=1 // pred_region
      %s92 = ssub.s32 12288, 12288
      %93 = vsyncadd [#allocation12], %s92
      %s94 = sshll.u32 [#allocation11], 4
      %s95 = int_to_ptr.vmem [resolvable:$true] %s94
      %100 = dma.hbm_to_vmem [thread:$0]  %s9, 12288, %s95, [#allocation12], 384, 384, 24
    $region41: #{tpu_custom_call.1} parent=1 // pred_fallthru
      _
    // Predicated region
    $region42: #{tpu_custom_call.1} parent=1 // pred_check
      _
    $region43: #{tpu_custom_call.1} parent=1 // pred_check_branch
      %102 = sbr.rel (0) target = $region45
    $region44: #{tpu_custom_call.1} parent=1 // pred_region
      _
    $region45: #{tpu_custom_call.1} parent=1 // pred_fallthru
      _
    // Predicated region
    $region46: #{tpu_custom_call.1} parent=1 // pred_check
      _
    $region47: #{tpu_custom_call.1} parent=1 // pred_check_branch
      %104 = sbr.rel (0) target = $region49
    $region48: #{tpu_custom_call.1} parent=1 // pred_region
      %s106 = ssub.s32 6144, 6144
      %107 = vsyncadd [#allocation12], %s106
      %s108 = sshll.u32 [#allocation13], 4
      %s109 = int_to_ptr.vmem [resolvable:$true] %s108
      %114 = dma.hbm_to_vmem [thread:$0]  %s11, 6144, %s109, [#allocation12], 64, 64, 4
    $region49: #{tpu_custom_call.1} parent=1 // pred_fallthru
      _
    // Predicated region
    $region50: #{tpu_custom_call.1} parent=1 // pred_check
      _
    $region51: #{tpu_custom_call.1} parent=1 // pred_check_branch
      %116 = sbr.rel (0) target = $region53
    $region52: #{tpu_custom_call.1} parent=1 // pred_region
      _
    $region53: #{tpu_custom_call.1} parent=1 // pred_fallthru
      _
    // Predicated region
    $region54: #{tpu_custom_call.1} parent=1 // pred_check
      _
    $region55: #{tpu_custom_call.1} parent=1 // pred_check_branch
      %118 = sbr.rel (0) target = $region57
    $region56: #{tpu_custom_call.1} parent=1 // pred_region
      %119 = dma.done [#allocation3], 192
    $region57: #{tpu_custom_call.1} parent=1 // pred_fallthru
      _
    // Predicated region
    $region58: #{tpu_custom_call.1} parent=1 // pred_check
      _
    $region59: #{tpu_custom_call.1} parent=1 // pred_check_branch
      %121 = sbr.rel (0) target = $region61
    $region60: #{tpu_custom_call.1} parent=1 // pred_region
      %122 = dma.done [#allocation6], 12288
    $region61: #{tpu_custom_call.1} parent=1 // pred_fallthru
      _
    // Predicated region
    $region62: #{tpu_custom_call.1} parent=1 // pred_check
      _
    $region63: #{tpu_custom_call.1} parent=1 // pred_check_branch
      %124 = sbr.rel (0) target = $region65
    $region64: #{tpu_custom_call.1} parent=1 // pred_region
      %125 = dma.done [#allocation6], 512
    $region65: #{tpu_custom_call.1} parent=1 // pred_fallthru
      _
    // Predicated region
    $region66: #{tpu_custom_call.1} parent=1 // pred_check
      _
    $region67: #{tpu_custom_call.1} parent=1 // pred_check_branch
      %127 = sbr.rel (0) target = $region69
    $region68: #{tpu_custom_call.1} parent=1 // pred_region
      %128 = dma.done [#allocation9], 512
    $region69: #{tpu_custom_call.1} parent=1 // pred_fallthru
      _
    // Predicated region
    $region70: #{tpu_custom_call.1} parent=1 // pred_check
      _
    $region71: #{tpu_custom_call.1} parent=1 // pred_check_branch
      %130 = sbr.rel (0) target = $region73
    $region72: #{tpu_custom_call.1} parent=1 // pred_region
      %131 = dma.done [#allocation9], 512
    $region73: #{tpu_custom_call.1} parent=1 // pred_fallthru
      _
    // Predicated region
    $region74: #{tpu_custom_call.1} parent=1 // pred_check
      _
    $region75: #{tpu_custom_call.1} parent=1 // pred_check_branch
      %133 = sbr.rel (0) target = $region77
    $region76: #{tpu_custom_call.1} parent=1 // pred_region
      %134 = dma.done [#allocation12], 12288
    $region77: #{tpu_custom_call.1} parent=1 // pred_fallthru
      _
    // Predicated region
    $region78: #{tpu_custom_call.1} parent=1 // pred_check
      _
    $region79: #{tpu_custom_call.1} parent=1 // pred_check_branch
      %136 = sbr.rel (0) target = $region81
    $region80: #{tpu_custom_call.1} parent=1 // pred_region
      %137 = dma.done [#allocation12], 6144
    $region81: #{tpu_custom_call.1} parent=1 // pred_fallthru
      _
    %v139 = vld [vmem:[#allocation2] sm:$0xff]
    %v140 = vld [vmem:[#allocation2 + $0x8] sm:$0xf]
    %v141 = vld [vmem:[#allocation5] sm:$0xff]
    %v142 = vld [vmem:[#allocation5 + $0x8] sm:$0xff]
    %v143 = vld [vmem:[#allocation5 + $0x10] sm:$0xff]
    %v144 = vld [vmem:[#allocation5 + $0x18] sm:$0xff]
    %v145 = vld [vmem:[#allocation5 + $0x20] sm:$0xff]
    %v146 = vld [vmem:[#allocation5 + $0x28] sm:$0xff]
    %v147 = vld [vmem:[#allocation5 + $0x30] sm:$0xff]
    %v148 = vld [vmem:[#allocation5 + $0x38] sm:$0xff]
    %v149 = vld [vmem:[#allocation5 + $0x40] sm:$0xff]
    %v150 = vld [vmem:[#allocation5 + $0x48] sm:$0xff]
    %v151 = vld [vmem:[#allocation5 + $0x50] sm:$0xff]
    %v152 = vld [vmem:[#allocation5 + $0x58] sm:$0xff]
    %v153 = vld [vmem:[#allocation5 + $0x60] sm:$0xff]
    %v154 = vld [vmem:[#allocation5 + $0x68] sm:$0xff]
    %v155 = vld [vmem:[#allocation5 + $0x70] sm:$0xff]
    %v156 = vld [vmem:[#allocation5 + $0x78] sm:$0xff]
    %v157 = vld [vmem:[#allocation5 + $0x80] sm:$0xff]
    %v158 = vld [vmem:[#allocation5 + $0x88] sm:$0xff]
    %v159 = vld [vmem:[#allocation5 + $0x90] sm:$0xff]
    %v160 = vld [vmem:[#allocation5 + $0x98] sm:$0xff]
    %v161 = vld [vmem:[#allocation5 + $0xa0] sm:$0xff]
    %v162 = vld [vmem:[#allocation5 + $0xa8] sm:$0xff]
    %v163 = vld [vmem:[#allocation5 + $0xb0] sm:$0xff]
    %v164 = vld [vmem:[#allocation5 + $0xb8] sm:$0xff]
    %v165 = vld [vmem:[#allocation5 + $0xc0] sm:$0xff]
    %v166 = vld [vmem:[#allocation5 + $0xc8] sm:$0xff]
    %v167 = vld [vmem:[#allocation5 + $0xd0] sm:$0xff]
    %v168 = vld [vmem:[#allocation5 + $0xd8] sm:$0xff]
    %v169 = vld [vmem:[#allocation5 + $0xe0] sm:$0xff]
    %v170 = vld [vmem:[#allocation5 + $0xe8] sm:$0xff]
    %v171 = vld [vmem:[#allocation5 + $0xf0] sm:$0xff]
    %v172 = vld [vmem:[#allocation5 + $0xf8] sm:$0xff]
    %v173 = vld [vmem:[#allocation5 + $0x100] sm:$0xff]
    %v174 = vld [vmem:[#allocation5 + $0x108] sm:$0xff]
    %v175 = vld [vmem:[#allocation5 + $0x110] sm:$0xff]
    %v176 = vld [vmem:[#allocation5 + $0x118] sm:$0xff]
    %v177 = vld [vmem:[#allocation5 + $0x120] sm:$0xff]
    %v178 = vld [vmem:[#allocation5 + $0x128] sm:$0xff]
    %v179 = vld [vmem:[#allocation5 + $0x130] sm:$0xff]
    %v180 = vld [vmem:[#allocation5 + $0x138] sm:$0xff]
    %v181 = vld [vmem:[#allocation5 + $0x140] sm:$0xff]
    %v182 = vld [vmem:[#allocation5 + $0x148] sm:$0xff]
    %v183 = vld [vmem:[#allocation5 + $0x150] sm:$0xff]
    %v184 = vld [vmem:[#allocation5 + $0x158] sm:$0xff]
    %v185 = vld [vmem:[#allocation5 + $0x160] sm:$0xff]
    %v186 = vld [vmem:[#allocation5 + $0x168] sm:$0xff]
    %v187 = vld [vmem:[#allocation5 + $0x170] sm:$0xff]
    %v188 = vld [vmem:[#allocation5 + $0x178] sm:$0xff]
    %v189 = vld [vmem:[#allocation5 + $0x180] sm:$0xff]
    %v190 = vld [vmem:[#allocation5 + $0x188] sm:$0xff]
    %v191 = vld [vmem:[#allocation5 + $0x190] sm:$0xff]
    %v192 = vld [vmem:[#allocation5 + $0x198] sm:$0xff]
    %v193 = vld [vmem:[#allocation5 + $0x1a0] sm:$0xff]
    %v194 = vld [vmem:[#allocation5 + $0x1a8] sm:$0xff]
    %v195 = vld [vmem:[#allocation5 + $0x1b0] sm:$0xff]
    %v196 = vld [vmem:[#allocation5 + $0x1b8] sm:$0xff]
    %v197 = vld [vmem:[#allocation5 + $0x1c0] sm:$0xff]
    %v198 = vld [vmem:[#allocation5 + $0x1c8] sm:$0xff]
    %v199 = vld [vmem:[#allocation5 + $0x1d0] sm:$0xff]
    %v200 = vld [vmem:[#allocation5 + $0x1d8] sm:$0xff]
    %v201 = vld [vmem:[#allocation5 + $0x1e0] sm:$0xff]
    %v202 = vld [vmem:[#allocation5 + $0x1e8] sm:$0xff]
    %v203 = vld [vmem:[#allocation5 + $0x1f0] sm:$0xff]
    %v204 = vld [vmem:[#allocation5 + $0x1f8] sm:$0xff]
    %v205 = vld [vmem:[#allocation5 + $0x200] sm:$0xff]
    %v206 = vld [vmem:[#allocation5 + $0x208] sm:$0xff]
    %v207 = vld [vmem:[#allocation5 + $0x210] sm:$0xff]
    %v208 = vld [vmem:[#allocation5 + $0x218] sm:$0xff]
    %v209 = vld [vmem:[#allocation5 + $0x220] sm:$0xff]
    %v210 = vld [vmem:[#allocation5 + $0x228] sm:$0xff]
    %v211 = vld [vmem:[#allocation5 + $0x230] sm:$0xff]
    %v212 = vld [vmem:[#allocation5 + $0x238] sm:$0xff]
    %v213 = vld [vmem:[#allocation5 + $0x240] sm:$0xff]
    %v214 = vld [vmem:[#allocation5 + $0x248] sm:$0xff]
    %v215 = vld [vmem:[#allocation5 + $0x250] sm:$0xff]
    %v216 = vld [vmem:[#allocation5 + $0x258] sm:$0xff]
    %v217 = vld [vmem:[#allocation5 + $0x260] sm:$0xff]
    %v218 = vld [vmem:[#allocation5 + $0x268] sm:$0xff]
    %v219 = vld [vmem:[#allocation5 + $0x270] sm:$0xff]
    %v220 = vld [vmem:[#allocation5 + $0x278] sm:$0xff]
    %v221 = vld [vmem:[#allocation5 + $0x280] sm:$0xff]
    %v222 = vld [vmem:[#allocation5 + $0x288] sm:$0xff]
    %v223 = vld [vmem:[#allocation5 + $0x290] sm:$0xff]
    %v224 = vld [vmem:[#allocation5 + $0x298] sm:$0xff]
    %v225 = vld [vmem:[#allocation5 + $0x2a0] sm:$0xff]
    %v226 = vld [vmem:[#allocation5 + $0x2a8] sm:$0xff]
    %v227 = vld [vmem:[#allocation5 + $0x2b0] sm:$0xff]
    %v228 = vld [vmem:[#allocation5 + $0x2b8] sm:$0xff]
    %v229 = vld [vmem:[#allocation5 + $0x2c0] sm:$0xff]
    %v230 = vld [vmem:[#allocation5 + $0x2c8] sm:$0xff]
    %v231 = vld [vmem:[#allocation5 + $0x2d0] sm:$0xff]
    %v232 = vld [vmem:[#allocation5 + $0x2d8] sm:$0xff]
    %v233 = vld [vmem:[#allocation5 + $0x2e0] sm:$0xff]
    %v234 = vld [vmem:[#allocation5 + $0x2e8] sm:$0xff]
    %v235 = vld [vmem:[#allocation5 + $0x2f0] sm:$0xff]
    %v236 = vld [vmem:[#allocation5 + $0x2f8] sm:$0xff]
    %v237 = vld [vmem:[%s2] sm:$0x3]
    %v239 = vlaneseq
    %v240 = vshrl.u32 %v239, 7
    %v241 = vsub.s32 0, %v240
    %v242 = vrot.slane %v237, %v241
    %v243 = vlaneseq
    %v244 = vshrl.u32 %v243, 7
    %v245 = vsub.s32 1, %v244
    %v246 = vrot.slane %v237, %v245
    %v251 = vcombine.high %v139, %v139
    %v253 = vunpack.c.l.s4 1983009808
    %v254 = vunpack.c.0.s8 %v253
    %v255 = vlaneseq
    %v256 = vshrl.u32 %v255, 7
    %v257 = vsub.s32 %v254, %v256
    %v258 = vrot.slane %v139, %v257
    %v260 = vunpack.c.l.s4 1983009808
    %v261 = vunpack.c.0.s8 %v260
    %v262 = vlaneseq
    %v263 = vshrl.u32 %v262, 7
    %v264 = vsub.s32 %v261, %v263
    %v265 = vrot.slane %v251, %v264
    %v266 = vcombine.high %v258, %v258
    %v267 = vcombine.high %v265, %v265
    %v269 = vunpack.c.l.s4 1983009808
    %v270 = vunpack.c.0.s8 %v269
    %v271 = vlaneseq
    %v272 = vshrl.u32 %v271, 7
    %v273 = vsub.s32 %v270, %v272
    %v274 = vrot.slane %v140, %v273
    %v275 = vcombine.high %v274, %v274
    %v378 = vunpack.c.l.b16 %v141
    %v379 = vunpack.c.h.b16 %v141
    %v380 = vunpack.c.l.b16 %v142
    %v381 = vunpack.c.h.b16 %v142
    %v382 = vunpack.c.l.b16 %v143
    %v383 = vunpack.c.h.b16 %v143
    %v384 = vunpack.c.l.b16 %v144
    %v385 = vunpack.c.h.b16 %v144
    %v386 = vunpack.c.l.b16 %v145
    %v387 = vunpack.c.h.b16 %v145
    %v388 = vunpack.c.l.b16 %v146
    %v389 = vunpack.c.h.b16 %v146
    %v390 = vunpack.c.l.b16 %v147
    %v391 = vunpack.c.h.b16 %v147
    %v392 = vunpack.c.l.b16 %v148
    %v393 = vunpack.c.h.b16 %v148
    %v394 = vunpack.c.l.b16 %v149
    %v395 = vunpack.c.h.b16 %v149
    %v396 = vunpack.c.l.b16 %v150
    %v397 = vunpack.c.h.b16 %v150
    %v398 = vunpack.c.l.b16 %v151
    %v399 = vunpack.c.h.b16 %v151
    %v400 = vunpack.c.l.b16 %v152
    %v401 = vunpack.c.h.b16 %v152
    %v402 = vunpack.c.l.b16 %v153
    %v403 = vunpack.c.h.b16 %v153
    %v404 = vunpack.c.l.b16 %v154
    %v405 = vunpack.c.h.b16 %v154
    %v406 = vunpack.c.l.b16 %v155
    %v407 = vunpack.c.h.b16 %v155
    %v408 = vunpack.c.l.b16 %v156
    %v409 = vunpack.c.h.b16 %v156
    %v410 = vunpack.c.l.b16 %v157
    %v411 = vunpack.c.h.b16 %v157
    %v412 = vunpack.c.l.b16 %v158
    %v413 = vunpack.c.h.b16 %v158
    %v414 = vunpack.c.l.b16 %v159
    %v415 = vunpack.c.h.b16 %v159
    %v416 = vunpack.c.l.b16 %v160
    %v417 = vunpack.c.h.b16 %v160
    %v418 = vunpack.c.l.b16 %v161
    %v419 = vunpack.c.h.b16 %v161
    %v420 = vunpack.c.l.b16 %v162
    %v421 = vunpack.c.h.b16 %v162
    %v422 = vunpack.c.l.b16 %v163
    %v423 = vunpack.c.h.b16 %v163
    %v424 = vunpack.c.l.b16 %v164
    %v425 = vunpack.c.h.b16 %v164
    %v426 = vunpack.c.l.b16 %v165
    %v427 = vunpack.c.h.b16 %v165
    %v428 = vunpack.c.l.b16 %v166
    %v429 = vunpack.c.h.b16 %v166
    %v430 = vunpack.c.l.b16 %v167
    %v431 = vunpack.c.h.b16 %v167
    %v432 = vunpack.c.l.b16 %v168
    %v433 = vunpack.c.h.b16 %v168
    %v434 = vunpack.c.l.b16 %v169
    %v435 = vunpack.c.h.b16 %v169
    %v436 = vunpack.c.l.b16 %v170
    %v437 = vunpack.c.h.b16 %v170
    %v438 = vunpack.c.l.b16 %v171
    %v439 = vunpack.c.h.b16 %v171
    %v440 = vunpack.c.l.b16 %v172
    %v441 = vunpack.c.h.b16 %v172
    %v442 = vunpack.c.l.b16 %v173
    %v443 = vunpack.c.h.b16 %v173
    %v444 = vunpack.c.l.b16 %v174
    %v445 = vunpack.c.h.b16 %v174
    %v446 = vunpack.c.l.b16 %v175
    %v447 = vunpack.c.h.b16 %v175
    %v448 = vunpack.c.l.b16 %v176
    %v449 = vunpack.c.h.b16 %v176
    %v450 = vunpack.c.l.b16 %v177
    %v451 = vunpack.c.h.b16 %v177
    %v452 = vunpack.c.l.b16 %v178
    %v453 = vunpack.c.h.b16 %v178
    %v454 = vunpack.c.l.b16 %v179
    %v455 = vunpack.c.h.b16 %v179
    %v456 = vunpack.c.l.b16 %v180
    %v457 = vunpack.c.h.b16 %v180
    %v458 = vunpack.c.l.b16 %v181
    %v459 = vunpack.c.h.b16 %v181
    %v460 = vunpack.c.l.b16 %v182
    %v461 = vunpack.c.h.b16 %v182
    %v462 = vunpack.c.l.b16 %v183
    %v463 = vunpack.c.h.b16 %v183
    %v464 = vunpack.c.l.b16 %v184
    %v465 = vunpack.c.h.b16 %v184
    %v466 = vunpack.c.l.b16 %v185
    %v467 = vunpack.c.h.b16 %v185
    %v468 = vunpack.c.l.b16 %v186
    %v469 = vunpack.c.h.b16 %v186
    %v470 = vunpack.c.l.b16 %v187
    %v471 = vunpack.c.h.b16 %v187
    %v472 = vunpack.c.l.b16 %v188
    %v473 = vunpack.c.h.b16 %v188
    %v474 = vunpack.c.l.b16 %v189
    %v475 = vunpack.c.h.b16 %v189
    %v476 = vunpack.c.l.b16 %v190
    %v477 = vunpack.c.h.b16 %v190
    %v478 = vunpack.c.l.b16 %v191
    %v479 = vunpack.c.h.b16 %v191
    %v480 = vunpack.c.l.b16 %v192
    %v481 = vunpack.c.h.b16 %v192
    %v482 = vunpack.c.l.b16 %v193
    %v483 = vunpack.c.h.b16 %v193
    %v484 = vunpack.c.l.b16 %v194
    %v485 = vunpack.c.h.b16 %v194
    %v486 = vunpack.c.l.b16 %v195
    %v487 = vunpack.c.h.b16 %v195
    %v488 = vunpack.c.l.b16 %v196
    %v489 = vunpack.c.h.b16 %v196
    %v490 = vunpack.c.l.b16 %v197
    %v491 = vunpack.c.h.b16 %v197
    %v492 = vunpack.c.l.b16 %v198
    %v493 = vunpack.c.h.b16 %v198
    %v494 = vunpack.c.l.b16 %v199
    %v495 = vunpack.c.h.b16 %v199
    %v496 = vunpack.c.l.b16 %v200
    %v497 = vunpack.c.h.b16 %v200
    %v498 = vunpack.c.l.b16 %v201
    %v499 = vunpack.c.h.b16 %v201
    %v500 = vunpack.c.l.b16 %v202
    %v501 = vunpack.c.h.b16 %v202
    %v502 = vunpack.c.l.b16 %v203
    %v503 = vunpack.c.h.b16 %v203
    %v504 = vunpack.c.l.b16 %v204
    %v505 = vunpack.c.h.b16 %v204
    %v506 = vunpack.c.l.b16 %v205
    %v507 = vunpack.c.h.b16 %v205
    %v508 = vunpack.c.l.b16 %v206
    %v509 = vunpack.c.h.b16 %v206
    %v510 = vunpack.c.l.b16 %v207
    %v511 = vunpack.c.h.b16 %v207
    %v512 = vunpack.c.l.b16 %v208
    %v513 = vunpack.c.h.b16 %v208
    %v514 = vunpack.c.l.b16 %v209
    %v515 = vunpack.c.h.b16 %v209
    %v516 = vunpack.c.l.b16 %v210
    %v517 = vunpack.c.h.b16 %v210
    %v518 = vunpack.c.l.b16 %v211
    %v519 = vunpack.c.h.b16 %v211
    %v520 = vunpack.c.l.b16 %v212
    %v521 = vunpack.c.h.b16 %v212
    %v522 = vunpack.c.l.b16 %v213
    %v523 = vunpack.c.h.b16 %v213
    %v524 = vunpack.c.l.b16 %v214
    %v525 = vunpack.c.h.b16 %v214
    %v526 = vunpack.c.l.b16 %v215
    %v527 = vunpack.c.h.b16 %v215
    %v528 = vunpack.c.l.b16 %v216
    %v529 = vunpack.c.h.b16 %v216
    %v530 = vunpack.c.l.b16 %v217
    %v531 = vunpack.c.h.b16 %v217
    %v532 = vunpack.c.l.b16 %v218
    %v533 = vunpack.c.h.b16 %v218
    %v534 = vunpack.c.l.b16 %v219
    %v535 = vunpack.c.h.b16 %v219
    %v536 = vunpack.c.l.b16 %v220
    %v537 = vunpack.c.h.b16 %v220
    %v538 = vunpack.c.l.b16 %v221
    %v539 = vunpack.c.h.b16 %v221
    %v540 = vunpack.c.l.b16 %v222
    %v541 = vunpack.c.h.b16 %v222
    %v542 = vunpack.c.l.b16 %v223
    %v543 = vunpack.c.h.b16 %v223
    %v544 = vunpack.c.l.b16 %v224
    %v545 = vunpack.c.h.b16 %v224
    %v546 = vunpack.c.l.b16 %v225
    %v547 = vunpack.c.h.b16 %v225
    %v548 = vunpack.c.l.b16 %v226
    %v549 = vunpack.c.h.b16 %v226
    %v550 = vunpack.c.l.b16 %v227
    %v551 = vunpack.c.h.b16 %v227
    %v552 = vunpack.c.l.b16 %v228
    %v553 = vunpack.c.h.b16 %v228
    %v554 = vunpack.c.l.b16 %v229
    %v555 = vunpack.c.h.b16 %v229
    %v556 = vunpack.c.l.b16 %v230
    %v557 = vunpack.c.h.b16 %v230
    %v558 = vunpack.c.l.b16 %v231
    %v559 = vunpack.c.h.b16 %v231
    %v560 = vunpack.c.l.b16 %v232
    %v561 = vunpack.c.h.b16 %v232
    %v562 = vunpack.c.l.b16 %v233
    %v563 = vunpack.c.h.b16 %v233
    %v564 = vunpack.c.l.b16 %v234
    %v565 = vunpack.c.h.b16 %v234
    %v566 = vunpack.c.l.b16 %v235
    %v567 = vunpack.c.h.b16 %v235
    %v568 = vunpack.c.l.b16 %v236
    %v569 = vunpack.c.h.b16 %v236
    %v570 = vpack.c.b16 %v380, %v378
    %v571 = vpack.c.b16 %v381, %v379
    %v572 = vpack.c.b16 %v384, %v382
    %v573 = vpack.c.b16 %v385, %v383
    %v574 = vpack.c.b16 %v388, %v386
    %v575 = vpack.c.b16 %v389, %v387
    %v576 = vpack.c.b16 %v392, %v390
    %v577 = vpack.c.b16 %v393, %v391
    %v578 = vpack.c.b16 %v396, %v394
    %v579 = vpack.c.b16 %v397, %v395
    %v580 = vpack.c.b16 %v400, %v398
    %v581 = vpack.c.b16 %v401, %v399
    %v582 = vpack.c.b16 %v404, %v402
    %v583 = vpack.c.b16 %v405, %v403
    %v584 = vpack.c.b16 %v408, %v406
    %v585 = vpack.c.b16 %v409, %v407
    %v586 = vpack.c.b16 %v412, %v410
    %v587 = vpack.c.b16 %v413, %v411
    %v588 = vpack.c.b16 %v416, %v414
    %v589 = vpack.c.b16 %v417, %v415
    %v590 = vpack.c.b16 %v420, %v418
    %v591 = vpack.c.b16 %v421, %v419
    %v592 = vpack.c.b16 %v424, %v422
    %v593 = vpack.c.b16 %v425, %v423
    %v594 = vpack.c.b16 %v428, %v426
    %v595 = vpack.c.b16 %v429, %v427
    %v596 = vpack.c.b16 %v432, %v430
    %v597 = vpack.c.b16 %v433, %v431
    %v598 = vpack.c.b16 %v436, %v434
    %v599 = vpack.c.b16 %v437, %v435
    %v600 = vpack.c.b16 %v440, %v438
    %v601 = vpack.c.b16 %v441, %v439
    %v602 = vpack.c.b16 %v444, %v442
    %v603 = vpack.c.b16 %v445, %v443
    %v604 = vpack.c.b16 %v448, %v446
    %v605 = vpack.c.b16 %v449, %v447
    %v606 = vpack.c.b16 %v452, %v450
    %v607 = vpack.c.b16 %v453, %v451
    %v608 = vpack.c.b16 %v456, %v454
    %v609 = vpack.c.b16 %v457, %v455
    %v610 = vpack.c.b16 %v460, %v458
    %v611 = vpack.c.b16 %v461, %v459
    %v612 = vpack.c.b16 %v464, %v462
    %v613 = vpack.c.b16 %v465, %v463
    %v614 = vpack.c.b16 %v468, %v466
    %v615 = vpack.c.b16 %v469, %v467
    %v616 = vpack.c.b16 %v472, %v470
    %v617 = vpack.c.b16 %v473, %v471
    %v618 = vpack.c.b16 %v476, %v474
    %v619 = vpack.c.b16 %v477, %v475
    %v620 = vpack.c.b16 %v480, %v478
    %v621 = vpack.c.b16 %v481, %v479
    %v622 = vpack.c.b16 %v484, %v482
    %v623 = vpack.c.b16 %v485, %v483
    %v624 = vpack.c.b16 %v488, %v486
    %v625 = vpack.c.b16 %v489, %v487
    %v626 = vpack.c.b16 %v492, %v490
    %v627 = vpack.c.b16 %v493, %v491
    %v628 = vpack.c.b16 %v496, %v494
    %v629 = vpack.c.b16 %v497, %v495
    %v630 = vpack.c.b16 %v500, %v498
    %v631 = vpack.c.b16 %v501, %v499
    %v632 = vpack.c.b16 %v504, %v502
    %v633 = vpack.c.b16 %v505, %v503
    %v634 = vpack.c.b16 %v508, %v506
    %v635 = vpack.c.b16 %v509, %v507
    %v636 = vpack.c.b16 %v512, %v510
    %v637 = vpack.c.b16 %v513, %v511
    %v638 = vpack.c.b16 %v516, %v514
    %v639 = vpack.c.b16 %v517, %v515
    %v640 = vpack.c.b16 %v520, %v518
    %v641 = vpack.c.b16 %v521, %v519
    %v642 = vpack.c.b16 %v524, %v522
    %v643 = vpack.c.b16 %v525, %v523
    %v644 = vpack.c.b16 %v528, %v526
    %v645 = vpack.c.b16 %v529, %v527
    %v646 = vpack.c.b16 %v532, %v530
    %v647 = vpack.c.b16 %v533, %v531
    %v648 = vpack.c.b16 %v536, %v534
    %v649 = vpack.c.b16 %v537, %v535
    %v650 = vpack.c.b16 %v540, %v538
    %v651 = vpack.c.b16 %v541, %v539
    %v652 = vpack.c.b16 %v544, %v542
    %v653 = vpack.c.b16 %v545, %v543
    %v654 = vpack.c.b16 %v548, %v546
    %v655 = vpack.c.b16 %v549, %v547
    %v656 = vpack.c.b16 %v552, %v550
    %v657 = vpack.c.b16 %v553, %v551
    %v658 = vpack.c.b16 %v556, %v554
    %v659 = vpack.c.b16 %v557, %v555
    %v660 = vpack.c.b16 %v560, %v558
    %v661 = vpack.c.b16 %v561, %v559
    %v662 = vpack.c.b16 %v564, %v562
    %v663 = vpack.c.b16 %v565, %v563
    %v664 = vpack.c.b16 %v568, %v566
    %v665 = vpack.c.b16 %v569, %v567
    %762 = vmatprep.subr.bf16.mxu0 %v571
    %763 = vmatpush1.bf16.msra.mxu0 %v570
    %764 = vmatprep.subr.bf16.mxu0 %v573
    %765 = vmatpush1.bf16.msra.mxu0 %v572
    %766 = vmatprep.subr.bf16.mxu0 %v575
    %767 = vmatpush1.bf16.msra.mxu0 %v574
    %768 = vmatprep.subr.bf16.mxu0 %v577
    %769 = vmatpush1.bf16.msra.mxu0 %v576
    %770 = vmatprep.subr.bf16.mxu0 %v579
    %771 = vmatpush1.bf16.msra.mxu0 %v578
    %772 = vmatprep.subr.bf16.mxu0 %v581
    %773 = vmatpush1.bf16.msra.mxu0 %v580
    %774 = vmatprep.subr.bf16.mxu0 %v583
    %775 = vmatpush1.bf16.msra.mxu0 %v582
    %776 = vmatprep.subr.bf16.mxu0 %v585
    %777 = vmatpush1.bf16.msra.mxu0 %v584
    %778 = vmatprep.subr.bf16.mxu0 %v587
    %779 = vmatpush1.bf16.msra.mxu0 %v586
    %780 = vmatprep.subr.bf16.mxu0 %v589
    %781 = vmatpush1.bf16.msra.mxu0 %v588
    %782 = vmatprep.subr.bf16.mxu0 %v591
    %783 = vmatpush1.bf16.msra.mxu0 %v590
    %784 = vmatprep.subr.bf16.mxu0 %v593
    %785 = vmatpush1.bf16.msra.mxu0 %v592
    %786 = vmatprep.subr.bf16.mxu0 %v595
    %787 = vmatpush1.bf16.msra.mxu0 %v594
    %788 = vmatprep.subr.bf16.mxu0 %v597
    %789 = vmatpush1.bf16.msra.mxu0 %v596
    %790 = vmatprep.subr.bf16.mxu0 %v599
    %791 = vmatpush1.bf16.msra.mxu0 %v598
    %792 = vmatprep.subr.bf16.mxu0 %v601
    %793 = vmatpush1.bf16.msra.mxu0 %v600
    %794 = vmatprep.mubr.bf16.mxu0 %v266
    %795 = vmatmul.mubr.bf16.gmra.mrb[0].mxu0 %v258
    %v796 = vpop.f32.mrb[0].mxu0
    %v797 = vadd.f32 %v242, %v796
    %v798 = vpop.f32.mrb[0].mxu0
    %v799 = vadd.f32 %v246, %v798
    %v800 = vpop.f32.mrb[0].mxu0
    %v801 = vpop.f32.mrb[0].mxu0
    %802 = vdwg.mxu0
    %803 = vmatprep.subr.bf16.mxu0 %v603
    %804 = vmatpush1.bf16.msra.mxu0 %v602
    %805 = vmatprep.subr.bf16.mxu0 %v605
    %806 = vmatpush1.bf16.msra.mxu0 %v604
    %807 = vmatprep.subr.bf16.mxu0 %v607
    %808 = vmatpush1.bf16.msra.mxu0 %v606
    %809 = vmatprep.subr.bf16.mxu0 %v609
    %810 = vmatpush1.bf16.msra.mxu0 %v608
    %811 = vmatprep.subr.bf16.mxu0 %v611
    %812 = vmatpush1.bf16.msra.mxu0 %v610
    %813 = vmatprep.subr.bf16.mxu0 %v613
    %814 = vmatpush1.bf16.msra.mxu0 %v612
    %815 = vmatprep.subr.bf16.mxu0 %v615
    %816 = vmatpush1.bf16.msra.mxu0 %v614
    %817 = vmatprep.subr.bf16.mxu0 %v617
    %818 = vmatpush1.bf16.msra.mxu0 %v616
    %819 = vmatprep.subr.bf16.mxu0 %v619
    %820 = vmatpush1.bf16.msra.mxu0 %v618
    %821 = vmatprep.subr.bf16.mxu0 %v621
    %822 = vmatpush1.bf16.msra.mxu0 %v620
    %823 = vmatprep.subr.bf16.mxu0 %v623
    %824 = vmatpush1.bf16.msra.mxu0 %v622
    %825 = vmatprep.subr.bf16.mxu0 %v625
    %826 = vmatpush1.bf16.msra.mxu0 %v624
    %827 = vmatprep.subr.bf16.mxu0 %v627
    %828 = vmatpush1.bf16.msra.mxu0 %v626
    %829 = vmatprep.subr.bf16.mxu0 %v629
    %830 = vmatpush1.bf16.msra.mxu0 %v628
    %831 = vmatprep.subr.bf16.mxu0 %v631
    %832 = vmatpush1.bf16.msra.mxu0 %v630
    %833 = vmatprep.subr.bf16.mxu0 %v633
    %834 = vmatpush1.bf16.msra.mxu0 %v632
    %835 = vmatprep.mubr.bf16.mxu0 %v267
    %836 = vmatmul.mubr.bf16.gmra.mrb[0].mxu0 %v265
    %v837 = vpop.f32.mrb[0].mxu0
    %v838 = vadd.f32 %v797, %v837
    %v839 = vpop.f32.mrb[0].mxu0
    %v840 = vadd.f32 %v799, %v839
    %v841 = vpop.f32.mrb[0].mxu0
    %v842 = vpop.f32.mrb[0].mxu0
    %843 = vdwg.mxu0
    %844 = vmatprep.subr.bf16.mxu0 %v635
    %845 = vmatpush1.bf16.msra.mxu0 %v634
    %846 = vmatprep.subr.bf16.mxu0 %v637
    %847 = vmatpush1.bf16.msra.mxu0 %v636
    %848 = vmatprep.subr.bf16.mxu0 %v639
    %849 = vmatpush1.bf16.msra.mxu0 %v638
    %850 = vmatprep.subr.bf16.mxu0 %v641
    %851 = vmatpush1.bf16.msra.mxu0 %v640
    %852 = vmatprep.subr.bf16.mxu0 %v643
    %853 = vmatpush1.bf16.msra.mxu0 %v642
    %854 = vmatprep.subr.bf16.mxu0 %v645
    %855 = vmatpush1.bf16.msra.mxu0 %v644
    %856 = vmatprep.subr.bf16.mxu0 %v647
    %857 = vmatpush1.bf16.msra.mxu0 %v646
    %858 = vmatprep.subr.bf16.mxu0 %v649
    %859 = vmatpush1.bf16.msra.mxu0 %v648
    %860 = vmatprep.subr.bf16.mxu0 %v651
    %861 = vmatpush1.bf16.msra.mxu0 %v650
    %862 = vmatprep.subr.bf16.mxu0 %v653
    %863 = vmatpush1.bf16.msra.mxu0 %v652
    %864 = vmatprep.subr.bf16.mxu0 %v655
    %865 = vmatpush1.bf16.msra.mxu0 %v654
    %866 = vmatprep.subr.bf16.mxu0 %v657
    %867 = vmatpush1.bf16.msra.mxu0 %v656
    %868 = vmatprep.subr.bf16.mxu0 %v659
    %869 = vmatpush1.bf16.msra.mxu0 %v658
    %870 = vmatprep.subr.bf16.mxu0 %v661
    %871 = vmatpush1.bf16.msra.mxu0 %v660
    %872 = vmatprep.subr.bf16.mxu0 %v663
    %873 = vmatpush1.bf16.msra.mxu0 %v662
    %874 = vmatprep.subr.bf16.mxu0 %v665
    %875 = vmatpush1.bf16.msra.mxu0 %v664
    %876 = vmatprep.mubr.bf16.mxu0 %v275
    %877 = vmatmul.mubr.bf16.gmra.mrb[0].mxu0 %v274
    %v878 = vpop.f32.mrb[0].mxu0
    %v879 = vadd.f32 %v838, %v878
    %v880 = vpop.f32.mrb[0].mxu0
    %v881 = vadd.f32 %v840, %v880
    %v882 = vpop.f32.mrb[0].mxu0
    %v883 = vpop.f32.mrb[0].mxu0
    %884 = vdwg.mxu0
    %886 = vrot.lane.b32.xlu0 %v879, 96
    %v887 = vpop.permute.xlu0 %886
    %889 = vrot.lane.b32.xlu0 %v879, 64
    %v890 = vpop.permute.xlu0 %889
    %892 = vrot.lane.b32.xlu0 %v879, 32
    %v893 = vpop.permute.xlu0 %892
    %896 = vrot.lane.b32.xlu0 %v881, 96
    %v897 = vpop.permute.xlu0 %896
    %899 = vrot.lane.b32.xlu0 %v881, 64
    %v900 = vpop.permute.xlu0 %899
    %902 = vrot.lane.b32.xlu0 %v881, 32
    %v903 = vpop.permute.xlu0 %902
    %v905 = vcombine.low %v879, %v890
    %v907 = vunpack.c.l.s4 1983009808
    %v908 = vunpack.c.0.s8 %v907
    %v909 = vlaneseq
    %v910 = vshrl.u32 %v909, 7
    %v911 = vsub.s32 %v908, %v910
    %v912 = vrot.slane %v905, %v911
    %v913 = vcombine.low %v887, %v893
    %v915 = vunpack.c.l.s4 1983009808
    %v916 = vunpack.c.0.s8 %v915
    %v917 = vlaneseq
    %v918 = vshrl.u32 %v917, 7
    %v919 = vsub.s32 %v916, %v918
    %v920 = vrot.slane %v913, %v919
    %v921 = vcombine.low %v881, %v900
    %v923 = vunpack.c.l.s4 1983009808
    %v924 = vunpack.c.0.s8 %v923
    %v925 = vlaneseq
    %v926 = vshrl.u32 %v925, 7
    %v927 = vsub.s32 %v924, %v926
    %v928 = vrot.slane %v921, %v927
    %v929 = vcombine.low %v897, %v903
    %v931 = vunpack.c.l.s4 1983009808
    %v932 = vunpack.c.0.s8 %v931
    %v933 = vlaneseq
    %v934 = vshrl.u32 %v933, 7
    %v935 = vsub.s32 %v932, %v934
    %v936 = vrot.slane %v929, %v935
    %v937 = vcombine.low %v912, %v920
    %v938 = vcombine.high %v912, %v920
    %v940 = vunpack.c.l.s4 1934713408
    %v941 = vunpack.c.0.s8 %v940
    %v942 = vlaneseq
    %v943 = vshrl.u32 %v942, 7
    %v944 = vsub.s32 %v941, %v943
    %v945 = vrot.slane %v937, %v944
    %v947 = vunpack.c.l.s4 1934713408
    %v948 = vunpack.c.0.s8 %v947
    %v949 = vlaneseq
    %v950 = vshrl.u32 %v949, 7
    %v951 = vsub.s32 %v948, %v950
    %v952 = vrot.slane %v938, %v951
    %v953 = vcombine.low %v928, %v936
    %v954 = vcombine.high %v928, %v936
    %v956 = vunpack.c.l.s4 1934713408
    %v957 = vunpack.c.0.s8 %v956
    %v958 = vlaneseq
    %v959 = vshrl.u32 %v958, 7
    %v960 = vsub.s32 %v957, %v959
    %v961 = vrot.slane %v953, %v960
    %v963 = vunpack.c.l.s4 1934713408
    %v964 = vunpack.c.0.s8 %v963
    %v965 = vlaneseq
    %v966 = vshrl.u32 %v965, 7
    %v967 = vsub.s32 %v964, %v966
    %v968 = vrot.slane %v954, %v967
    %v969 = vcombine.low %v945, %v961
    %v970 = vcombine.high %v945, %v961
    %v971 = vcombine.low %v952, %v968
    %v972 = vcombine.high %v952, %v968
    %v973 = vld [vmem:[#allocation7] sm:$0xff]
    %v974 = vld [vmem:[#allocation7 + $0x8] sm:$0xff]
    %v975 = vld [vmem:[#allocation7 + $0x10] sm:$0xff]
    %v976 = vld [vmem:[#allocation7 + $0x18] sm:$0xff]
    %v977 = vld [vmem:[%s4] sm:$0x1]
    %v979 = vlaneseq
    %v980 = vshrl.u32 %v979, 7
    %v981 = vsub.s32 0, %v980
    %v982 = vrot.slane %v977, %v981
    %vm984 = vcmask 261120
    %v986 = vsel %vm984, %v969, 0
    %v989 = vsel %vm984, %v970, 0
    %991 = vmatprep.subr.mxu0 0.0
    %992 = vmatpush1.msra.mxu0 %v973
    %993 = vmatprep.subr.mxu0 0.0
    %994 = vmatpush1.msra.mxu0 %v974
    %995 = vmatprep.subr.mxu0 0.0
    %996 = vmatpush1.msra.mxu0 %v975
    %997 = vmatprep.subr.mxu0 0.0
    %998 = vmatpush1.msra.mxu0 %v976
    %999 = vmatprep.subr.mxu0 0.0
    %1000 = vmatpush1.msra.mxu0 0.0
    %1001 = vmatprep.subr.mxu0 0.0
    %1002 = vmatpush1.msra.mxu0 0.0
    %1003 = vmatprep.subr.mxu0 0.0
    %1004 = vmatpush1.msra.mxu0 0.0
    %1005 = vmatprep.subr.mxu0 0.0
    %1006 = vmatpush1.msra.mxu0 0.0
    %1007 = vmatprep.subr.mxu0 0.0
    %1008 = vmatpush1.msra.mxu0 0.0
    %1009 = vmatprep.subr.mxu0 0.0
    %1010 = vmatpush1.msra.mxu0 0.0
    %1011 = vmatprep.subr.mxu0 0.0
    %1012 = vmatpush1.msra.mxu0 0.0
    %1013 = vmatprep.subr.mxu0 0.0
    %1014 = vmatpush1.msra.mxu0 0.0
    %1015 = vmatprep.subr.mxu0 0.0
    %1016 = vmatpush1.msra.mxu0 0.0
    %1017 = vmatprep.subr.mxu0 0.0
    %1018 = vmatpush1.msra.mxu0 0.0
    %1019 = vmatprep.subr.mxu0 0.0
    %1020 = vmatpush1.msra.mxu0 0.0
    %1021 = vmatprep.subr.mxu0 0.0
    %1022 = vmatpush1.msra.mxu0 0.0
    %1023 = vmatprep.subr.mxu0 0.0
    %1024 = vmatpush1.msra.mxu0 0.0
    %1025 = vmatprep.subr.mxu0 0.0
    %1026 = vmatpush1.msra.mxu0 0.0
    %1027 = vmatprep.subr.mxu0 0.0
    %1028 = vmatpush1.msra.mxu0 0.0
    %1029 = vmatprep.subr.mxu0 0.0
    %1030 = vmatpush1.msra.mxu0 0.0
    %1031 = vmatprep.subr.mxu0 0.0
    %1032 = vmatpush1.msra.mxu0 0.0
    %1033 = vmatprep.subr.mxu0 0.0
    %1034 = vmatpush1.msra.mxu0 0.0
    %1035 = vmatprep.subr.mxu0 0.0
    %1036 = vmatpush1.msra.mxu0 0.0
    %1037 = vmatprep.subr.mxu0 0.0
    %1038 = vmatpush1.msra.mxu0 0.0
    %1039 = vmatprep.subr.mxu0 0.0
    %1040 = vmatpush1.msra.mxu0 0.0
    %1041 = vmatprep.subr.mxu0 0.0
    %1042 = vmatpush1.msra.mxu0 0.0
    %1043 = vmatprep.subr.mxu0 0.0
    %1044 = vmatpush1.msra.mxu0 0.0
    %1045 = vmatprep.subr.mxu0 0.0
    %1046 = vmatpush1.msra.mxu0 0.0
    %1047 = vmatprep.subr.mxu0 0.0
    %1048 = vmatpush1.msra.mxu0 0.0
    %1049 = vmatprep.subr.mxu0 0.0
    %1050 = vmatpush1.msra.mxu0 0.0
    %1051 = vmatprep.subr.mxu0 0.0
    %1052 = vmatpush1.msra.mxu0 0.0
    %1053 = vmatprep.subr.mxu0 0.0
    %1054 = vmatpush1.msra.mxu0 0.0
    %1055 = vmatprep.mubr.f32.mxu0 0.0
    %1056 = vmatmul.mubr.f32.gmra.mrb[0].mxu0 %v986
    %v1057 = vpop.f32.mrb[0].mxu0
    %v1058 = vadd.f32 %v982, %v1057
    %v1059 = vpop.f32.mrb[0].mxu0
    %1060 = vmatprep.mubr.f32.mxu0 0.0
    %1061 = vmatmul.mubr.f32.gmra.mrb[0].mxu0 %v989
    %v1062 = vpop.f32.mrb[0].mxu0
    %v1063 = vadd.f32 %v982, %v1062
    %v1064 = vpop.f32.mrb[0].mxu0
    %1065 = vdwg.mxu0
    %v1066 = vld [vmem:[#allocation8] sm:$0xff]
    %v1067 = vld [vmem:[#allocation8 + $0x8] sm:$0xff]
    %v1068 = vld [vmem:[#allocation8 + $0x10] sm:$0xff]
    %v1069 = vld [vmem:[#allocation8 + $0x18] sm:$0xff]
    %v1070 = vld [vmem:[%s6] sm:$0x1]
    %v1072 = vlaneseq
    %v1073 = vshrl.u32 %v1072, 7
    %v1074 = vsub.s32 0, %v1073
    %v1075 = vrot.slane %v1070, %v1074
    %v1078 = vsel %vm984, %v971, 0
    %v1081 = vsel %vm984, %v972, 0
    %1083 = vmatprep.subr.mxu0 0.0
    %1084 = vmatpush1.msra.mxu0 %v1066
    %1085 = vmatprep.subr.mxu0 0.0
    %1086 = vmatpush1.msra.mxu0 %v1067
    %1087 = vmatprep.subr.mxu0 0.0
    %1088 = vmatpush1.msra.mxu0 %v1068
    %1089 = vmatprep.subr.mxu0 0.0
    %1090 = vmatpush1.msra.mxu0 %v1069
    %1091 = vmatprep.subr.mxu0 0.0
    %1092 = vmatpush1.msra.mxu0 0.0
    %1093 = vmatprep.subr.mxu0 0.0
    %1094 = vmatpush1.msra.mxu0 0.0
    %1095 = vmatprep.subr.mxu0 0.0
    %1096 = vmatpush1.msra.mxu0 0.0
    %1097 = vmatprep.subr.mxu0 0.0
    %1098 = vmatpush1.msra.mxu0 0.0
    %1099 = vmatprep.subr.mxu0 0.0
    %1100 = vmatpush1.msra.mxu0 0.0
    %1101 = vmatprep.subr.mxu0 0.0
    %1102 = vmatpush1.msra.mxu0 0.0
    %1103 = vmatprep.subr.mxu0 0.0
    %1104 = vmatpush1.msra.mxu0 0.0
    %1105 = vmatprep.subr.mxu0 0.0
    %1106 = vmatpush1.msra.mxu0 0.0
    %1107 = vmatprep.subr.mxu0 0.0
    %1108 = vmatpush1.msra.mxu0 0.0
    %1109 = vmatprep.subr.mxu0 0.0
    %1110 = vmatpush1.msra.mxu0 0.0
    %1111 = vmatprep.subr.mxu0 0.0
    %1112 = vmatpush1.msra.mxu0 0.0
    %1113 = vmatprep.subr.mxu0 0.0
    %1114 = vmatpush1.msra.mxu0 0.0
    %1115 = vmatprep.subr.mxu0 0.0
    %1116 = vmatpush1.msra.mxu0 0.0
    %1117 = vmatprep.subr.mxu0 0.0
    %1118 = vmatpush1.msra.mxu0 0.0
    %1119 = vmatprep.subr.mxu0 0.0
    %1120 = vmatpush1.msra.mxu0 0.0
    %1121 = vmatprep.subr.mxu0 0.0
    %1122 = vmatpush1.msra.mxu0 0.0
    %1123 = vmatprep.subr.mxu0 0.0
    %1124 = vmatpush1.msra.mxu0 0.0
    %1125 = vmatprep.subr.mxu0 0.0
    %1126 = vmatpush1.msra.mxu0 0.0
    %1127 = vmatprep.subr.mxu0 0.0
    %1128 = vmatpush1.msra.mxu0 0.0
    %1129 = vmatprep.subr.mxu0 0.0
    %1130 = vmatpush1.msra.mxu0 0.0
    %1131 = vmatprep.subr.mxu0 0.0
    %1132 = vmatpush1.msra.mxu0 0.0
    %1133 = vmatprep.subr.mxu0 0.0
    %1134 = vmatpush1.msra.mxu0 0.0
    %1135 = vmatprep.subr.mxu0 0.0
    %1136 = vmatpush1.msra.mxu0 0.0
    %1137 = vmatprep.subr.mxu0 0.0
    %1138 = vmatpush1.msra.mxu0 0.0
    %1139 = vmatprep.subr.mxu0 0.0
    %1140 = vmatpush1.msra.mxu0 0.0
    %1141 = vmatprep.subr.mxu0 0.0
    %1142 = vmatpush1.msra.mxu0 0.0
    %1143 = vmatprep.subr.mxu0 0.0
    %1144 = vmatpush1.msra.mxu0 0.0
    %1145 = vmatprep.subr.mxu0 0.0
    %1146 = vmatpush1.msra.mxu0 0.0
    %1147 = vmatprep.mubr.f32.mxu0 0.0
    %1148 = vmatmul.mubr.f32.gmra.mrb[0].mxu0 %v1078
    %v1149 = vpop.f32.mrb[0].mxu0
    %v1150 = vadd.f32 %v1075, %v1149
    %v1151 = vpop.f32.mrb[0].mxu0
    %1152 = vmatprep.mubr.f32.mxu0 0.0
    %1153 = vmatmul.mubr.f32.gmra.mrb[0].mxu0 %v1081
    %v1154 = vpop.f32.mrb[0].mxu0
    %v1155 = vadd.f32 %v1075, %v1154
    %v1156 = vpop.f32.mrb[0].mxu0
    %1157 = vdwg.mxu0
    %v1158 = vld [vmem:[#allocation10] sm:$0xff]
    %v1159 = vld [vmem:[#allocation10 + $0x8] sm:$0xff]
    %v1160 = vld [vmem:[#allocation10 + $0x10] sm:$0xff]
    %v1161 = vld [vmem:[#allocation10 + $0x18] sm:$0xff]
    %v1162 = vmul.f32 %v1058, 0.35355338
    %v1163 = vmul.f32 %v1063, 0.35355338
    %vm1164 = vcmask 64512
    %v1166 = vsel %vm1164, %v1162, 0
    %v1169 = vsel %vm1164, %v1150, 0
    %1171 = vmatprep.subr.mxu0 0.0
    %1172 = vmatpush1.xpose.msra.mxu0 %v1169
    %1173 = vmatprep.subr.mxu0 0.0
    %1174 = vmatpush1.xpose.msra.mxu0 0.0
    %1175 = vmatprep.subr.mxu0 0.0
    %1176 = vmatpush1.xpose.msra.mxu0 0.0
    %1177 = vmatprep.subr.mxu0 0.0
    %1178 = vmatpush1.xpose.msra.mxu0 0.0
    %1179 = vmatprep.subr.mxu0 0.0
    %1180 = vmatpush1.xpose.msra.mxu0 0.0
    %1181 = vmatprep.subr.mxu0 0.0
    %1182 = vmatpush1.xpose.msra.mxu0 0.0
    %1183 = vmatprep.subr.mxu0 0.0
    %1184 = vmatpush1.xpose.msra.mxu0 0.0
    %1185 = vmatprep.subr.mxu0 0.0
    %1186 = vmatpush1.xpose.msra.mxu0 0.0
    %1187 = vmatprep.subr.mxu0 0.0
    %1188 = vmatpush1.xpose.msra.mxu0 0.0
    %1189 = vmatprep.subr.mxu0 0.0
    %1190 = vmatpush1.xpose.msra.mxu0 0.0
    %1191 = vmatprep.subr.mxu0 0.0
    %1192 = vmatpush1.xpose.msra.mxu0 0.0
    %1193 = vmatprep.subr.mxu0 0.0
    %1194 = vmatpush1.xpose.msra.mxu0 0.0
    %1195 = vmatprep.subr.mxu0 0.0
    %1196 = vmatpush1.xpose.msra.mxu0 0.0
    %1197 = vmatprep.subr.mxu0 0.0
    %1198 = vmatpush1.xpose.msra.mxu0 0.0
    %1199 = vmatprep.subr.mxu0 0.0
    %1200 = vmatpush1.xpose.msra.mxu0 0.0
    %1201 = vmatprep.subr.mxu0 0.0
    %1202 = vmatpush1.xpose.msra.mxu0 0.0
    %1203 = vmatprep.subr.mxu0 0.0
    %1204 = vmatpush1.xpose.msra.mxu0 0.0
    %1205 = vmatprep.subr.mxu0 0.0
    %1206 = vmatpush1.xpose.msra.mxu0 0.0
    %1207 = vmatprep.subr.mxu0 0.0
    %1208 = vmatpush1.xpose.msra.mxu0 0.0
    %1209 = vmatprep.subr.mxu0 0.0
    %1210 = vmatpush1.xpose.msra.mxu0 0.0
    %1211 = vmatprep.subr.mxu0 0.0
    %1212 = vmatpush1.xpose.msra.mxu0 0.0
    %1213 = vmatprep.subr.mxu0 0.0
    %1214 = vmatpush1.xpose.msra.mxu0 0.0
    %1215 = vmatprep.subr.mxu0 0.0
    %1216 = vmatpush1.xpose.msra.mxu0 0.0
    %1217 = vmatprep.subr.mxu0 0.0
    %1218 = vmatpush1.xpose.msra.mxu0 0.0
    %1219 = vmatprep.subr.mxu0 0.0
    %1220 = vmatpush1.xpose.msra.mxu0 0.0
    %1221 = vmatprep.subr.mxu0 0.0
    %1222 = vmatpush1.xpose.msra.mxu0 0.0
    %1223 = vmatprep.subr.mxu0 0.0
    %1224 = vmatpush1.xpose.msra.mxu0 0.0
    %1225 = vmatprep.subr.mxu0 0.0
    %1226 = vmatpush1.xpose.msra.mxu0 0.0
    %1227 = vmatprep.subr.mxu0 0.0
    %1228 = vmatpush1.xpose.msra.mxu0 0.0
    %1229 = vmatprep.subr.mxu0 0.0
    %1230 = vmatpush1.xpose.msra.mxu0 0.0
    %1231 = vmatprep.subr.mxu0 0.0
    %1232 = vmatpush1.xpose.msra.mxu0 0.0
    %1233 = vmatprep.subr.mxu0 0.0
    %1234 = vmatpush1.xpose.msra.mxu0 0.0
    %1235 = vmatprep.mubr.f32.mxu0 0.0
    %1236 = vmatmul.mubr.f32.gmra.mrb[0].mxu0 %v1166
    %v1237 = vpop.f32.mrb[0].mxu0
    %v1238 = vadd.f32 0.0, %v1237
    %v1239 = vpop.f32.mrb[0].mxu0
    %1240 = vdwg.mxu0
    %v1242 = vsel %vm1164, %v1163, 0
    %v1245 = vsel %vm1164, %v1155, 0
    %1247 = vmatprep.subr.mxu0 0.0
    %1248 = vmatpush1.xpose.msra.mxu0 %v1245
    %1249 = vmatprep.subr.mxu0 0.0
    %1250 = vmatpush1.xpose.msra.mxu0 0.0
    %1251 = vmatprep.subr.mxu0 0.0
    %1252 = vmatpush1.xpose.msra.mxu0 0.0
    %1253 = vmatprep.subr.mxu0 0.0
    %1254 = vmatpush1.xpose.msra.mxu0 0.0
    %1255 = vmatprep.subr.mxu0 0.0
    %1256 = vmatpush1.xpose.msra.mxu0 0.0
    %1257 = vmatprep.subr.mxu0 0.0
    %1258 = vmatpush1.xpose.msra.mxu0 0.0
    %1259 = vmatprep.subr.mxu0 0.0
    %1260 = vmatpush1.xpose.msra.mxu0 0.0
    %1261 = vmatprep.subr.mxu0 0.0
    %1262 = vmatpush1.xpose.msra.mxu0 0.0
    %1263 = vmatprep.subr.mxu0 0.0
    %1264 = vmatpush1.xpose.msra.mxu0 0.0
    %1265 = vmatprep.subr.mxu0 0.0
    %1266 = vmatpush1.xpose.msra.mxu0 0.0
    %1267 = vmatprep.subr.mxu0 0.0
    %1268 = vmatpush1.xpose.msra.mxu0 0.0
    %1269 = vmatprep.subr.mxu0 0.0
    %1270 = vmatpush1.xpose.msra.mxu0 0.0
    %1271 = vmatprep.subr.mxu0 0.0
    %1272 = vmatpush1.xpose.msra.mxu0 0.0
    %1273 = vmatprep.subr.mxu0 0.0
    %1274 = vmatpush1.xpose.msra.mxu0 0.0
    %1275 = vmatprep.subr.mxu0 0.0
    %1276 = vmatpush1.xpose.msra.mxu0 0.0
    %1277 = vmatprep.subr.mxu0 0.0
    %1278 = vmatpush1.xpose.msra.mxu0 0.0
    %1279 = vmatprep.subr.mxu0 0.0
    %1280 = vmatpush1.xpose.msra.mxu0 0.0
    %1281 = vmatprep.subr.mxu0 0.0
    %1282 = vmatpush1.xpose.msra.mxu0 0.0
    %1283 = vmatprep.subr.mxu0 0.0
    %1284 = vmatpush1.xpose.msra.mxu0 0.0
    %1285 = vmatprep.subr.mxu0 0.0
    %1286 = vmatpush1.xpose.msra.mxu0 0.0
    %1287 = vmatprep.subr.mxu0 0.0
    %1288 = vmatpush1.xpose.msra.mxu0 0.0
    %1289 = vmatprep.subr.mxu0 0.0
    %1290 = vmatpush1.xpose.msra.mxu0 0.0
    %1291 = vmatprep.subr.mxu0 0.0
    %1292 = vmatpush1.xpose.msra.mxu0 0.0
    %1293 = vmatprep.subr.mxu0 0.0
    %1294 = vmatpush1.xpose.msra.mxu0 0.0
    %1295 = vmatprep.subr.mxu0 0.0
    %1296 = vmatpush1.xpose.msra.mxu0 0.0
    %1297 = vmatprep.subr.mxu0 0.0
    %1298 = vmatpush1.xpose.msra.mxu0 0.0
    %1299 = vmatprep.subr.mxu0 0.0
    %1300 = vmatpush1.xpose.msra.mxu0 0.0
    %1301 = vmatprep.subr.mxu0 0.0
    %1302 = vmatpush1.xpose.msra.mxu0 0.0
    %1303 = vmatprep.subr.mxu0 0.0
    %1304 = vmatpush1.xpose.msra.mxu0 0.0
    %1305 = vmatprep.subr.mxu0 0.0
    %1306 = vmatpush1.xpose.msra.mxu0 0.0
    %1307 = vmatprep.subr.mxu0 0.0
    %1308 = vmatpush1.xpose.msra.mxu0 0.0
    %1309 = vmatprep.subr.mxu0 0.0
    %1310 = vmatpush1.xpose.msra.mxu0 0.0
    %1311 = vmatprep.mubr.f32.mxu0 0.0
    %1312 = vmatmul.mubr.f32.gmra.mrb[0].mxu0 %v1242
    %v1313 = vpop.f32.mrb[0].mxu0
    %v1314 = vadd.f32 0.0, %v1313
    %v1315 = vpop.f32.mrb[0].mxu0
    %1316 = vdwg.mxu0
    %v1317 = vsel %vm1164, %v1238, -inf
    %1318 = vmax.xlane.f32.xlu0 %v1317
    %v1319 = vpop.xlane.xlu0 %1318
    %v1320 = vsel %vm1164, %v1314, -inf
    %1321 = vmax.xlane.f32.xlu0 %v1320
    %v1322 = vpop.xlane.xlu0 %1321
    %v1323 = vsub.f32 %v1238, %v1319
    %v1324 = vsub.f32 %v1314, %v1322
    %v1325 = vmul.f32 %v1323, 1.442695
    %v1326 = vpow.pop %v1325
    %v1327 = vmul.f32 %v1324, 1.442695
    %v1328 = vpow.pop %v1327
    %v1329 = vsel %vm1164, %v1326, 0.0
    %1330 = vadd.xlane.f32.xlu0 %v1329
    %v1331 = vpop.xlane.xlu0 %1330
    %v1332 = vsel %vm1164, %v1328, 0.0
    %1333 = vadd.xlane.f32.xlu0 %v1332
    %v1334 = vpop.xlane.xlu0 %1333
    %v1335 = vrcp.pop %v1331
    %v1336 = vrcp.pop %v1334
    %v1337 = vmul.f32 %v1326, %v1335
    %v1338 = vmul.f32 %v1328, %v1336
    %1339 = vrot.lane.b32.xlu0 %v1150, 96
    %v1340 = vpop.permute.xlu0 %1339
    %v1343 = vsel %vm1164, %v1337, 0
    %1345 = vmatprep.subr.mxu0 0.0
    %1346 = vmatpush1.msra.mxu0 %v1340
    %1347 = vmatprep.subr.mxu0 0.0
    %1348 = vmatpush1.msra.mxu0 0.0
    %1349 = vmatprep.subr.mxu0 0.0
    %1350 = vmatpush1.msra.mxu0 0.0
    %1351 = vmatprep.subr.mxu0 0.0
    %1352 = vmatpush1.msra.mxu0 0.0
    %1353 = vmatprep.subr.mxu0 0.0
    %1354 = vmatpush1.msra.mxu0 0.0
    %1355 = vmatprep.subr.mxu0 0.0
    %1356 = vmatpush1.msra.mxu0 0.0
    %1357 = vmatprep.subr.mxu0 0.0
    %1358 = vmatpush1.msra.mxu0 0.0
    %1359 = vmatprep.subr.mxu0 0.0
    %1360 = vmatpush1.msra.mxu0 0.0
    %1361 = vmatprep.subr.mxu0 0.0
    %1362 = vmatpush1.msra.mxu0 0.0
    %1363 = vmatprep.subr.mxu0 0.0
    %1364 = vmatpush1.msra.mxu0 0.0
    %1365 = vmatprep.subr.mxu0 0.0
    %1366 = vmatpush1.msra.mxu0 0.0
    %1367 = vmatprep.subr.mxu0 0.0
    %1368 = vmatpush1.msra.mxu0 0.0
    %1369 = vmatprep.subr.mxu0 0.0
    %1370 = vmatpush1.msra.mxu0 0.0
    %1371 = vmatprep.subr.mxu0 0.0
    %1372 = vmatpush1.msra.mxu0 0.0
    %1373 = vmatprep.subr.mxu0 0.0
    %1374 = vmatpush1.msra.mxu0 0.0
    %1375 = vmatprep.subr.mxu0 0.0
    %1376 = vmatpush1.msra.mxu0 0.0
    %1377 = vmatprep.subr.mxu0 0.0
    %1378 = vmatpush1.msra.mxu0 0.0
    %1379 = vmatprep.subr.mxu0 0.0
    %1380 = vmatpush1.msra.mxu0 0.0
    %1381 = vmatprep.subr.mxu0 0.0
    %1382 = vmatpush1.msra.mxu0 0.0
    %1383 = vmatprep.subr.mxu0 0.0
    %1384 = vmatpush1.msra.mxu0 0.0
    %1385 = vmatprep.subr.mxu0 0.0
    %1386 = vmatpush1.msra.mxu0 0.0
    %1387 = vmatprep.subr.mxu0 0.0
    %1388 = vmatpush1.msra.mxu0 0.0
    %1389 = vmatprep.subr.mxu0 0.0
    %1390 = vmatpush1.msra.mxu0 0.0
    %1391 = vmatprep.subr.mxu0 0.0
    %1392 = vmatpush1.msra.mxu0 0.0
    %1393 = vmatprep.subr.mxu0 0.0
    %1394 = vmatpush1.msra.mxu0 0.0
    %1395 = vmatprep.subr.mxu0 0.0
    %1396 = vmatpush1.msra.mxu0 0.0
    %1397 = vmatprep.subr.mxu0 0.0
    %1398 = vmatpush1.msra.mxu0 0.0
    %1399 = vmatprep.subr.mxu0 0.0
    %1400 = vmatpush1.msra.mxu0 0.0
    %1401 = vmatprep.subr.mxu0 0.0
    %1402 = vmatpush1.msra.mxu0 0.0
    %1403 = vmatprep.subr.mxu0 0.0
    %1404 = vmatpush1.msra.mxu0 0.0
    %1405 = vmatprep.subr.mxu0 0.0
    %1406 = vmatpush1.msra.mxu0 0.0
    %1407 = vmatprep.subr.mxu0 0.0
    %1408 = vmatpush1.msra.mxu0 0.0
    %1409 = vmatprep.mubr.f32.mxu0 0.0
    %1410 = vmatmul.mubr.f32.gmra.mrb[0].mxu0 %v1343
    %v1411 = vpop.f32.mrb[0].mxu0
    %v1412 = vadd.f32 0.0, %v1411
    %v1413 = vpop.f32.mrb[0].mxu0
    %1414 = vdwg.mxu0
    %1415 = vrot.lane.b32.xlu0 %v1155, 96
    %v1416 = vpop.permute.xlu0 %1415
    %v1419 = vsel %vm1164, %v1338, 0
    %1421 = vmatprep.subr.mxu0 0.0
    %1422 = vmatpush1.msra.mxu0 %v1416
    %1423 = vmatprep.subr.mxu0 0.0
    %1424 = vmatpush1.msra.mxu0 0.0
    %1425 = vmatprep.subr.mxu0 0.0
    %1426 = vmatpush1.msra.mxu0 0.0
    %1427 = vmatprep.subr.mxu0 0.0
    %1428 = vmatpush1.msra.mxu0 0.0
    %1429 = vmatprep.subr.mxu0 0.0
    %1430 = vmatpush1.msra.mxu0 0.0
    %1431 = vmatprep.subr.mxu0 0.0
    %1432 = vmatpush1.msra.mxu0 0.0
    %1433 = vmatprep.subr.mxu0 0.0
    %1434 = vmatpush1.msra.mxu0 0.0
    %1435 = vmatprep.subr.mxu0 0.0
    %1436 = vmatpush1.msra.mxu0 0.0
    %1437 = vmatprep.subr.mxu0 0.0
    %1438 = vmatpush1.msra.mxu0 0.0
    %1439 = vmatprep.subr.mxu0 0.0
    %1440 = vmatpush1.msra.mxu0 0.0
    %1441 = vmatprep.subr.mxu0 0.0
    %1442 = vmatpush1.msra.mxu0 0.0
    %1443 = vmatprep.subr.mxu0 0.0
    %1444 = vmatpush1.msra.mxu0 0.0
    %1445 = vmatprep.subr.mxu0 0.0
    %1446 = vmatpush1.msra.mxu0 0.0
    %1447 = vmatprep.subr.mxu0 0.0
    %1448 = vmatpush1.msra.mxu0 0.0
    %1449 = vmatprep.subr.mxu0 0.0
    %1450 = vmatpush1.msra.mxu0 0.0
    %1451 = vmatprep.subr.mxu0 0.0
    %1452 = vmatpush1.msra.mxu0 0.0
    %1453 = vmatprep.subr.mxu0 0.0
    %1454 = vmatpush1.msra.mxu0 0.0
    %1455 = vmatprep.subr.mxu0 0.0
    %1456 = vmatpush1.msra.mxu0 0.0
    %1457 = vmatprep.subr.mxu0 0.0
    %1458 = vmatpush1.msra.mxu0 0.0
    %1459 = vmatprep.subr.mxu0 0.0
    %1460 = vmatpush1.msra.mxu0 0.0
    %1461 = vmatprep.subr.mxu0 0.0
    %1462 = vmatpush1.msra.mxu0 0.0
    %1463 = vmatprep.subr.mxu0 0.0
    %1464 = vmatpush1.msra.mxu0 0.0
    %1465 = vmatprep.subr.mxu0 0.0
    %1466 = vmatpush1.msra.mxu0 0.0
    %1467 = vmatprep.subr.mxu0 0.0
    %1468 = vmatpush1.msra.mxu0 0.0
    %1469 = vmatprep.subr.mxu0 0.0
    %1470 = vmatpush1.msra.mxu0 0.0
    %1471 = vmatprep.subr.mxu0 0.0
    %1472 = vmatpush1.msra.mxu0 0.0
    %1473 = vmatprep.subr.mxu0 0.0
    %1474 = vmatpush1.msra.mxu0 0.0
    %1475 = vmatprep.subr.mxu0 0.0
    %1476 = vmatpush1.msra.mxu0 0.0
    %1477 = vmatprep.subr.mxu0 0.0
    %1478 = vmatpush1.msra.mxu0 0.0
    %1479 = vmatprep.subr.mxu0 0.0
    %1480 = vmatpush1.msra.mxu0 0.0
    %1481 = vmatprep.subr.mxu0 0.0
    %1482 = vmatpush1.msra.mxu0 0.0
    %1483 = vmatprep.subr.mxu0 0.0
    %1484 = vmatpush1.msra.mxu0 0.0
    %1485 = vmatprep.mubr.f32.mxu0 0.0
    %1486 = vmatmul.mubr.f32.gmra.mrb[0].mxu0 %v1419
    %v1487 = vpop.f32.mrb[0].mxu0
    %v1488 = vadd.f32 0.0, %v1487
    %v1489 = vpop.f32.mrb[0].mxu0
    %1490 = vdwg.mxu0
    %1491 = vrot.lane.b32.xlu0 %v1162, 120
    %v1492 = vpop.permute.xlu0 %1491
    %1493 = vrot.lane.b32.xlu0 %v1150, 120
    %v1494 = vpop.permute.xlu0 %1493
    %v1495 = vsel %vm1164, %v1492, 0
    %v1497 = vsel %vm1164, %v1494, 0
    %1499 = vmatprep.subr.mxu0 0.0
    %1500 = vmatpush1.xpose.msra.mxu0 %v1497
    %1501 = vmatprep.subr.mxu0 0.0
    %1502 = vmatpush1.xpose.msra.mxu0 0.0
    %1503 = vmatprep.subr.mxu0 0.0
    %1504 = vmatpush1.xpose.msra.mxu0 0.0
    %1505 = vmatprep.subr.mxu0 0.0
    %1506 = vmatpush1.xpose.msra.mxu0 0.0
    %1507 = vmatprep.subr.mxu0 0.0
    %1508 = vmatpush1.xpose.msra.mxu0 0.0
    %1509 = vmatprep.subr.mxu0 0.0
    %1510 = vmatpush1.xpose.msra.mxu0 0.0
    %1511 = vmatprep.subr.mxu0 0.0
    %1512 = vmatpush1.xpose.msra.mxu0 0.0
    %1513 = vmatprep.subr.mxu0 0.0
    %1514 = vmatpush1.xpose.msra.mxu0 0.0
    %1515 = vmatprep.subr.mxu0 0.0
    %1516 = vmatpush1.xpose.msra.mxu0 0.0
    %1517 = vmatprep.subr.mxu0 0.0
    %1518 = vmatpush1.xpose.msra.mxu0 0.0
    %1519 = vmatprep.subr.mxu0 0.0
    %1520 = vmatpush1.xpose.msra.mxu0 0.0
    %1521 = vmatprep.subr.mxu0 0.0
    %1522 = vmatpush1.xpose.msra.mxu0 0.0
    %1523 = vmatprep.subr.mxu0 0.0
    %1524 = vmatpush1.xpose.msra.mxu0 0.0
    %1525 = vmatprep.subr.mxu0 0.0
    %1526 = vmatpush1.xpose.msra.mxu0 0.0
    %1527 = vmatprep.subr.mxu0 0.0
    %1528 = vmatpush1.xpose.msra.mxu0 0.0
    %1529 = vmatprep.subr.mxu0 0.0
    %1530 = vmatpush1.xpose.msra.mxu0 0.0
    %1531 = vmatprep.subr.mxu0 0.0
    %1532 = vmatpush1.xpose.msra.mxu0 0.0
    %1533 = vmatprep.subr.mxu0 0.0
    %1534 = vmatpush1.xpose.msra.mxu0 0.0
    %1535 = vmatprep.subr.mxu0 0.0
    %1536 = vmatpush1.xpose.msra.mxu0 0.0
    %1537 = vmatprep.subr.mxu0 0.0
    %1538 = vmatpush1.xpose.msra.mxu0 0.0
    %1539 = vmatprep.subr.mxu0 0.0
    %1540 = vmatpush1.xpose.msra.mxu0 0.0
    %1541 = vmatprep.subr.mxu0 0.0
    %1542 = vmatpush1.xpose.msra.mxu0 0.0
    %1543 = vmatprep.subr.mxu0 0.0
    %1544 = vmatpush1.xpose.msra.mxu0 0.0
    %1545 = vmatprep.subr.mxu0 0.0
    %1546 = vmatpush1.xpose.msra.mxu0 0.0
    %1547 = vmatprep.subr.mxu0 0.0
    %1548 = vmatpush1.xpose.msra.mxu0 0.0
    %1549 = vmatprep.subr.mxu0 0.0
    %1550 = vmatpush1.xpose.msra.mxu0 0.0
    %1551 = vmatprep.subr.mxu0 0.0
    %1552 = vmatpush1.xpose.msra.mxu0 0.0
    %1553 = vmatprep.subr.mxu0 0.0
    %1554 = vmatpush1.xpose.msra.mxu0 0.0
    %1555 = vmatprep.subr.mxu0 0.0
    %1556 = vmatpush1.xpose.msra.mxu0 0.0
    %1557 = vmatprep.subr.mxu0 0.0
    %1558 = vmatpush1.xpose.msra.mxu0 0.0
    %1559 = vmatprep.subr.mxu0 0.0
    %1560 = vmatpush1.xpose.msra.mxu0 0.0
    %1561 = vmatprep.subr.mxu0 0.0
    %1562 = vmatpush1.xpose.msra.mxu0 0.0
    %1563 = vmatprep.mubr.f32.mxu0 0.0
    %1564 = vmatmul.mubr.f32.gmra.mrb[0].mxu0 %v1495
    %v1565 = vpop.f32.mrb[0].mxu0
    %v1566 = vadd.f32 0.0, %v1565
    %v1567 = vpop.f32.mrb[0].mxu0
    %1568 = vdwg.mxu0
    %1569 = vrot.lane.b32.xlu0 %v1163, 120
    %v1570 = vpop.permute.xlu0 %1569
    %1571 = vrot.lane.b32.xlu0 %v1155, 120
    %v1572 = vpop.permute.xlu0 %1571
    %v1573 = vsel %vm1164, %v1570, 0
    %v1575 = vsel %vm1164, %v1572, 0
    %1577 = vmatprep.subr.mxu0 0.0
    %1578 = vmatpush1.xpose.msra.mxu0 %v1575
    %1579 = vmatprep.subr.mxu0 0.0
    %1580 = vmatpush1.xpose.msra.mxu0 0.0
    %1581 = vmatprep.subr.mxu0 0.0
    %1582 = vmatpush1.xpose.msra.mxu0 0.0
    %1583 = vmatprep.subr.mxu0 0.0
    %1584 = vmatpush1.xpose.msra.mxu0 0.0
    %1585 = vmatprep.subr.mxu0 0.0
    %1586 = vmatpush1.xpose.msra.mxu0 0.0
    %1587 = vmatprep.subr.mxu0 0.0
    %1588 = vmatpush1.xpose.msra.mxu0 0.0
    %1589 = vmatprep.subr.mxu0 0.0
    %1590 = vmatpush1.xpose.msra.mxu0 0.0
    %1591 = vmatprep.subr.mxu0 0.0
    %1592 = vmatpush1.xpose.msra.mxu0 0.0
    %1593 = vmatprep.subr.mxu0 0.0
    %1594 = vmatpush1.xpose.msra.mxu0 0.0
    %1595 = vmatprep.subr.mxu0 0.0
    %1596 = vmatpush1.xpose.msra.mxu0 0.0
    %1597 = vmatprep.subr.mxu0 0.0
    %1598 = vmatpush1.xpose.msra.mxu0 0.0
    %1599 = vmatprep.subr.mxu0 0.0
    %1600 = vmatpush1.xpose.msra.mxu0 0.0
    %1601 = vmatprep.subr.mxu0 0.0
    %1602 = vmatpush1.xpose.msra.mxu0 0.0
    %1603 = vmatprep.subr.mxu0 0.0
    %1604 = vmatpush1.xpose.msra.mxu0 0.0
    %1605 = vmatprep.subr.mxu0 0.0
    %1606 = vmatpush1.xpose.msra.mxu0 0.0
    %1607 = vmatprep.subr.mxu0 0.0
    %1608 = vmatpush1.xpose.msra.mxu0 0.0
    %1609 = vmatprep.subr.mxu0 0.0
    %1610 = vmatpush1.xpose.msra.mxu0 0.0
    %1611 = vmatprep.subr.mxu0 0.0
    %1612 = vmatpush1.xpose.msra.mxu0 0.0
    %1613 = vmatprep.subr.mxu0 0.0
    %1614 = vmatpush1.xpose.msra.mxu0 0.0
    %1615 = vmatprep.subr.mxu0 0.0
    %1616 = vmatpush1.xpose.msra.mxu0 0.0
    %1617 = vmatprep.subr.mxu0 0.0
    %1618 = vmatpush1.xpose.msra.mxu0 0.0
    %1619 = vmatprep.subr.mxu0 0.0
    %1620 = vmatpush1.xpose.msra.mxu0 0.0
    %1621 = vmatprep.subr.mxu0 0.0
    %1622 = vmatpush1.xpose.msra.mxu0 0.0
    %1623 = vmatprep.subr.mxu0 0.0
    %1624 = vmatpush1.xpose.msra.mxu0 0.0
    %1625 = vmatprep.subr.mxu0 0.0
    %1626 = vmatpush1.xpose.msra.mxu0 0.0
    %1627 = vmatprep.subr.mxu0 0.0
    %1628 = vmatpush1.xpose.msra.mxu0 0.0
    %1629 = vmatprep.subr.mxu0 0.0
    %1630 = vmatpush1.xpose.msra.mxu0 0.0
    %1631 = vmatprep.subr.mxu0 0.0
    %1632 = vmatpush1.xpose.msra.mxu0 0.0
    %1633 = vmatprep.subr.mxu0 0.0
    %1634 = vmatpush1.xpose.msra.mxu0 0.0
    %1635 = vmatprep.subr.mxu0 0.0
    %1636 = vmatpush1.xpose.msra.mxu0 0.0
    %1637 = vmatprep.subr.mxu0 0.0
    %1638 = vmatpush1.xpose.msra.mxu0 0.0
    %1639 = vmatprep.subr.mxu0 0.0
    %1640 = vmatpush1.xpose.msra.mxu0 0.0
    %1641 = vmatprep.mubr.f32.mxu0 0.0
    %1642 = vmatmul.mubr.f32.gmra.mrb[0].mxu0 %v1573
    %v1643 = vpop.f32.mrb[0].mxu0
    %v1644 = vadd.f32 0.0, %v1643
    %v1645 = vpop.f32.mrb[0].mxu0
    %1646 = vdwg.mxu0
    %v1647 = vsel %vm1164, %v1566, -inf
    %1648 = vmax.xlane.f32.xlu0 %v1647
    %v1649 = vpop.xlane.xlu0 %1648
    %v1650 = vsel %vm1164, %v1644, -inf
    %1651 = vmax.xlane.f32.xlu0 %v1650
    %v1652 = vpop.xlane.xlu0 %1651
    %v1653 = vsub.f32 %v1566, %v1649
    %v1654 = vsub.f32 %v1644, %v1652
    %v1655 = vmul.f32 %v1653, 1.442695
    %v1656 = vpow.pop %v1655
    %v1657 = vmul.f32 %v1654, 1.442695
    %v1658 = vpow.pop %v1657
    %v1659 = vsel %vm1164, %v1656, 0.0
    %1660 = vadd.xlane.f32.xlu0 %v1659
    %v1661 = vpop.xlane.xlu0 %1660
    %v1662 = vsel %vm1164, %v1658, 0.0
    %1663 = vadd.xlane.f32.xlu0 %v1662
    %v1664 = vpop.xlane.xlu0 %1663
    %v1665 = vrcp.pop %v1661
    %v1666 = vrcp.pop %v1664
    %v1667 = vmul.f32 %v1656, %v1665
    %v1668 = vmul.f32 %v1658, %v1666
    %1669 = vrot.lane.b32.xlu0 %v1150, 88
    %v1670 = vpop.permute.xlu0 %1669
    %v1673 = vsel %vm1164, %v1667, 0
    %1675 = vmatprep.subr.mxu0 0.0
    %1676 = vmatpush1.msra.mxu0 %v1670
    %1677 = vmatprep.subr.mxu0 0.0
    %1678 = vmatpush1.msra.mxu0 0.0
    %1679 = vmatprep.subr.mxu0 0.0
    %1680 = vmatpush1.msra.mxu0 0.0
    %1681 = vmatprep.subr.mxu0 0.0
    %1682 = vmatpush1.msra.mxu0 0.0
    %1683 = vmatprep.subr.mxu0 0.0
    %1684 = vmatpush1.msra.mxu0 0.0
    %1685 = vmatprep.subr.mxu0 0.0
    %1686 = vmatpush1.msra.mxu0 0.0
    %1687 = vmatprep.subr.mxu0 0.0
    %1688 = vmatpush1.msra.mxu0 0.0
    %1689 = vmatprep.subr.mxu0 0.0
    %1690 = vmatpush1.msra.mxu0 0.0
    %1691 = vmatprep.subr.mxu0 0.0
    %1692 = vmatpush1.msra.mxu0 0.0
    %1693 = vmatprep.subr.mxu0 0.0
    %1694 = vmatpush1.msra.mxu0 0.0
    %1695 = vmatprep.subr.mxu0 0.0
    %1696 = vmatpush1.msra.mxu0 0.0
    %1697 = vmatprep.subr.mxu0 0.0
    %1698 = vmatpush1.msra.mxu0 0.0
    %1699 = vmatprep.subr.mxu0 0.0
    %1700 = vmatpush1.msra.mxu0 0.0
    %1701 = vmatprep.subr.mxu0 0.0
    %1702 = vmatpush1.msra.mxu0 0.0
    %1703 = vmatprep.subr.mxu0 0.0
    %1704 = vmatpush1.msra.mxu0 0.0
    %1705 = vmatprep.subr.mxu0 0.0
    %1706 = vmatpush1.msra.mxu0 0.0
    %1707 = vmatprep.subr.mxu0 0.0
    %1708 = vmatpush1.msra.mxu0 0.0
    %1709 = vmatprep.subr.mxu0 0.0
    %1710 = vmatpush1.msra.mxu0 0.0
    %1711 = vmatprep.subr.mxu0 0.0
    %1712 = vmatpush1.msra.mxu0 0.0
    %1713 = vmatprep.subr.mxu0 0.0
    %1714 = vmatpush1.msra.mxu0 0.0
    %1715 = vmatprep.subr.mxu0 0.0
    %1716 = vmatpush1.msra.mxu0 0.0
    %1717 = vmatprep.subr.mxu0 0.0
    %1718 = vmatpush1.msra.mxu0 0.0
    %1719 = vmatprep.subr.mxu0 0.0
    %1720 = vmatpush1.msra.mxu0 0.0
    %1721 = vmatprep.subr.mxu0 0.0
    %1722 = vmatpush1.msra.mxu0 0.0
    %1723 = vmatprep.subr.mxu0 0.0
    %1724 = vmatpush1.msra.mxu0 0.0
    %1725 = vmatprep.subr.mxu0 0.0
    %1726 = vmatpush1.msra.mxu0 0.0
    %1727 = vmatprep.subr.mxu0 0.0
    %1728 = vmatpush1.msra.mxu0 0.0
    %1729 = vmatprep.subr.mxu0 0.0
    %1730 = vmatpush1.msra.mxu0 0.0
    %1731 = vmatprep.subr.mxu0 0.0
    %1732 = vmatpush1.msra.mxu0 0.0
    %1733 = vmatprep.subr.mxu0 0.0
    %1734 = vmatpush1.msra.mxu0 0.0
    %1735 = vmatprep.subr.mxu0 0.0
    %1736 = vmatpush1.msra.mxu0 0.0
    %1737 = vmatprep.subr.mxu0 0.0
    %1738 = vmatpush1.msra.mxu0 0.0
    %1739 = vmatprep.mubr.f32.mxu0 0.0
    %1740 = vmatmul.mubr.f32.gmra.mrb[0].mxu0 %v1673
    %v1741 = vpop.f32.mrb[0].mxu0
    %v1742 = vadd.f32 0.0, %v1741
    %v1743 = vpop.f32.mrb[0].mxu0
    %1744 = vdwg.mxu0
    %1745 = vrot.lane.b32.xlu0 %v1155, 88
    %v1746 = vpop.permute.xlu0 %1745
    %v1749 = vsel %vm1164, %v1668, 0
    %1751 = vmatprep.subr.mxu0 0.0
    %1752 = vmatpush1.msra.mxu0 %v1746
    %1753 = vmatprep.subr.mxu0 0.0
    %1754 = vmatpush1.msra.mxu0 0.0
    %1755 = vmatprep.subr.mxu0 0.0
    %1756 = vmatpush1.msra.mxu0 0.0
    %1757 = vmatprep.subr.mxu0 0.0
    %1758 = vmatpush1.msra.mxu0 0.0
    %1759 = vmatprep.subr.mxu0 0.0
    %1760 = vmatpush1.msra.mxu0 0.0
    %1761 = vmatprep.subr.mxu0 0.0
    %1762 = vmatpush1.msra.mxu0 0.0
    %1763 = vmatprep.subr.mxu0 0.0
    %1764 = vmatpush1.msra.mxu0 0.0
    %1765 = vmatprep.subr.mxu0 0.0
    %1766 = vmatpush1.msra.mxu0 0.0
    %1767 = vmatprep.subr.mxu0 0.0
    %1768 = vmatpush1.msra.mxu0 0.0
    %1769 = vmatprep.subr.mxu0 0.0
    %1770 = vmatpush1.msra.mxu0 0.0
    %1771 = vmatprep.subr.mxu0 0.0
    %1772 = vmatpush1.msra.mxu0 0.0
    %1773 = vmatprep.subr.mxu0 0.0
    %1774 = vmatpush1.msra.mxu0 0.0
    %1775 = vmatprep.subr.mxu0 0.0
    %1776 = vmatpush1.msra.mxu0 0.0
    %1777 = vmatprep.subr.mxu0 0.0
    %1778 = vmatpush1.msra.mxu0 0.0
    %1779 = vmatprep.subr.mxu0 0.0
    %1780 = vmatpush1.msra.mxu0 0.0
    %1781 = vmatprep.subr.mxu0 0.0
    %1782 = vmatpush1.msra.mxu0 0.0
    %1783 = vmatprep.subr.mxu0 0.0
    %1784 = vmatpush1.msra.mxu0 0.0
    %1785 = vmatprep.subr.mxu0 0.0
    %1786 = vmatpush1.msra.mxu0 0.0
    %1787 = vmatprep.subr.mxu0 0.0
    %1788 = vmatpush1.msra.mxu0 0.0
    %1789 = vmatprep.subr.mxu0 0.0
    %1790 = vmatpush1.msra.mxu0 0.0
    %1791 = vmatprep.subr.mxu0 0.0
    %1792 = vmatpush1.msra.mxu0 0.0
    %1793 = vmatprep.subr.mxu0 0.0
    %1794 = vmatpush1.msra.mxu0 0.0
    %1795 = vmatprep.subr.mxu0 0.0
    %1796 = vmatpush1.msra.mxu0 0.0
    %1797 = vmatprep.subr.mxu0 0.0
    %1798 = vmatpush1.msra.mxu0 0.0
    %1799 = vmatprep.subr.mxu0 0.0
    %1800 = vmatpush1.msra.mxu0 0.0
    %1801 = vmatprep.subr.mxu0 0.0
    %1802 = vmatpush1.msra.mxu0 0.0
    %1803 = vmatprep.subr.mxu0 0.0
    %1804 = vmatpush1.msra.mxu0 0.0
    %1805 = vmatprep.subr.mxu0 0.0
    %1806 = vmatpush1.msra.mxu0 0.0
    %1807 = vmatprep.subr.mxu0 0.0
    %1808 = vmatpush1.msra.mxu0 0.0
    %1809 = vmatprep.subr.mxu0 0.0
    %1810 = vmatpush1.msra.mxu0 0.0
    %1811 = vmatprep.subr.mxu0 0.0
    %1812 = vmatpush1.msra.mxu0 0.0
    %1813 = vmatprep.subr.mxu0 0.0
    %1814 = vmatpush1.msra.mxu0 0.0
    %1815 = vmatprep.mubr.f32.mxu0 0.0
    %1816 = vmatmul.mubr.f32.gmra.mrb[0].mxu0 %v1749
    %v1817 = vpop.f32.mrb[0].mxu0
    %v1818 = vadd.f32 0.0, %v1817
    %v1819 = vpop.f32.mrb[0].mxu0
    %1820 = vdwg.mxu0
    %v1822 = vsel %vm1164, %v1742, 0
    %v1825 = vsel %vm1164, %v1818, 0
    %1827 = vmatprep.subr.mxu0 0.0
    %1828 = vmatpush1.msra.mxu0 %v1159
    %1829 = vmatprep.subr.mxu0 0.0
    %1830 = vmatpush1.msra.mxu0 0.0
    %1831 = vmatprep.subr.mxu0 0.0
    %1832 = vmatpush1.msra.mxu0 0.0
    %1833 = vmatprep.subr.mxu0 0.0
    %1834 = vmatpush1.msra.mxu0 0.0
    %1835 = vmatprep.subr.mxu0 0.0
    %1836 = vmatpush1.msra.mxu0 0.0
    %1837 = vmatprep.subr.mxu0 0.0
    %1838 = vmatpush1.msra.mxu0 0.0
    %1839 = vmatprep.subr.mxu0 0.0
    %1840 = vmatpush1.msra.mxu0 0.0
    %1841 = vmatprep.subr.mxu0 0.0
    %1842 = vmatpush1.msra.mxu0 0.0
    %1843 = vmatprep.subr.mxu0 0.0
    %1844 = vmatpush1.msra.mxu0 0.0
    %1845 = vmatprep.subr.mxu0 0.0
    %1846 = vmatpush1.msra.mxu0 0.0
    %1847 = vmatprep.subr.mxu0 0.0
    %1848 = vmatpush1.msra.mxu0 0.0
    %1849 = vmatprep.subr.mxu0 0.0
    %1850 = vmatpush1.msra.mxu0 0.0
    %1851 = vmatprep.subr.mxu0 0.0
    %1852 = vmatpush1.msra.mxu0 0.0
    %1853 = vmatprep.subr.mxu0 0.0
    %1854 = vmatpush1.msra.mxu0 0.0
    %1855 = vmatprep.subr.mxu0 0.0
    %1856 = vmatpush1.msra.mxu0 0.0
    %1857 = vmatprep.subr.mxu0 0.0
    %1858 = vmatpush1.msra.mxu0 0.0
    %1859 = vmatprep.subr.mxu0 0.0
    %1860 = vmatpush1.msra.mxu0 0.0
    %1861 = vmatprep.subr.mxu0 0.0
    %1862 = vmatpush1.msra.mxu0 0.0
    %1863 = vmatprep.subr.mxu0 0.0
    %1864 = vmatpush1.msra.mxu0 0.0
    %1865 = vmatprep.subr.mxu0 0.0
    %1866 = vmatpush1.msra.mxu0 0.0
    %1867 = vmatprep.subr.mxu0 0.0
    %1868 = vmatpush1.msra.mxu0 0.0
    %1869 = vmatprep.subr.mxu0 0.0
    %1870 = vmatpush1.msra.mxu0 0.0
    %1871 = vmatprep.subr.mxu0 0.0
    %1872 = vmatpush1.msra.mxu0 0.0
    %1873 = vmatprep.subr.mxu0 0.0
    %1874 = vmatpush1.msra.mxu0 0.0
    %1875 = vmatprep.subr.mxu0 0.0
    %1876 = vmatpush1.msra.mxu0 0.0
    %1877 = vmatprep.subr.mxu0 0.0
    %1878 = vmatpush1.msra.mxu0 0.0
    %1879 = vmatprep.subr.mxu0 0.0
    %1880 = vmatpush1.msra.mxu0 0.0
    %1881 = vmatprep.subr.mxu0 0.0
    %1882 = vmatpush1.msra.mxu0 0.0
    %1883 = vmatprep.subr.mxu0 0.0
    %1884 = vmatpush1.msra.mxu0 0.0
    %1885 = vmatprep.subr.mxu0 0.0
    %1886 = vmatpush1.msra.mxu0 0.0
    %1887 = vmatprep.subr.mxu0 0.0
    %1888 = vmatpush1.msra.mxu0 0.0
    %1889 = vmatprep.subr.mxu0 0.0
    %1890 = vmatpush1.msra.mxu0 0.0
    %1891 = vmatprep.mubr.f32.mxu0 0.0
    %1892 = vmatmul.mubr.f32.gmra.mrb[0].mxu0 %v1822
    %v1893 = vpop.f32.mrb[0].mxu0
    %v1894 = vadd.f32 0.0, %v1893
    %v1895 = vpop.f32.mrb[0].mxu0
    %1896 = vmatprep.mubr.f32.mxu0 0.0
    %1897 = vmatmul.mubr.f32.gmra.mrb[0].mxu0 %v1825
    %v1898 = vpop.f32.mrb[0].mxu0
    %v1899 = vadd.f32 0.0, %v1898
    %v1900 = vpop.f32.mrb[0].mxu0
    %1901 = vdwg.mxu0
    %v1903 = vsel %vm1164, %v1412, 0
    %v1906 = vsel %vm1164, %v1488, 0
    %1908 = vmatprep.subr.mxu0 0.0
    %1909 = vmatpush1.msra.mxu0 %v1158
    %1910 = vmatprep.subr.mxu0 0.0
    %1911 = vmatpush1.msra.mxu0 0.0
    %1912 = vmatprep.subr.mxu0 0.0
    %1913 = vmatpush1.msra.mxu0 0.0
    %1914 = vmatprep.subr.mxu0 0.0
    %1915 = vmatpush1.msra.mxu0 0.0
    %1916 = vmatprep.subr.mxu0 0.0
    %1917 = vmatpush1.msra.mxu0 0.0
    %1918 = vmatprep.subr.mxu0 0.0
    %1919 = vmatpush1.msra.mxu0 0.0
    %1920 = vmatprep.subr.mxu0 0.0
    %1921 = vmatpush1.msra.mxu0 0.0
    %1922 = vmatprep.subr.mxu0 0.0
    %1923 = vmatpush1.msra.mxu0 0.0
    %1924 = vmatprep.subr.mxu0 0.0
    %1925 = vmatpush1.msra.mxu0 0.0
    %1926 = vmatprep.subr.mxu0 0.0
    %1927 = vmatpush1.msra.mxu0 0.0
    %1928 = vmatprep.subr.mxu0 0.0
    %1929 = vmatpush1.msra.mxu0 0.0
    %1930 = vmatprep.subr.mxu0 0.0
    %1931 = vmatpush1.msra.mxu0 0.0
    %1932 = vmatprep.subr.mxu0 0.0
    %1933 = vmatpush1.msra.mxu0 0.0
    %1934 = vmatprep.subr.mxu0 0.0
    %1935 = vmatpush1.msra.mxu0 0.0
    %1936 = vmatprep.subr.mxu0 0.0
    %1937 = vmatpush1.msra.mxu0 0.0
    %1938 = vmatprep.subr.mxu0 0.0
    %1939 = vmatpush1.msra.mxu0 0.0
    %1940 = vmatprep.subr.mxu0 0.0
    %1941 = vmatpush1.msra.mxu0 0.0
    %1942 = vmatprep.subr.mxu0 0.0
    %1943 = vmatpush1.msra.mxu0 0.0
    %1944 = vmatprep.subr.mxu0 0.0
    %1945 = vmatpush1.msra.mxu0 0.0
    %1946 = vmatprep.subr.mxu0 0.0
    %1947 = vmatpush1.msra.mxu0 0.0
    %1948 = vmatprep.subr.mxu0 0.0
    %1949 = vmatpush1.msra.mxu0 0.0
    %1950 = vmatprep.subr.mxu0 0.0
    %1951 = vmatpush1.msra.mxu0 0.0
    %1952 = vmatprep.subr.mxu0 0.0
    %1953 = vmatpush1.msra.mxu0 0.0
    %1954 = vmatprep.subr.mxu0 0.0
    %1955 = vmatpush1.msra.mxu0 0.0
    %1956 = vmatprep.subr.mxu0 0.0
    %1957 = vmatpush1.msra.mxu0 0.0
    %1958 = vmatprep.subr.mxu0 0.0
    %1959 = vmatpush1.msra.mxu0 0.0
    %1960 = vmatprep.subr.mxu0 0.0
    %1961 = vmatpush1.msra.mxu0 0.0
    %1962 = vmatprep.subr.mxu0 0.0
    %1963 = vmatpush1.msra.mxu0 0.0
    %1964 = vmatprep.subr.mxu0 0.0
    %1965 = vmatpush1.msra.mxu0 0.0
    %1966 = vmatprep.subr.mxu0 0.0
    %1967 = vmatpush1.msra.mxu0 0.0
    %1968 = vmatprep.subr.mxu0 0.0
    %1969 = vmatpush1.msra.mxu0 0.0
    %1970 = vmatprep.subr.mxu0 0.0
    %1971 = vmatpush1.msra.mxu0 0.0
    %1972 = vmatprep.mubr.f32.mxu0 0.0
    %1973 = vmatmul.mubr.f32.gmra.mrb[0].mxu0 %v1903
    %v1974 = vpop.f32.mrb[0].mxu0
    %v1975 = vadd.f32 %v1894, %v1974
    %v1976 = vpop.f32.mrb[0].mxu0
    %1977 = vmatprep.mubr.f32.mxu0 0.0
    %1978 = vmatmul.mubr.f32.gmra.mrb[0].mxu0 %v1906
    %v1979 = vpop.f32.mrb[0].mxu0
    %v1980 = vadd.f32 %v1899, %v1979
    %v1981 = vpop.f32.mrb[0].mxu0
    %1982 = vdwg.mxu0
    %1983 = vrot.lane.b32.xlu0 %v1162, 112
    %v1984 = vpop.permute.xlu0 %1983
    %1985 = vrot.lane.b32.xlu0 %v1150, 112
    %v1986 = vpop.permute.xlu0 %1985
    %v1987 = vsel %vm1164, %v1984, 0
    %v1989 = vsel %vm1164, %v1986, 0
    %1991 = vmatprep.subr.mxu0 0.0
    %1992 = vmatpush1.xpose.msra.mxu0 %v1989
    %1993 = vmatprep.subr.mxu0 0.0
    %1994 = vmatpush1.xpose.msra.mxu0 0.0
    %1995 = vmatprep.subr.mxu0 0.0
    %1996 = vmatpush1.xpose.msra.mxu0 0.0
    %1997 = vmatprep.subr.mxu0 0.0
    %1998 = vmatpush1.xpose.msra.mxu0 0.0
    %1999 = vmatprep.subr.mxu0 0.0
    %2000 = vmatpush1.xpose.msra.mxu0 0.0
    %2001 = vmatprep.subr.mxu0 0.0
    %2002 = vmatpush1.xpose.msra.mxu0 0.0
    %2003 = vmatprep.subr.mxu0 0.0
    %2004 = vmatpush1.xpose.msra.mxu0 0.0
    %2005 = vmatprep.subr.mxu0 0.0
    %2006 = vmatpush1.xpose.msra.mxu0 0.0
    %2007 = vmatprep.subr.mxu0 0.0
    %2008 = vmatpush1.xpose.msra.mxu0 0.0
    %2009 = vmatprep.subr.mxu0 0.0
    %2010 = vmatpush1.xpose.msra.mxu0 0.0
    %2011 = vmatprep.subr.mxu0 0.0
    %2012 = vmatpush1.xpose.msra.mxu0 0.0
    %2013 = vmatprep.subr.mxu0 0.0
    %2014 = vmatpush1.xpose.msra.mxu0 0.0
    %2015 = vmatprep.subr.mxu0 0.0
    %2016 = vmatpush1.xpose.msra.mxu0 0.0
    %2017 = vmatprep.subr.mxu0 0.0
    %2018 = vmatpush1.xpose.msra.mxu0 0.0
    %2019 = vmatprep.subr.mxu0 0.0
    %2020 = vmatpush1.xpose.msra.mxu0 0.0
    %2021 = vmatprep.subr.mxu0 0.0
    %2022 = vmatpush1.xpose.msra.mxu0 0.0
    %2023 = vmatprep.subr.mxu0 0.0
    %2024 = vmatpush1.xpose.msra.mxu0 0.0
    %2025 = vmatprep.subr.mxu0 0.0
    %2026 = vmatpush1.xpose.msra.mxu0 0.0
    %2027 = vmatprep.subr.mxu0 0.0
    %2028 = vmatpush1.xpose.msra.mxu0 0.0
    %2029 = vmatprep.subr.mxu0 0.0
    %2030 = vmatpush1.xpose.msra.mxu0 0.0
    %2031 = vmatprep.subr.mxu0 0.0
    %2032 = vmatpush1.xpose.msra.mxu0 0.0
    %2033 = vmatprep.subr.mxu0 0.0
    %2034 = vmatpush1.xpose.msra.mxu0 0.0
    %2035 = vmatprep.subr.mxu0 0.0
    %2036 = vmatpush1.xpose.msra.mxu0 0.0
    %2037 = vmatprep.subr.mxu0 0.0
    %2038 = vmatpush1.xpose.msra.mxu0 0.0
    %2039 = vmatprep.subr.mxu0 0.0
    %2040 = vmatpush1.xpose.msra.mxu0 0.0
    %2041 = vmatprep.subr.mxu0 0.0
    %2042 = vmatpush1.xpose.msra.mxu0 0.0
    %2043 = vmatprep.subr.mxu0 0.0
    %2044 = vmatpush1.xpose.msra.mxu0 0.0
    %2045 = vmatprep.subr.mxu0 0.0
    %2046 = vmatpush1.xpose.msra.mxu0 0.0
    %2047 = vmatprep.subr.mxu0 0.0
    %2048 = vmatpush1.xpose.msra.mxu0 0.0
    %2049 = vmatprep.subr.mxu0 0.0
    %2050 = vmatpush1.xpose.msra.mxu0 0.0
    %2051 = vmatprep.subr.mxu0 0.0
    %2052 = vmatpush1.xpose.msra.mxu0 0.0
    %2053 = vmatprep.subr.mxu0 0.0
    %2054 = vmatpush1.xpose.msra.mxu0 0.0
    %2055 = vmatprep.mubr.f32.mxu0 0.0
    %2056 = vmatmul.mubr.f32.gmra.mrb[0].mxu0 %v1987
    %v2057 = vpop.f32.mrb[0].mxu0
    %v2058 = vadd.f32 0.0, %v2057
    %v2059 = vpop.f32.mrb[0].mxu0
    %2060 = vdwg.mxu0
    %2061 = vrot.lane.b32.xlu0 %v1163, 112
    %v2062 = vpop.permute.xlu0 %2061
    %2063 = vrot.lane.b32.xlu0 %v1155, 112
    %v2064 = vpop.permute.xlu0 %2063
    %v2065 = vsel %vm1164, %v2062, 0
    %v2067 = vsel %vm1164, %v2064, 0
    %2069 = vmatprep.subr.mxu0 0.0
    %2070 = vmatpush1.xpose.msra.mxu0 %v2067
    %2071 = vmatprep.subr.mxu0 0.0
    %2072 = vmatpush1.xpose.msra.mxu0 0.0
    %2073 = vmatprep.subr.mxu0 0.0
    %2074 = vmatpush1.xpose.msra.mxu0 0.0
    %2075 = vmatprep.subr.mxu0 0.0
    %2076 = vmatpush1.xpose.msra.mxu0 0.0
    %2077 = vmatprep.subr.mxu0 0.0
    %2078 = vmatpush1.xpose.msra.mxu0 0.0
    %2079 = vmatprep.subr.mxu0 0.0
    %2080 = vmatpush1.xpose.msra.mxu0 0.0
    %2081 = vmatprep.subr.mxu0 0.0
    %2082 = vmatpush1.xpose.msra.mxu0 0.0
    %2083 = vmatprep.subr.mxu0 0.0
    %2084 = vmatpush1.xpose.msra.mxu0 0.0
    %2085 = vmatprep.subr.mxu0 0.0
    %2086 = vmatpush1.xpose.msra.mxu0 0.0
    %2087 = vmatprep.subr.mxu0 0.0
    %2088 = vmatpush1.xpose.msra.mxu0 0.0
    %2089 = vmatprep.subr.mxu0 0.0
    %2090 = vmatpush1.xpose.msra.mxu0 0.0
    %2091 = vmatprep.subr.mxu0 0.0
    %2092 = vmatpush1.xpose.msra.mxu0 0.0
    %2093 = vmatprep.subr.mxu0 0.0
    %2094 = vmatpush1.xpose.msra.mxu0 0.0
    %2095 = vmatprep.subr.mxu0 0.0
    %2096 = vmatpush1.xpose.msra.mxu0 0.0
    %2097 = vmatprep.subr.mxu0 0.0
    %2098 = vmatpush1.xpose.msra.mxu0 0.0
    %2099 = vmatprep.subr.mxu0 0.0
    %2100 = vmatpush1.xpose.msra.mxu0 0.0
    %2101 = vmatprep.subr.mxu0 0.0
    %2102 = vmatpush1.xpose.msra.mxu0 0.0
    %2103 = vmatprep.subr.mxu0 0.0
    %2104 = vmatpush1.xpose.msra.mxu0 0.0
    %2105 = vmatprep.subr.mxu0 0.0
    %2106 = vmatpush1.xpose.msra.mxu0 0.0
    %2107 = vmatprep.subr.mxu0 0.0
    %2108 = vmatpush1.xpose.msra.mxu0 0.0
    %2109 = vmatprep.subr.mxu0 0.0
    %2110 = vmatpush1.xpose.msra.mxu0 0.0
    %2111 = vmatprep.subr.mxu0 0.0
    %2112 = vmatpush1.xpose.msra.mxu0 0.0
    %2113 = vmatprep.subr.mxu0 0.0
    %2114 = vmatpush1.xpose.msra.mxu0 0.0
    %2115 = vmatprep.subr.mxu0 0.0
    %2116 = vmatpush1.xpose.msra.mxu0 0.0
    %2117 = vmatprep.subr.mxu0 0.0
    %2118 = vmatpush1.xpose.msra.mxu0 0.0
    %2119 = vmatprep.subr.mxu0 0.0
    %2120 = vmatpush1.xpose.msra.mxu0 0.0
    %2121 = vmatprep.subr.mxu0 0.0
    %2122 = vmatpush1.xpose.msra.mxu0 0.0
    %2123 = vmatprep.subr.mxu0 0.0
    %2124 = vmatpush1.xpose.msra.mxu0 0.0
    %2125 = vmatprep.subr.mxu0 0.0
    %2126 = vmatpush1.xpose.msra.mxu0 0.0
    %2127 = vmatprep.subr.mxu0 0.0
    %2128 = vmatpush1.xpose.msra.mxu0 0.0
    %2129 = vmatprep.subr.mxu0 0.0
    %2130 = vmatpush1.xpose.msra.mxu0 0.0
    %2131 = vmatprep.subr.mxu0 0.0
    %2132 = vmatpush1.xpose.msra.mxu0 0.0
    %2133 = vmatprep.mubr.f32.mxu0 0.0
    %2134 = vmatmul.mubr.f32.gmra.mrb[0].mxu0 %v2065
    %v2135 = vpop.f32.mrb[0].mxu0
    %v2136 = vadd.f32 0.0, %v2135
    %v2137 = vpop.f32.mrb[0].mxu0
    %2138 = vdwg.mxu0
    %v2139 = vsel %vm1164, %v2058, -inf
    %2140 = vmax.xlane.f32.xlu0 %v2139
    %v2141 = vpop.xlane.xlu0 %2140
    %v2142 = vsel %vm1164, %v2136, -inf
    %2143 = vmax.xlane.f32.xlu0 %v2142
    %v2144 = vpop.xlane.xlu0 %2143
    %v2145 = vsub.f32 %v2058, %v2141
    %v2146 = vsub.f32 %v2136, %v2144
    %v2147 = vmul.f32 %v2145, 1.442695
    %v2148 = vpow.pop %v2147
    %v2149 = vmul.f32 %v2146, 1.442695
    %v2150 = vpow.pop %v2149
    %v2151 = vsel %vm1164, %v2148, 0.0
    %2152 = vadd.xlane.f32.xlu0 %v2151
    %v2153 = vpop.xlane.xlu0 %2152
    %v2154 = vsel %vm1164, %v2150, 0.0
    %2155 = vadd.xlane.f32.xlu0 %v2154
    %v2156 = vpop.xlane.xlu0 %2155
    %v2157 = vrcp.pop %v2153
    %v2158 = vrcp.pop %v2156
    %v2159 = vmul.f32 %v2148, %v2157
    %v2160 = vmul.f32 %v2150, %v2158
    %2161 = vrot.lane.b32.xlu0 %v1150, 80
    %v2162 = vpop.permute.xlu0 %2161
    %v2165 = vsel %vm1164, %v2159, 0
    %2167 = vmatprep.subr.mxu0 0.0
    %2168 = vmatpush1.msra.mxu0 %v2162
    %2169 = vmatprep.subr.mxu0 0.0
    %2170 = vmatpush1.msra.mxu0 0.0
    %2171 = vmatprep.subr.mxu0 0.0
    %2172 = vmatpush1.msra.mxu0 0.0
    %2173 = vmatprep.subr.mxu0 0.0
    %2174 = vmatpush1.msra.mxu0 0.0
    %2175 = vmatprep.subr.mxu0 0.0
    %2176 = vmatpush1.msra.mxu0 0.0
    %2177 = vmatprep.subr.mxu0 0.0
    %2178 = vmatpush1.msra.mxu0 0.0
    %2179 = vmatprep.subr.mxu0 0.0
    %2180 = vmatpush1.msra.mxu0 0.0
    %2181 = vmatprep.subr.mxu0 0.0
    %2182 = vmatpush1.msra.mxu0 0.0
    %2183 = vmatprep.subr.mxu0 0.0
    %2184 = vmatpush1.msra.mxu0 0.0
    %2185 = vmatprep.subr.mxu0 0.0
    %2186 = vmatpush1.msra.mxu0 0.0
    %2187 = vmatprep.subr.mxu0 0.0
    %2188 = vmatpush1.msra.mxu0 0.0
    %2189 = vmatprep.subr.mxu0 0.0
    %2190 = vmatpush1.msra.mxu0 0.0
    %2191 = vmatprep.subr.mxu0 0.0
    %2192 = vmatpush1.msra.mxu0 0.0
    %2193 = vmatprep.subr.mxu0 0.0
    %2194 = vmatpush1.msra.mxu0 0.0
    %2195 = vmatprep.subr.mxu0 0.0
    %2196 = vmatpush1.msra.mxu0 0.0
    %2197 = vmatprep.subr.mxu0 0.0
    %2198 = vmatpush1.msra.mxu0 0.0
    %2199 = vmatprep.subr.mxu0 0.0
    %2200 = vmatpush1.msra.mxu0 0.0
    %2201 = vmatprep.subr.mxu0 0.0
    %2202 = vmatpush1.msra.mxu0 0.0
    %2203 = vmatprep.subr.mxu0 0.0
    %2204 = vmatpush1.msra.mxu0 0.0
    %2205 = vmatprep.subr.mxu0 0.0
    %2206 = vmatpush1.msra.mxu0 0.0
    %2207 = vmatprep.subr.mxu0 0.0
    %2208 = vmatpush1.msra.mxu0 0.0
    %2209 = vmatprep.subr.mxu0 0.0
    %2210 = vmatpush1.msra.mxu0 0.0
    %2211 = vmatprep.subr.mxu0 0.0
    %2212 = vmatpush1.msra.mxu0 0.0
    %2213 = vmatprep.subr.mxu0 0.0
    %2214 = vmatpush1.msra.mxu0 0.0
    %2215 = vmatprep.subr.mxu0 0.0
    %2216 = vmatpush1.msra.mxu0 0.0
    %2217 = vmatprep.subr.mxu0 0.0
    %2218 = vmatpush1.msra.mxu0 0.0
    %2219 = vmatprep.subr.mxu0 0.0
    %2220 = vmatpush1.msra.mxu0 0.0
    %2221 = vmatprep.subr.mxu0 0.0
    %2222 = vmatpush1.msra.mxu0 0.0
    %2223 = vmatprep.subr.mxu0 0.0
    %2224 = vmatpush1.msra.mxu0 0.0
    %2225 = vmatprep.subr.mxu0 0.0
    %2226 = vmatpush1.msra.mxu0 0.0
    %2227 = vmatprep.subr.mxu0 0.0
    %2228 = vmatpush1.msra.mxu0 0.0
    %2229 = vmatprep.subr.mxu0 0.0
    %2230 = vmatpush1.msra.mxu0 0.0
    %2231 = vmatprep.mubr.f32.mxu0 0.0
    %2232 = vmatmul.mubr.f32.gmra.mrb[0].mxu0 %v2165
    %v2233 = vpop.f32.mrb[0].mxu0
    %v2234 = vadd.f32 0.0, %v2233
    %v2235 = vpop.f32.mrb[0].mxu0
    %2236 = vdwg.mxu0
    %2237 = vrot.lane.b32.xlu0 %v1155, 80
    %v2238 = vpop.permute.xlu0 %2237
    %v2241 = vsel %vm1164, %v2160, 0
    %2243 = vmatprep.subr.mxu0 0.0
    %2244 = vmatpush1.msra.mxu0 %v2238
    %2245 = vmatprep.subr.mxu0 0.0
    %2246 = vmatpush1.msra.mxu0 0.0
    %2247 = vmatprep.subr.mxu0 0.0
    %2248 = vmatpush1.msra.mxu0 0.0
    %2249 = vmatprep.subr.mxu0 0.0
    %2250 = vmatpush1.msra.mxu0 0.0
    %2251 = vmatprep.subr.mxu0 0.0
    %2252 = vmatpush1.msra.mxu0 0.0
    %2253 = vmatprep.subr.mxu0 0.0
    %2254 = vmatpush1.msra.mxu0 0.0
    %2255 = vmatprep.subr.mxu0 0.0
    %2256 = vmatpush1.msra.mxu0 0.0
    %2257 = vmatprep.subr.mxu0 0.0
    %2258 = vmatpush1.msra.mxu0 0.0
    %2259 = vmatprep.subr.mxu0 0.0
    %2260 = vmatpush1.msra.mxu0 0.0
    %2261 = vmatprep.subr.mxu0 0.0
    %2262 = vmatpush1.msra.mxu0 0.0
    %2263 = vmatprep.subr.mxu0 0.0
    %2264 = vmatpush1.msra.mxu0 0.0
    %2265 = vmatprep.subr.mxu0 0.0
    %2266 = vmatpush1.msra.mxu0 0.0
    %2267 = vmatprep.subr.mxu0 0.0
    %2268 = vmatpush1.msra.mxu0 0.0
    %2269 = vmatprep.subr.mxu0 0.0
    %2270 = vmatpush1.msra.mxu0 0.0
    %2271 = vmatprep.subr.mxu0 0.0
    %2272 = vmatpush1.msra.mxu0 0.0
    %2273 = vmatprep.subr.mxu0 0.0
    %2274 = vmatpush1.msra.mxu0 0.0
    %2275 = vmatprep.subr.mxu0 0.0
    %2276 = vmatpush1.msra.mxu0 0.0
    %2277 = vmatprep.subr.mxu0 0.0
    %2278 = vmatpush1.msra.mxu0 0.0
    %2279 = vmatprep.subr.mxu0 0.0
    %2280 = vmatpush1.msra.mxu0 0.0
    %2281 = vmatprep.subr.mxu0 0.0
    %2282 = vmatpush1.msra.mxu0 0.0
    %2283 = vmatprep.subr.mxu0 0.0
    %2284 = vmatpush1.msra.mxu0 0.0
    %2285 = vmatprep.subr.mxu0 0.0
    %2286 = vmatpush1.msra.mxu0 0.0
    %2287 = vmatprep.subr.mxu0 0.0
    %2288 = vmatpush1.msra.mxu0 0.0
    %2289 = vmatprep.subr.mxu0 0.0
    %2290 = vmatpush1.msra.mxu0 0.0
    %2291 = vmatprep.subr.mxu0 0.0
    %2292 = vmatpush1.msra.mxu0 0.0
    %2293 = vmatprep.subr.mxu0 0.0
    %2294 = vmatpush1.msra.mxu0 0.0
    %2295 = vmatprep.subr.mxu0 0.0
    %2296 = vmatpush1.msra.mxu0 0.0
    %2297 = vmatprep.subr.mxu0 0.0
    %2298 = vmatpush1.msra.mxu0 0.0
    %2299 = vmatprep.subr.mxu0 0.0
    %2300 = vmatpush1.msra.mxu0 0.0
    %2301 = vmatprep.subr.mxu0 0.0
    %2302 = vmatpush1.msra.mxu0 0.0
    %2303 = vmatprep.subr.mxu0 0.0
    %2304 = vmatpush1.msra.mxu0 0.0
    %2305 = vmatprep.subr.mxu0 0.0
    %2306 = vmatpush1.msra.mxu0 0.0
    %2307 = vmatprep.mubr.f32.mxu0 0.0
    %2308 = vmatmul.mubr.f32.gmra.mrb[0].mxu0 %v2241
    %v2309 = vpop.f32.mrb[0].mxu0
    %v2310 = vadd.f32 0.0, %v2309
    %v2311 = vpop.f32.mrb[0].mxu0
    %2312 = vdwg.mxu0
    %v2314 = vsel %vm1164, %v2234, 0
    %v2317 = vsel %vm1164, %v2310, 0
    %2319 = vmatprep.subr.mxu0 0.0
    %2320 = vmatpush1.msra.mxu0 %v1160
    %2321 = vmatprep.subr.mxu0 0.0
    %2322 = vmatpush1.msra.mxu0 0.0
    %2323 = vmatprep.subr.mxu0 0.0
    %2324 = vmatpush1.msra.mxu0 0.0
    %2325 = vmatprep.subr.mxu0 0.0
    %2326 = vmatpush1.msra.mxu0 0.0
    %2327 = vmatprep.subr.mxu0 0.0
    %2328 = vmatpush1.msra.mxu0 0.0
    %2329 = vmatprep.subr.mxu0 0.0
    %2330 = vmatpush1.msra.mxu0 0.0
    %2331 = vmatprep.subr.mxu0 0.0
    %2332 = vmatpush1.msra.mxu0 0.0
    %2333 = vmatprep.subr.mxu0 0.0
    %2334 = vmatpush1.msra.mxu0 0.0
    %2335 = vmatprep.subr.mxu0 0.0
    %2336 = vmatpush1.msra.mxu0 0.0
    %2337 = vmatprep.subr.mxu0 0.0
    %2338 = vmatpush1.msra.mxu0 0.0
    %2339 = vmatprep.subr.mxu0 0.0
    %2340 = vmatpush1.msra.mxu0 0.0
    %2341 = vmatprep.subr.mxu0 0.0
    %2342 = vmatpush1.msra.mxu0 0.0
    %2343 = vmatprep.subr.mxu0 0.0
    %2344 = vmatpush1.msra.mxu0 0.0
    %2345 = vmatprep.subr.mxu0 0.0
    %2346 = vmatpush1.msra.mxu0 0.0
    %2347 = vmatprep.subr.mxu0 0.0
    %2348 = vmatpush1.msra.mxu0 0.0
    %2349 = vmatprep.subr.mxu0 0.0
    %2350 = vmatpush1.msra.mxu0 0.0
    %2351 = vmatprep.subr.mxu0 0.0
    %2352 = vmatpush1.msra.mxu0 0.0
    %2353 = vmatprep.subr.mxu0 0.0
    %2354 = vmatpush1.msra.mxu0 0.0
    %2355 = vmatprep.subr.mxu0 0.0
    %2356 = vmatpush1.msra.mxu0 0.0
    %2357 = vmatprep.subr.mxu0 0.0
    %2358 = vmatpush1.msra.mxu0 0.0
    %2359 = vmatprep.subr.mxu0 0.0
    %2360 = vmatpush1.msra.mxu0 0.0
    %2361 = vmatprep.subr.mxu0 0.0
    %2362 = vmatpush1.msra.mxu0 0.0
    %2363 = vmatprep.subr.mxu0 0.0
    %2364 = vmatpush1.msra.mxu0 0.0
    %2365 = vmatprep.subr.mxu0 0.0
    %2366 = vmatpush1.msra.mxu0 0.0
    %2367 = vmatprep.subr.mxu0 0.0
    %2368 = vmatpush1.msra.mxu0 0.0
    %2369 = vmatprep.subr.mxu0 0.0
    %2370 = vmatpush1.msra.mxu0 0.0
    %2371 = vmatprep.subr.mxu0 0.0
    %2372 = vmatpush1.msra.mxu0 0.0
    %2373 = vmatprep.subr.mxu0 0.0
    %2374 = vmatpush1.msra.mxu0 0.0
    %2375 = vmatprep.subr.mxu0 0.0
    %2376 = vmatpush1.msra.mxu0 0.0
    %2377 = vmatprep.subr.mxu0 0.0
    %2378 = vmatpush1.msra.mxu0 0.0
    %2379 = vmatprep.subr.mxu0 0.0
    %2380 = vmatpush1.msra.mxu0 0.0
    %2381 = vmatprep.subr.mxu0 0.0
    %2382 = vmatpush1.msra.mxu0 0.0
    %2383 = vmatprep.mubr.f32.mxu0 0.0
    %2384 = vmatmul.mubr.f32.gmra.mrb[0].mxu0 %v2314
    %v2385 = vpop.f32.mrb[0].mxu0
    %v2386 = vadd.f32 0.0, %v2385
    %v2387 = vpop.f32.mrb[0].mxu0
    %2388 = vmatprep.mubr.f32.mxu0 0.0
    %2389 = vmatmul.mubr.f32.gmra.mrb[0].mxu0 %v2317
    %v2390 = vpop.f32.mrb[0].mxu0
    %v2391 = vadd.f32 0.0, %v2390
    %v2392 = vpop.f32.mrb[0].mxu0
    %2393 = vdwg.mxu0
    %v2394 = vadd.f32 %v1975, %v2386
    %v2395 = vadd.f32 %v1980, %v2391
    %2396 = vrot.lane.b32.xlu0 %v1162, 104
    %v2397 = vpop.permute.xlu0 %2396
    %2398 = vrot.lane.b32.xlu0 %v1150, 104
    %v2399 = vpop.permute.xlu0 %2398
    %v2400 = vsel %vm1164, %v2397, 0
    %v2402 = vsel %vm1164, %v2399, 0
    %2404 = vmatprep.subr.mxu0 0.0
    %2405 = vmatpush1.xpose.msra.mxu0 %v2402
    %2406 = vmatprep.subr.mxu0 0.0
    %2407 = vmatpush1.xpose.msra.mxu0 0.0
    %2408 = vmatprep.subr.mxu0 0.0
    %2409 = vmatpush1.xpose.msra.mxu0 0.0
    %2410 = vmatprep.subr.mxu0 0.0
    %2411 = vmatpush1.xpose.msra.mxu0 0.0
    %2412 = vmatprep.subr.mxu0 0.0
    %2413 = vmatpush1.xpose.msra.mxu0 0.0
    %2414 = vmatprep.subr.mxu0 0.0
    %2415 = vmatpush1.xpose.msra.mxu0 0.0
    %2416 = vmatprep.subr.mxu0 0.0
    %2417 = vmatpush1.xpose.msra.mxu0 0.0
    %2418 = vmatprep.subr.mxu0 0.0
    %2419 = vmatpush1.xpose.msra.mxu0 0.0
    %2420 = vmatprep.subr.mxu0 0.0
    %2421 = vmatpush1.xpose.msra.mxu0 0.0
    %2422 = vmatprep.subr.mxu0 0.0
    %2423 = vmatpush1.xpose.msra.mxu0 0.0
    %2424 = vmatprep.subr.mxu0 0.0
    %2425 = vmatpush1.xpose.msra.mxu0 0.0
    %2426 = vmatprep.subr.mxu0 0.0
    %2427 = vmatpush1.xpose.msra.mxu0 0.0
    %2428 = vmatprep.subr.mxu0 0.0
    %2429 = vmatpush1.xpose.msra.mxu0 0.0
    %2430 = vmatprep.subr.mxu0 0.0
    %2431 = vmatpush1.xpose.msra.mxu0 0.0
    %2432 = vmatprep.subr.mxu0 0.0
    %2433 = vmatpush1.xpose.msra.mxu0 0.0
    %2434 = vmatprep.subr.mxu0 0.0
    %2435 = vmatpush1.xpose.msra.mxu0 0.0
    %2436 = vmatprep.subr.mxu0 0.0
    %2437 = vmatpush1.xpose.msra.mxu0 0.0
    %2438 = vmatprep.subr.mxu0 0.0
    %2439 = vmatpush1.xpose.msra.mxu0 0.0
    %2440 = vmatprep.subr.mxu0 0.0
    %2441 = vmatpush1.xpose.msra.mxu0 0.0
    %2442 = vmatprep.subr.mxu0 0.0
    %2443 = vmatpush1.xpose.msra.mxu0 0.0
    %2444 = vmatprep.subr.mxu0 0.0
    %2445 = vmatpush1.xpose.msra.mxu0 0.0
    %2446 = vmatprep.subr.mxu0 0.0
    %2447 = vmatpush1.xpose.msra.mxu0 0.0
    %2448 = vmatprep.subr.mxu0 0.0
    %2449 = vmatpush1.xpose.msra.mxu0 0.0
    %2450 = vmatprep.subr.mxu0 0.0
    %2451 = vmatpush1.xpose.msra.mxu0 0.0
    %2452 = vmatprep.subr.mxu0 0.0
    %2453 = vmatpush1.xpose.msra.mxu0 0.0
    %2454 = vmatprep.subr.mxu0 0.0
    %2455 = vmatpush1.xpose.msra.mxu0 0.0
    %2456 = vmatprep.subr.mxu0 0.0
    %2457 = vmatpush1.xpose.msra.mxu0 0.0
    %2458 = vmatprep.subr.mxu0 0.0
    %2459 = vmatpush1.xpose.msra.mxu0 0.0
    %2460 = vmatprep.subr.mxu0 0.0
    %2461 = vmatpush1.xpose.msra.mxu0 0.0
    %2462 = vmatprep.subr.mxu0 0.0
    %2463 = vmatpush1.xpose.msra.mxu0 0.0
    %2464 = vmatprep.subr.mxu0 0.0
    %2465 = vmatpush1.xpose.msra.mxu0 0.0
    %2466 = vmatprep.subr.mxu0 0.0
    %2467 = vmatpush1.xpose.msra.mxu0 0.0
    %2468 = vmatprep.mubr.f32.mxu0 0.0
    %2469 = vmatmul.mubr.f32.gmra.mrb[0].mxu0 %v2400
    %v2470 = vpop.f32.mrb[0].mxu0
    %v2471 = vadd.f32 0.0, %v2470
    %v2472 = vpop.f32.mrb[0].mxu0
    %2473 = vdwg.mxu0
    %2474 = vrot.lane.b32.xlu0 %v1163, 104
    %v2475 = vpop.permute.xlu0 %2474
    %2476 = vrot.lane.b32.xlu0 %v1155, 104
    %v2477 = vpop.permute.xlu0 %2476
    %v2478 = vsel %vm1164, %v2475, 0
    %v2480 = vsel %vm1164, %v2477, 0
    %2482 = vmatprep.subr.mxu0 0.0
    %2483 = vmatpush1.xpose.msra.mxu0 %v2480
    %2484 = vmatprep.subr.mxu0 0.0
    %2485 = vmatpush1.xpose.msra.mxu0 0.0
    %2486 = vmatprep.subr.mxu0 0.0
    %2487 = vmatpush1.xpose.msra.mxu0 0.0
    %2488 = vmatprep.subr.mxu0 0.0
    %2489 = vmatpush1.xpose.msra.mxu0 0.0
    %2490 = vmatprep.subr.mxu0 0.0
    %2491 = vmatpush1.xpose.msra.mxu0 0.0
    %2492 = vmatprep.subr.mxu0 0.0
    %2493 = vmatpush1.xpose.msra.mxu0 0.0
    %2494 = vmatprep.subr.mxu0 0.0
    %2495 = vmatpush1.xpose.msra.mxu0 0.0
    %2496 = vmatprep.subr.mxu0 0.0
    %2497 = vmatpush1.xpose.msra.mxu0 0.0
    %2498 = vmatprep.subr.mxu0 0.0
    %2499 = vmatpush1.xpose.msra.mxu0 0.0
    %2500 = vmatprep.subr.mxu0 0.0
    %2501 = vmatpush1.xpose.msra.mxu0 0.0
    %2502 = vmatprep.subr.mxu0 0.0
    %2503 = vmatpush1.xpose.msra.mxu0 0.0
    %2504 = vmatprep.subr.mxu0 0.0
    %2505 = vmatpush1.xpose.msra.mxu0 0.0
    %2506 = vmatprep.subr.mxu0 0.0
    %2507 = vmatpush1.xpose.msra.mxu0 0.0
    %2508 = vmatprep.subr.mxu0 0.0
    %2509 = vmatpush1.xpose.msra.mxu0 0.0
    %2510 = vmatprep.subr.mxu0 0.0
    %2511 = vmatpush1.xpose.msra.mxu0 0.0
    %2512 = vmatprep.subr.mxu0 0.0
    %2513 = vmatpush1.xpose.msra.mxu0 0.0
    %2514 = vmatprep.subr.mxu0 0.0
    %2515 = vmatpush1.xpose.msra.mxu0 0.0
    %2516 = vmatprep.subr.mxu0 0.0
    %2517 = vmatpush1.xpose.msra.mxu0 0.0
    %2518 = vmatprep.subr.mxu0 0.0
    %2519 = vmatpush1.xpose.msra.mxu0 0.0
    %2520 = vmatprep.subr.mxu0 0.0
    %2521 = vmatpush1.xpose.msra.mxu0 0.0
    %2522 = vmatprep.subr.mxu0 0.0
    %2523 = vmatpush1.xpose.msra.mxu0 0.0
    %2524 = vmatprep.subr.mxu0 0.0
    %2525 = vmatpush1.xpose.msra.mxu0 0.0
    %2526 = vmatprep.subr.mxu0 0.0
    %2527 = vmatpush1.xpose.msra.mxu0 0.0
    %2528 = vmatprep.subr.mxu0 0.0
    %2529 = vmatpush1.xpose.msra.mxu0 0.0
    %2530 = vmatprep.subr.mxu0 0.0
    %2531 = vmatpush1.xpose.msra.mxu0 0.0
    %2532 = vmatprep.subr.mxu0 0.0
    %2533 = vmatpush1.xpose.msra.mxu0 0.0
    %2534 = vmatprep.subr.mxu0 0.0
    %2535 = vmatpush1.xpose.msra.mxu0 0.0
    %2536 = vmatprep.subr.mxu0 0.0
    %2537 = vmatpush1.xpose.msra.mxu0 0.0
    %2538 = vmatprep.subr.mxu0 0.0
    %2539 = vmatpush1.xpose.msra.mxu0 0.0
    %2540 = vmatprep.subr.mxu0 0.0
    %2541 = vmatpush1.xpose.msra.mxu0 0.0
    %2542 = vmatprep.subr.mxu0 0.0
    %2543 = vmatpush1.xpose.msra.mxu0 0.0
    %2544 = vmatprep.subr.mxu0 0.0
    %2545 = vmatpush1.xpose.msra.mxu0 0.0
    %2546 = vmatprep.mubr.f32.mxu0 0.0
    %2547 = vmatmul.mubr.f32.gmra.mrb[0].mxu0 %v2478
    %v2548 = vpop.f32.mrb[0].mxu0
    %v2549 = vadd.f32 0.0, %v2548
    %v2550 = vpop.f32.mrb[0].mxu0
    %2551 = vdwg.mxu0
    %v2552 = vsel %vm1164, %v2471, -inf
    %2553 = vmax.xlane.f32.xlu0 %v2552
    %v2554 = vpop.xlane.xlu0 %2553
    %v2555 = vsel %vm1164, %v2549, -inf
    %2556 = vmax.xlane.f32.xlu0 %v2555
    %v2557 = vpop.xlane.xlu0 %2556
    %v2558 = vsub.f32 %v2471, %v2554
    %v2559 = vsub.f32 %v2549, %v2557
    %v2560 = vmul.f32 %v2558, 1.442695
    %v2561 = vpow.pop %v2560
    %v2562 = vmul.f32 %v2559, 1.442695
    %v2563 = vpow.pop %v2562
    %v2564 = vsel %vm1164, %v2561, 0.0
    %2565 = vadd.xlane.f32.xlu0 %v2564
    %v2566 = vpop.xlane.xlu0 %2565
    %v2567 = vsel %vm1164, %v2563, 0.0
    %2568 = vadd.xlane.f32.xlu0 %v2567
    %v2569 = vpop.xlane.xlu0 %2568
    %v2570 = vrcp.pop %v2566
    %v2571 = vrcp.pop %v2569
    %v2572 = vmul.f32 %v2561, %v2570
    %v2573 = vmul.f32 %v2563, %v2571
    %2574 = vrot.lane.b32.xlu0 %v1150, 72
    %v2575 = vpop.permute.xlu0 %2574
    %v2578 = vsel %vm1164, %v2572, 0
    %2580 = vmatprep.subr.mxu0 0.0
    %2581 = vmatpush1.msra.mxu0 %v2575
    %2582 = vmatprep.subr.mxu0 0.0
    %2583 = vmatpush1.msra.mxu0 0.0
    %2584 = vmatprep.subr.mxu0 0.0
    %2585 = vmatpush1.msra.mxu0 0.0
    %2586 = vmatprep.subr.mxu0 0.0
    %2587 = vmatpush1.msra.mxu0 0.0
    %2588 = vmatprep.subr.mxu0 0.0
    %2589 = vmatpush1.msra.mxu0 0.0
    %2590 = vmatprep.subr.mxu0 0.0
    %2591 = vmatpush1.msra.mxu0 0.0
    %2592 = vmatprep.subr.mxu0 0.0
    %2593 = vmatpush1.msra.mxu0 0.0
    %2594 = vmatprep.subr.mxu0 0.0
    %2595 = vmatpush1.msra.mxu0 0.0
    %2596 = vmatprep.subr.mxu0 0.0
    %2597 = vmatpush1.msra.mxu0 0.0
    %2598 = vmatprep.subr.mxu0 0.0
    %2599 = vmatpush1.msra.mxu0 0.0
    %2600 = vmatprep.subr.mxu0 0.0
    %2601 = vmatpush1.msra.mxu0 0.0
    %2602 = vmatprep.subr.mxu0 0.0
    %2603 = vmatpush1.msra.mxu0 0.0
    %2604 = vmatprep.subr.mxu0 0.0
    %2605 = vmatpush1.msra.mxu0 0.0
    %2606 = vmatprep.subr.mxu0 0.0
    %2607 = vmatpush1.msra.mxu0 0.0
    %2608 = vmatprep.subr.mxu0 0.0
    %2609 = vmatpush1.msra.mxu0 0.0
    %2610 = vmatprep.subr.mxu0 0.0
    %2611 = vmatpush1.msra.mxu0 0.0
    %2612 = vmatprep.subr.mxu0 0.0
    %2613 = vmatpush1.msra.mxu0 0.0
    %2614 = vmatprep.subr.mxu0 0.0
    %2615 = vmatpush1.msra.mxu0 0.0
    %2616 = vmatprep.subr.mxu0 0.0
    %2617 = vmatpush1.msra.mxu0 0.0
    %2618 = vmatprep.subr.mxu0 0.0
    %2619 = vmatpush1.msra.mxu0 0.0
    %2620 = vmatprep.subr.mxu0 0.0
    %2621 = vmatpush1.msra.mxu0 0.0
    %2622 = vmatprep.subr.mxu0 0.0
    %2623 = vmatpush1.msra.mxu0 0.0
    %2624 = vmatprep.subr.mxu0 0.0
    %2625 = vmatpush1.msra.mxu0 0.0
    %2626 = vmatprep.subr.mxu0 0.0
    %2627 = vmatpush1.msra.mxu0 0.0
    %2628 = vmatprep.subr.mxu0 0.0
    %2629 = vmatpush1.msra.mxu0 0.0
    %2630 = vmatprep.subr.mxu0 0.0
    %2631 = vmatpush1.msra.mxu0 0.0
    %2632 = vmatprep.subr.mxu0 0.0
    %2633 = vmatpush1.msra.mxu0 0.0
    %2634 = vmatprep.subr.mxu0 0.0
    %2635 = vmatpush1.msra.mxu0 0.0
    %2636 = vmatprep.subr.mxu0 0.0
    %2637 = vmatpush1.msra.mxu0 0.0
    %2638 = vmatprep.subr.mxu0 0.0
    %2639 = vmatpush1.msra.mxu0 0.0
    %2640 = vmatprep.subr.mxu0 0.0
    %2641 = vmatpush1.msra.mxu0 0.0
    %2642 = vmatprep.subr.mxu0 0.0
    %2643 = vmatpush1.msra.mxu0 0.0
    %2644 = vmatprep.mubr.f32.mxu0 0.0
    %2645 = vmatmul.mubr.f32.gmra.mrb[0].mxu0 %v2578
    %v2646 = vpop.f32.mrb[0].mxu0
    %v2647 = vadd.f32 0.0, %v2646
    %v2648 = vpop.f32.mrb[0].mxu0
    %2649 = vdwg.mxu0
    %2650 = vrot.lane.b32.xlu0 %v1155, 72
    %v2651 = vpop.permute.xlu0 %2650
    %v2654 = vsel %vm1164, %v2573, 0
    %2656 = vmatprep.subr.mxu0 0.0
    %2657 = vmatpush1.msra.mxu0 %v2651
    %2658 = vmatprep.subr.mxu0 0.0
    %2659 = vmatpush1.msra.mxu0 0.0
    %2660 = vmatprep.subr.mxu0 0.0
    %2661 = vmatpush1.msra.mxu0 0.0
    %2662 = vmatprep.subr.mxu0 0.0
    %2663 = vmatpush1.msra.mxu0 0.0
    %2664 = vmatprep.subr.mxu0 0.0
    %2665 = vmatpush1.msra.mxu0 0.0
    %2666 = vmatprep.subr.mxu0 0.0
    %2667 = vmatpush1.msra.mxu0 0.0
    %2668 = vmatprep.subr.mxu0 0.0
    %2669 = vmatpush1.msra.mxu0 0.0
    %2670 = vmatprep.subr.mxu0 0.0
    %2671 = vmatpush1.msra.mxu0 0.0
    %2672 = vmatprep.subr.mxu0 0.0
    %2673 = vmatpush1.msra.mxu0 0.0
    %2674 = vmatprep.subr.mxu0 0.0
    %2675 = vmatpush1.msra.mxu0 0.0
    %2676 = vmatprep.subr.mxu0 0.0
    %2677 = vmatpush1.msra.mxu0 0.0
    %2678 = vmatprep.subr.mxu0 0.0
    %2679 = vmatpush1.msra.mxu0 0.0
    %2680 = vmatprep.subr.mxu0 0.0
    %2681 = vmatpush1.msra.mxu0 0.0
    %2682 = vmatprep.subr.mxu0 0.0
    %2683 = vmatpush1.msra.mxu0 0.0
    %2684 = vmatprep.subr.mxu0 0.0
    %2685 = vmatpush1.msra.mxu0 0.0
    %2686 = vmatprep.subr.mxu0 0.0
    %2687 = vmatpush1.msra.mxu0 0.0
    %2688 = vmatprep.subr.mxu0 0.0
    %2689 = vmatpush1.msra.mxu0 0.0
    %2690 = vmatprep.subr.mxu0 0.0
    %2691 = vmatpush1.msra.mxu0 0.0
    %2692 = vmatprep.subr.mxu0 0.0
    %2693 = vmatpush1.msra.mxu0 0.0
    %2694 = vmatprep.subr.mxu0 0.0
    %2695 = vmatpush1.msra.mxu0 0.0
    %2696 = vmatprep.subr.mxu0 0.0
    %2697 = vmatpush1.msra.mxu0 0.0
    %2698 = vmatprep.subr.mxu0 0.0
    %2699 = vmatpush1.msra.mxu0 0.0
    %2700 = vmatprep.subr.mxu0 0.0
    %2701 = vmatpush1.msra.mxu0 0.0
    %2702 = vmatprep.subr.mxu0 0.0
    %2703 = vmatpush1.msra.mxu0 0.0
    %2704 = vmatprep.subr.mxu0 0.0
    %2705 = vmatpush1.msra.mxu0 0.0
    %2706 = vmatprep.subr.mxu0 0.0
    %2707 = vmatpush1.msra.mxu0 0.0
    %2708 = vmatprep.subr.mxu0 0.0
    %2709 = vmatpush1.msra.mxu0 0.0
    %2710 = vmatprep.subr.mxu0 0.0
    %2711 = vmatpush1.msra.mxu0 0.0
    %2712 = vmatprep.subr.mxu0 0.0
    %2713 = vmatpush1.msra.mxu0 0.0
    %2714 = vmatprep.subr.mxu0 0.0
    %2715 = vmatpush1.msra.mxu0 0.0
    %2716 = vmatprep.subr.mxu0 0.0
    %2717 = vmatpush1.msra.mxu0 0.0
    %2718 = vmatprep.subr.mxu0 0.0
    %2719 = vmatpush1.msra.mxu0 0.0
    %2720 = vmatprep.mubr.f32.mxu0 0.0
    %2721 = vmatmul.mubr.f32.gmra.mrb[0].mxu0 %v2654
    %v2722 = vpop.f32.mrb[0].mxu0
    %v2723 = vadd.f32 0.0, %v2722
    %v2724 = vpop.f32.mrb[0].mxu0
    %2725 = vdwg.mxu0
    %v2727 = vsel %vm1164, %v2647, 0
    %v2730 = vsel %vm1164, %v2723, 0
    %2732 = vmatprep.subr.mxu0 0.0
    %2733 = vmatpush1.msra.mxu0 %v1161
    %2734 = vmatprep.subr.mxu0 0.0
    %2735 = vmatpush1.msra.mxu0 0.0
    %2736 = vmatprep.subr.mxu0 0.0
    %2737 = vmatpush1.msra.mxu0 0.0
    %2738 = vmatprep.subr.mxu0 0.0
    %2739 = vmatpush1.msra.mxu0 0.0
    %2740 = vmatprep.subr.mxu0 0.0
    %2741 = vmatpush1.msra.mxu0 0.0
    %2742 = vmatprep.subr.mxu0 0.0
    %2743 = vmatpush1.msra.mxu0 0.0
    %2744 = vmatprep.subr.mxu0 0.0
    %2745 = vmatpush1.msra.mxu0 0.0
    %2746 = vmatprep.subr.mxu0 0.0
    %2747 = vmatpush1.msra.mxu0 0.0
    %2748 = vmatprep.subr.mxu0 0.0
    %2749 = vmatpush1.msra.mxu0 0.0
    %2750 = vmatprep.subr.mxu0 0.0
    %2751 = vmatpush1.msra.mxu0 0.0
    %2752 = vmatprep.subr.mxu0 0.0
    %2753 = vmatpush1.msra.mxu0 0.0
    %2754 = vmatprep.subr.mxu0 0.0
    %2755 = vmatpush1.msra.mxu0 0.0
    %2756 = vmatprep.subr.mxu0 0.0
    %2757 = vmatpush1.msra.mxu0 0.0
    %2758 = vmatprep.subr.mxu0 0.0
    %2759 = vmatpush1.msra.mxu0 0.0
    %2760 = vmatprep.subr.mxu0 0.0
    %2761 = vmatpush1.msra.mxu0 0.0
    %2762 = vmatprep.subr.mxu0 0.0
    %2763 = vmatpush1.msra.mxu0 0.0
    %2764 = vmatprep.subr.mxu0 0.0
    %2765 = vmatpush1.msra.mxu0 0.0
    %2766 = vmatprep.subr.mxu0 0.0
    %2767 = vmatpush1.msra.mxu0 0.0
    %2768 = vmatprep.subr.mxu0 0.0
    %2769 = vmatpush1.msra.mxu0 0.0
    %2770 = vmatprep.subr.mxu0 0.0
    %2771 = vmatpush1.msra.mxu0 0.0
    %2772 = vmatprep.subr.mxu0 0.0
    %2773 = vmatpush1.msra.mxu0 0.0
    %2774 = vmatprep.subr.mxu0 0.0
    %2775 = vmatpush1.msra.mxu0 0.0
    %2776 = vmatprep.subr.mxu0 0.0
    %2777 = vmatpush1.msra.mxu0 0.0
    %2778 = vmatprep.subr.mxu0 0.0
    %2779 = vmatpush1.msra.mxu0 0.0
    %2780 = vmatprep.subr.mxu0 0.0
    %2781 = vmatpush1.msra.mxu0 0.0
    %2782 = vmatprep.subr.mxu0 0.0
    %2783 = vmatpush1.msra.mxu0 0.0
    %2784 = vmatprep.subr.mxu0 0.0
    %2785 = vmatpush1.msra.mxu0 0.0
    %2786 = vmatprep.subr.mxu0 0.0
    %2787 = vmatpush1.msra.mxu0 0.0
    %2788 = vmatprep.subr.mxu0 0.0
    %2789 = vmatpush1.msra.mxu0 0.0
    %2790 = vmatprep.subr.mxu0 0.0
    %2791 = vmatpush1.msra.mxu0 0.0
    %2792 = vmatprep.subr.mxu0 0.0
    %2793 = vmatpush1.msra.mxu0 0.0
    %2794 = vmatprep.subr.mxu0 0.0
    %2795 = vmatpush1.msra.mxu0 0.0
    %2796 = vmatprep.mubr.f32.mxu0 0.0
    %2797 = vmatmul.mubr.f32.gmra.mrb[0].mxu0 %v2727
    %v2798 = vpop.f32.mrb[0].mxu0
    %v2799 = vadd.f32 0.0, %v2798
    %v2800 = vpop.f32.mrb[0].mxu0
    %2801 = vmatprep.mubr.f32.mxu0 0.0
    %2802 = vmatmul.mubr.f32.gmra.mrb[0].mxu0 %v2730
    %v2803 = vpop.f32.mrb[0].mxu0
    %v2804 = vadd.f32 0.0, %v2803
    %v2805 = vpop.f32.mrb[0].mxu0
    %2806 = vdwg.mxu0
    %v2807 = vadd.f32 %v2394, %v2799
    %v2808 = vadd.f32 %v2395, %v2804
    %v2809 = vld [vmem:[%s8] sm:$0x1]
    %v2811 = vlaneseq
    %v2812 = vshrl.u32 %v2811, 7
    %v2813 = vsub.s32 0, %v2812
    %v2814 = vrot.slane %v2809, %v2813
    %v2816 = vadd.f32 %v2807, %v2814
    %v2817 = vadd.f32 %v2808, %v2814
    %v2818 = vcombine.high %v2816, 0.0
    %v2820 = vunpack.c.l.s4 1983009808
    %v2821 = vunpack.c.0.s8 %v2820
    %v2822 = vlaneseq
    %v2823 = vshrl.u32 %v2822, 7
    %v2824 = vsub.s32 %v2821, %v2823
    %v2825 = vrot.slane %v2816, %v2824
    %v2827 = vunpack.c.l.s4 1983009808
    %v2828 = vunpack.c.0.s8 %v2827
    %v2829 = vlaneseq
    %v2830 = vshrl.u32 %v2829, 7
    %v2831 = vsub.s32 %v2828, %v2830
    %v2832 = vrot.slane %v2818, %v2831
    %v2833 = vcombine.high %v2817, 0.0
    %v2835 = vunpack.c.l.s4 1983009808
    %v2836 = vunpack.c.0.s8 %v2835
    %v2837 = vlaneseq
    %v2838 = vshrl.u32 %v2837, 7
    %v2839 = vsub.s32 %v2836, %v2838
    %v2840 = vrot.slane %v2817, %v2839
    %v2842 = vunpack.c.l.s4 1983009808
    %v2843 = vunpack.c.0.s8 %v2842
    %v2844 = vlaneseq
    %v2845 = vshrl.u32 %v2844, 7
    %v2846 = vsub.s32 %v2843, %v2845
    %v2847 = vrot.slane %v2833, %v2846
    %v2848 = vcombine.low %v2825, %v2840
    %v2849 = vcombine.high %v2825, %v2840
    %v2851 = vunpack.c.l.s4 1934713408
    %v2852 = vunpack.c.0.s8 %v2851
    %v2853 = vlaneseq
    %v2854 = vshrl.u32 %v2853, 7
    %v2855 = vsub.s32 %v2852, %v2854
    %v2856 = vrot.slane %v2848, %v2855
    %v2858 = vunpack.c.l.s4 1934713408
    %v2859 = vunpack.c.0.s8 %v2858
    %v2860 = vlaneseq
    %v2861 = vshrl.u32 %v2860, 7
    %v2862 = vsub.s32 %v2859, %v2861
    %v2863 = vrot.slane %v2849, %v2862
    %v2864 = vcombine.low %v2832, %v2847
    %v2865 = vcombine.high %v2832, %v2847
    %v2867 = vunpack.c.l.s4 1934713408
    %v2868 = vunpack.c.0.s8 %v2867
    %v2869 = vlaneseq
    %v2870 = vshrl.u32 %v2869, 7
    %v2871 = vsub.s32 %v2868, %v2870
    %v2872 = vrot.slane %v2864, %v2871
    %v2874 = vunpack.c.l.s4 1934713408
    %v2875 = vunpack.c.0.s8 %v2874
    %v2876 = vlaneseq
    %v2877 = vshrl.u32 %v2876, 7
    %v2878 = vsub.s32 %v2875, %v2877
    %v2879 = vrot.slane %v2865, %v2878
    %v2880 = vcombine.high %v2856, 0.0
    %v2881 = vcombine.high %v2863, 0.0
    %v2882 = vcombine.high %v2872, 0.0
    %v2883 = vcombine.high %v2879, 0.0
    %2885 = vrot.lane.b32.xlu0 %v2880, 32
    %v2886 = vpop.permute.xlu0 %2885
    %2889 = vrot.lane.b32.xlu0 %v2863, 64
    %v2890 = vpop.permute.xlu0 %2889
    %2893 = vrot.lane.b32.xlu0 %v2881, 96
    %v2894 = vpop.permute.xlu0 %2893
    %2897 = vrot.lane.b32.xlu0 %v2882, 32
    %v2898 = vpop.permute.xlu0 %2897
    %2901 = vrot.lane.b32.xlu0 %v2879, 64
    %v2902 = vpop.permute.xlu0 %2901
    %2905 = vrot.lane.b32.xlu0 %v2883, 96
    %v2906 = vpop.permute.xlu0 %2905
    %v2908 = vsel %vm984, %v2856, %v2886
    %vm2909 = vcmask 523264
    %v2910 = vsel %vm2909, %v2908, %v2890
    %vm2911 = vcmask 785408
    %v2912 = vsel %vm2911, %v2910, %v2894
    %v2913 = vsel %vm984, %v2872, %v2898
    %v2914 = vsel %vm2909, %v2913, %v2902
    %v2915 = vsel %vm2911, %v2914, %v2906
    %v2916 = vpack.c.bf16 %v2912, %v2912
    %v2917 = vpack.c.bf16 %v2915, %v2915
    %v2918 = vld [vmem:[#allocation11] sm:$0xff]
    %v2919 = vld [vmem:[#allocation11 + $0x8] sm:$0xff]
    %v2920 = vld [vmem:[#allocation11 + $0x10] sm:$0xff]
    %v2921 = vld [vmem:[#allocation11 + $0x18] sm:$0xff]
    %v2922 = vld [vmem:[#allocation11 + $0x20] sm:$0xff]
    %v2923 = vld [vmem:[#allocation11 + $0x28] sm:$0xff]
    %v2924 = vld [vmem:[#allocation11 + $0x30] sm:$0xff]
    %v2925 = vld [vmem:[#allocation11 + $0x38] sm:$0xff]
    %v2926 = vld [vmem:[#allocation11 + $0x40] sm:$0xff]
    %v2927 = vld [vmem:[#allocation11 + $0x48] sm:$0xff]
    %v2928 = vld [vmem:[#allocation11 + $0x50] sm:$0xff]
    %v2929 = vld [vmem:[#allocation11 + $0x58] sm:$0xff]
    %v2930 = vld [vmem:[#allocation11 + $0x60] sm:$0xff]
    %v2931 = vld [vmem:[#allocation11 + $0x68] sm:$0xff]
    %v2932 = vld [vmem:[#allocation11 + $0x70] sm:$0xff]
    %v2933 = vld [vmem:[#allocation11 + $0x78] sm:$0xff]
    %v2934 = vld [vmem:[#allocation11 + $0x80] sm:$0xff]
    %v2935 = vld [vmem:[#allocation11 + $0x88] sm:$0xff]
    %v2936 = vld [vmem:[#allocation11 + $0x90] sm:$0xff]
    %v2937 = vld [vmem:[#allocation11 + $0x98] sm:$0xff]
    %v2938 = vld [vmem:[#allocation11 + $0xa0] sm:$0xff]
    %v2939 = vld [vmem:[#allocation11 + $0xa8] sm:$0xff]
    %v2940 = vld [vmem:[#allocation11 + $0xb0] sm:$0xff]
    %v2941 = vld [vmem:[#allocation11 + $0xb8] sm:$0xff]
    %v2942 = vld [vmem:[#allocation11 + $0xc0] sm:$0xff]
    %v2943 = vld [vmem:[#allocation11 + $0xc8] sm:$0xff]
    %v2944 = vld [vmem:[#allocation11 + $0xd0] sm:$0xff]
    %v2945 = vld [vmem:[#allocation11 + $0xd8] sm:$0xff]
    %v2946 = vld [vmem:[#allocation11 + $0xe0] sm:$0xff]
    %v2947 = vld [vmem:[#allocation11 + $0xe8] sm:$0xff]
    %v2948 = vld [vmem:[#allocation11 + $0xf0] sm:$0xff]
    %v2949 = vld [vmem:[#allocation11 + $0xf8] sm:$0xff]
    %v2950 = vld [vmem:[#allocation11 + $0x100] sm:$0xff]
    %v2951 = vld [vmem:[#allocation11 + $0x108] sm:$0xff]
    %v2952 = vld [vmem:[#allocation11 + $0x110] sm:$0xff]
    %v2953 = vld [vmem:[#allocation11 + $0x118] sm:$0xff]
    %v2954 = vld [vmem:[#allocation11 + $0x120] sm:$0xff]
    %v2955 = vld [vmem:[#allocation11 + $0x128] sm:$0xff]
    %v2956 = vld [vmem:[#allocation11 + $0x130] sm:$0xff]
    %v2957 = vld [vmem:[#allocation11 + $0x138] sm:$0xff]
    %v2958 = vld [vmem:[#allocation11 + $0x140] sm:$0xff]
    %v2959 = vld [vmem:[#allocation11 + $0x148] sm:$0xff]
    %v2960 = vld [vmem:[#allocation11 + $0x150] sm:$0xff]
    %v2961 = vld [vmem:[#allocation11 + $0x158] sm:$0xff]
    %v2962 = vld [vmem:[#allocation11 + $0x160] sm:$0xff]
    %v2963 = vld [vmem:[#allocation11 + $0x168] sm:$0xff]
    %v2964 = vld [vmem:[#allocation11 + $0x170] sm:$0xff]
    %v2965 = vld [vmem:[#allocation11 + $0x178] sm:$0xff]
    %v2966 = vld [vmem:[#allocation11 + $0x180] sm:$0xff]
    %v2967 = vld [vmem:[#allocation11 + $0x188] sm:$0xff]
    %v2968 = vld [vmem:[#allocation11 + $0x190] sm:$0xff]
    %v2969 = vld [vmem:[#allocation11 + $0x198] sm:$0xff]
    %v2970 = vld [vmem:[#allocation11 + $0x1a0] sm:$0xff]
    %v2971 = vld [vmem:[#allocation11 + $0x1a8] sm:$0xff]
    %v2972 = vld [vmem:[#allocation11 + $0x1b0] sm:$0xff]
    %v2973 = vld [vmem:[#allocation11 + $0x1b8] sm:$0xff]
    %v2974 = vld [vmem:[#allocation11 + $0x1c0] sm:$0xff]
    %v2975 = vld [vmem:[#allocation11 + $0x1c8] sm:$0xff]
    %v2976 = vld [vmem:[#allocation11 + $0x1d0] sm:$0xff]
    %v2977 = vld [vmem:[#allocation11 + $0x1d8] sm:$0xff]
    %v2978 = vld [vmem:[#allocation11 + $0x1e0] sm:$0xff]
    %v2979 = vld [vmem:[#allocation11 + $0x1e8] sm:$0xff]
    %v2980 = vld [vmem:[#allocation11 + $0x1f0] sm:$0xff]
    %v2981 = vld [vmem:[#allocation11 + $0x1f8] sm:$0xff]
    %v2982 = vld [vmem:[#allocation11 + $0x200] sm:$0xff]
    %v2983 = vld [vmem:[#allocation11 + $0x208] sm:$0xff]
    %v2984 = vld [vmem:[#allocation11 + $0x210] sm:$0xff]
    %v2985 = vld [vmem:[#allocation11 + $0x218] sm:$0xff]
    %v2986 = vld [vmem:[#allocation11 + $0x220] sm:$0xff]
    %v2987 = vld [vmem:[#allocation11 + $0x228] sm:$0xff]
    %v2988 = vld [vmem:[#allocation11 + $0x230] sm:$0xff]
    %v2989 = vld [vmem:[#allocation11 + $0x238] sm:$0xff]
    %v2990 = vld [vmem:[#allocation11 + $0x240] sm:$0xff]
    %v2991 = vld [vmem:[#allocation11 + $0x248] sm:$0xff]
    %v2992 = vld [vmem:[#allocation11 + $0x250] sm:$0xff]
    %v2993 = vld [vmem:[#allocation11 + $0x258] sm:$0xff]
    %v2994 = vld [vmem:[#allocation11 + $0x260] sm:$0xff]
    %v2995 = vld [vmem:[#allocation11 + $0x268] sm:$0xff]
    %v2996 = vld [vmem:[#allocation11 + $0x270] sm:$0xff]
    %v2997 = vld [vmem:[#allocation11 + $0x278] sm:$0xff]
    %v2998 = vld [vmem:[#allocation11 + $0x280] sm:$0xff]
    %v2999 = vld [vmem:[#allocation11 + $0x288] sm:$0xff]
    %v3000 = vld [vmem:[#allocation11 + $0x290] sm:$0xff]
    %v3001 = vld [vmem:[#allocation11 + $0x298] sm:$0xff]
    %v3002 = vld [vmem:[#allocation11 + $0x2a0] sm:$0xff]
    %v3003 = vld [vmem:[#allocation11 + $0x2a8] sm:$0xff]
    %v3004 = vld [vmem:[#allocation11 + $0x2b0] sm:$0xff]
    %v3005 = vld [vmem:[#allocation11 + $0x2b8] sm:$0xff]
    %v3006 = vld [vmem:[#allocation11 + $0x2c0] sm:$0xff]
    %v3007 = vld [vmem:[#allocation11 + $0x2c8] sm:$0xff]
    %v3008 = vld [vmem:[#allocation11 + $0x2d0] sm:$0xff]
    %v3009 = vld [vmem:[#allocation11 + $0x2d8] sm:$0xff]
    %v3010 = vld [vmem:[#allocation11 + $0x2e0] sm:$0xff]
    %v3011 = vld [vmem:[#allocation11 + $0x2e8] sm:$0xff]
    %v3012 = vld [vmem:[#allocation11 + $0x2f0] sm:$0xff]
    %v3013 = vld [vmem:[#allocation11 + $0x2f8] sm:$0xff]
    %v3014 = vld [vmem:[%s10] sm:$0x3f]
    %v3016 = vlaneseq
    %v3017 = vshrl.u32 %v3016, 7
    %v3018 = vsub.s32 0, %v3017
    %v3019 = vrot.slane %v3014, %v3018
    %v3020 = vlaneseq
    %v3021 = vshrl.u32 %v3020, 7
    %v3022 = vsub.s32 1, %v3021
    %v3023 = vrot.slane %v3014, %v3022
    %v3024 = vlaneseq
    %v3025 = vshrl.u32 %v3024, 7
    %v3026 = vsub.s32 2, %v3025
    %v3027 = vrot.slane %v3014, %v3026
    %v3028 = vlaneseq
    %v3029 = vshrl.u32 %v3028, 7
    %v3030 = vsub.s32 3, %v3029
    %v3031 = vrot.slane %v3014, %v3030
    %v3032 = vlaneseq
    %v3033 = vshrl.u32 %v3032, 7
    %v3034 = vsub.s32 4, %v3033
    %v3035 = vrot.slane %v3014, %v3034
    %v3036 = vlaneseq
    %v3037 = vshrl.u32 %v3036, 7
    %v3038 = vsub.s32 5, %v3037
    %v3039 = vrot.slane %v3014, %v3038
    %v3142 = vunpack.c.l.b16 %v2918
    %v3143 = vunpack.c.h.b16 %v2918
    %v3144 = vunpack.c.l.b16 %v2919
    %v3145 = vunpack.c.h.b16 %v2919
    %v3146 = vunpack.c.l.b16 %v2920
    %v3147 = vunpack.c.h.b16 %v2920
    %v3148 = vunpack.c.l.b16 %v2921
    %v3149 = vunpack.c.h.b16 %v2921
    %v3150 = vunpack.c.l.b16 %v2922
    %v3151 = vunpack.c.h.b16 %v2922
    %v3152 = vunpack.c.l.b16 %v2923
    %v3153 = vunpack.c.h.b16 %v2923
    %v3154 = vunpack.c.l.b16 %v2924
    %v3155 = vunpack.c.h.b16 %v2924
    %v3156 = vunpack.c.l.b16 %v2925
    %v3157 = vunpack.c.h.b16 %v2925
    %v3158 = vunpack.c.l.b16 %v2926
    %v3159 = vunpack.c.h.b16 %v2926
    %v3160 = vunpack.c.l.b16 %v2927
    %v3161 = vunpack.c.h.b16 %v2927
    %v3162 = vunpack.c.l.b16 %v2928
    %v3163 = vunpack.c.h.b16 %v2928
    %v3164 = vunpack.c.l.b16 %v2929
    %v3165 = vunpack.c.h.b16 %v2929
    %v3166 = vunpack.c.l.b16 %v2930
    %v3167 = vunpack.c.h.b16 %v2930
    %v3168 = vunpack.c.l.b16 %v2931
    %v3169 = vunpack.c.h.b16 %v2931
    %v3170 = vunpack.c.l.b16 %v2932
    %v3171 = vunpack.c.h.b16 %v2932
    %v3172 = vunpack.c.l.b16 %v2933
    %v3173 = vunpack.c.h.b16 %v2933
    %v3174 = vunpack.c.l.b16 %v2934
    %v3175 = vunpack.c.h.b16 %v2934
    %v3176 = vunpack.c.l.b16 %v2935
    %v3177 = vunpack.c.h.b16 %v2935
    %v3178 = vunpack.c.l.b16 %v2936
    %v3179 = vunpack.c.h.b16 %v2936
    %v3180 = vunpack.c.l.b16 %v2937
    %v3181 = vunpack.c.h.b16 %v2937
    %v3182 = vunpack.c.l.b16 %v2938
    %v3183 = vunpack.c.h.b16 %v2938
    %v3184 = vunpack.c.l.b16 %v2939
    %v3185 = vunpack.c.h.b16 %v2939
    %v3186 = vunpack.c.l.b16 %v2940
    %v3187 = vunpack.c.h.b16 %v2940
    %v3188 = vunpack.c.l.b16 %v2941
    %v3189 = vunpack.c.h.b16 %v2941
    %v3190 = vunpack.c.l.b16 %v2942
    %v3191 = vunpack.c.h.b16 %v2942
    %v3192 = vunpack.c.l.b16 %v2943
    %v3193 = vunpack.c.h.b16 %v2943
    %v3194 = vunpack.c.l.b16 %v2944
    %v3195 = vunpack.c.h.b16 %v2944
    %v3196 = vunpack.c.l.b16 %v2945
    %v3197 = vunpack.c.h.b16 %v2945
    %v3198 = vunpack.c.l.b16 %v2946
    %v3199 = vunpack.c.h.b16 %v2946
    %v3200 = vunpack.c.l.b16 %v2947
    %v3201 = vunpack.c.h.b16 %v2947
    %v3202 = vunpack.c.l.b16 %v2948
    %v3203 = vunpack.c.h.b16 %v2948
    %v3204 = vunpack.c.l.b16 %v2949
    %v3205 = vunpack.c.h.b16 %v2949
    %v3206 = vunpack.c.l.b16 %v2950
    %v3207 = vunpack.c.h.b16 %v2950
    %v3208 = vunpack.c.l.b16 %v2951
    %v3209 = vunpack.c.h.b16 %v2951
    %v3210 = vunpack.c.l.b16 %v2952
    %v3211 = vunpack.c.h.b16 %v2952
    %v3212 = vunpack.c.l.b16 %v2953
    %v3213 = vunpack.c.h.b16 %v2953
    %v3214 = vunpack.c.l.b16 %v2954
    %v3215 = vunpack.c.h.b16 %v2954
    %v3216 = vunpack.c.l.b16 %v2955
    %v3217 = vunpack.c.h.b16 %v2955
    %v3218 = vunpack.c.l.b16 %v2956
    %v3219 = vunpack.c.h.b16 %v2956
    %v3220 = vunpack.c.l.b16 %v2957
    %v3221 = vunpack.c.h.b16 %v2957
    %v3222 = vunpack.c.l.b16 %v2958
    %v3223 = vunpack.c.h.b16 %v2958
    %v3224 = vunpack.c.l.b16 %v2959
    %v3225 = vunpack.c.h.b16 %v2959
    %v3226 = vunpack.c.l.b16 %v2960
    %v3227 = vunpack.c.h.b16 %v2960
    %v3228 = vunpack.c.l.b16 %v2961
    %v3229 = vunpack.c.h.b16 %v2961
    %v3230 = vunpack.c.l.b16 %v2962
    %v3231 = vunpack.c.h.b16 %v2962
    %v3232 = vunpack.c.l.b16 %v2963
    %v3233 = vunpack.c.h.b16 %v2963
    %v3234 = vunpack.c.l.b16 %v2964
    %v3235 = vunpack.c.h.b16 %v2964
    %v3236 = vunpack.c.l.b16 %v2965
    %v3237 = vunpack.c.h.b16 %v2965
    %v3238 = vunpack.c.l.b16 %v2966
    %v3239 = vunpack.c.h.b16 %v2966
    %v3240 = vunpack.c.l.b16 %v2967
    %v3241 = vunpack.c.h.b16 %v2967
    %v3242 = vunpack.c.l.b16 %v2968
    %v3243 = vunpack.c.h.b16 %v2968
    %v3244 = vunpack.c.l.b16 %v2969
    %v3245 = vunpack.c.h.b16 %v2969
    %v3246 = vunpack.c.l.b16 %v2970
    %v3247 = vunpack.c.h.b16 %v2970
    %v3248 = vunpack.c.l.b16 %v2971
    %v3249 = vunpack.c.h.b16 %v2971
    %v3250 = vunpack.c.l.b16 %v2972
    %v3251 = vunpack.c.h.b16 %v2972
    %v3252 = vunpack.c.l.b16 %v2973
    %v3253 = vunpack.c.h.b16 %v2973
    %v3254 = vunpack.c.l.b16 %v2974
    %v3255 = vunpack.c.h.b16 %v2974
    %v3256 = vunpack.c.l.b16 %v2975
    %v3257 = vunpack.c.h.b16 %v2975
    %v3258 = vunpack.c.l.b16 %v2976
    %v3259 = vunpack.c.h.b16 %v2976
    %v3260 = vunpack.c.l.b16 %v2977
    %v3261 = vunpack.c.h.b16 %v2977
    %v3262 = vunpack.c.l.b16 %v2978
    %v3263 = vunpack.c.h.b16 %v2978
    %v3264 = vunpack.c.l.b16 %v2979
    %v3265 = vunpack.c.h.b16 %v2979
    %v3266 = vunpack.c.l.b16 %v2980
    %v3267 = vunpack.c.h.b16 %v2980
    %v3268 = vunpack.c.l.b16 %v2981
    %v3269 = vunpack.c.h.b16 %v2981
    %v3270 = vunpack.c.l.b16 %v2982
    %v3271 = vunpack.c.h.b16 %v2982
    %v3272 = vunpack.c.l.b16 %v2983
    %v3273 = vunpack.c.h.b16 %v2983
    %v3274 = vunpack.c.l.b16 %v2984
    %v3275 = vunpack.c.h.b16 %v2984
    %v3276 = vunpack.c.l.b16 %v2985
    %v3277 = vunpack.c.h.b16 %v2985
    %v3278 = vunpack.c.l.b16 %v2986
    %v3279 = vunpack.c.h.b16 %v2986
    %v3280 = vunpack.c.l.b16 %v2987
    %v3281 = vunpack.c.h.b16 %v2987
    %v3282 = vunpack.c.l.b16 %v2988
    %v3283 = vunpack.c.h.b16 %v2988
    %v3284 = vunpack.c.l.b16 %v2989
    %v3285 = vunpack.c.h.b16 %v2989
    %v3286 = vunpack.c.l.b16 %v2990
    %v3287 = vunpack.c.h.b16 %v2990
    %v3288 = vunpack.c.l.b16 %v2991
    %v3289 = vunpack.c.h.b16 %v2991
    %v3290 = vunpack.c.l.b16 %v2992
    %v3291 = vunpack.c.h.b16 %v2992
    %v3292 = vunpack.c.l.b16 %v2993
    %v3293 = vunpack.c.h.b16 %v2993
    %v3294 = vunpack.c.l.b16 %v2994
    %v3295 = vunpack.c.h.b16 %v2994
    %v3296 = vunpack.c.l.b16 %v2995
    %v3297 = vunpack.c.h.b16 %v2995
    %v3298 = vunpack.c.l.b16 %v2996
    %v3299 = vunpack.c.h.b16 %v2996
    %v3300 = vunpack.c.l.b16 %v2997
    %v3301 = vunpack.c.h.b16 %v2997
    %v3302 = vunpack.c.l.b16 %v2998
    %v3303 = vunpack.c.h.b16 %v2998
    %v3304 = vunpack.c.l.b16 %v2999
    %v3305 = vunpack.c.h.b16 %v2999
    %v3306 = vunpack.c.l.b16 %v3000
    %v3307 = vunpack.c.h.b16 %v3000
    %v3308 = vunpack.c.l.b16 %v3001
    %v3309 = vunpack.c.h.b16 %v3001
    %v3310 = vunpack.c.l.b16 %v3002
    %v3311 = vunpack.c.h.b16 %v3002
    %v3312 = vunpack.c.l.b16 %v3003
    %v3313 = vunpack.c.h.b16 %v3003
    %v3314 = vunpack.c.l.b16 %v3004
    %v3315 = vunpack.c.h.b16 %v3004
    %v3316 = vunpack.c.l.b16 %v3005
    %v3317 = vunpack.c.h.b16 %v3005
    %v3318 = vunpack.c.l.b16 %v3006
    %v3319 = vunpack.c.h.b16 %v3006
    %v3320 = vunpack.c.l.b16 %v3007
    %v3321 = vunpack.c.h.b16 %v3007
    %v3322 = vunpack.c.l.b16 %v3008
    %v3323 = vunpack.c.h.b16 %v3008
    %v3324 = vunpack.c.l.b16 %v3009
    %v3325 = vunpack.c.h.b16 %v3009
    %v3326 = vunpack.c.l.b16 %v3010
    %v3327 = vunpack.c.h.b16 %v3010
    %v3328 = vunpack.c.l.b16 %v3011
    %v3329 = vunpack.c.h.b16 %v3011
    %v3330 = vunpack.c.l.b16 %v3012
    %v3331 = vunpack.c.h.b16 %v3012
    %v3332 = vunpack.c.l.b16 %v3013
    %v3333 = vunpack.c.h.b16 %v3013
    %v3334 = vpack.c.b16 %v3148, %v3142
    %v3335 = vpack.c.b16 %v3149, %v3143
    %v3336 = vpack.c.b16 %v3150, %v3144
    %v3337 = vpack.c.b16 %v3151, %v3145
    %v3338 = vpack.c.b16 %v3152, %v3146
    %v3339 = vpack.c.b16 %v3153, %v3147
    %v3340 = vpack.c.b16 %v3160, %v3154
    %v3341 = vpack.c.b16 %v3161, %v3155
    %v3342 = vpack.c.b16 %v3162, %v3156
    %v3343 = vpack.c.b16 %v3163, %v3157
    %v3344 = vpack.c.b16 %v3164, %v3158
    %v3345 = vpack.c.b16 %v3165, %v3159
    %v3346 = vpack.c.b16 %v3172, %v3166
    %v3347 = vpack.c.b16 %v3173, %v3167
    %v3348 = vpack.c.b16 %v3174, %v3168
    %v3349 = vpack.c.b16 %v3175, %v3169
    %v3350 = vpack.c.b16 %v3176, %v3170
    %v3351 = vpack.c.b16 %v3177, %v3171
    %v3352 = vpack.c.b16 %v3184, %v3178
    %v3353 = vpack.c.b16 %v3185, %v3179
    %v3354 = vpack.c.b16 %v3186, %v3180
    %v3355 = vpack.c.b16 %v3187, %v3181
    %v3356 = vpack.c.b16 %v3188, %v3182
    %v3357 = vpack.c.b16 %v3189, %v3183
    %v3358 = vpack.c.b16 %v3196, %v3190
    %v3359 = vpack.c.b16 %v3197, %v3191
    %v3360 = vpack.c.b16 %v3198, %v3192
    %v3361 = vpack.c.b16 %v3199, %v3193
    %v3362 = vpack.c.b16 %v3200, %v3194
    %v3363 = vpack.c.b16 %v3201, %v3195
    %v3364 = vpack.c.b16 %v3208, %v3202
    %v3365 = vpack.c.b16 %v3209, %v3203
    %v3366 = vpack.c.b16 %v3210, %v3204
    %v3367 = vpack.c.b16 %v3211, %v3205
    %v3368 = vpack.c.b16 %v3212, %v3206
    %v3369 = vpack.c.b16 %v3213, %v3207
    %v3370 = vpack.c.b16 %v3220, %v3214
    %v3371 = vpack.c.b16 %v3221, %v3215
    %v3372 = vpack.c.b16 %v3222, %v3216
    %v3373 = vpack.c.b16 %v3223, %v3217
    %v3374 = vpack.c.b16 %v3224, %v3218
    %v3375 = vpack.c.b16 %v3225, %v3219
    %v3376 = vpack.c.b16 %v3232, %v3226
    %v3377 = vpack.c.b16 %v3233, %v3227
    %v3378 = vpack.c.b16 %v3234, %v3228
    %v3379 = vpack.c.b16 %v3235, %v3229
    %v3380 = vpack.c.b16 %v3236, %v3230
    %v3381 = vpack.c.b16 %v3237, %v3231
    %v3382 = vpack.c.b16 %v3244, %v3238
    %v3383 = vpack.c.b16 %v3245, %v3239
    %v3384 = vpack.c.b16 %v3246, %v3240
    %v3385 = vpack.c.b16 %v3247, %v3241
    %v3386 = vpack.c.b16 %v3248, %v3242
    %v3387 = vpack.c.b16 %v3249, %v3243
    %v3388 = vpack.c.b16 %v3256, %v3250
    %v3389 = vpack.c.b16 %v3257, %v3251
    %v3390 = vpack.c.b16 %v3258, %v3252
    %v3391 = vpack.c.b16 %v3259, %v3253
    %v3392 = vpack.c.b16 %v3260, %v3254
    %v3393 = vpack.c.b16 %v3261, %v3255
    %v3394 = vpack.c.b16 %v3268, %v3262
    %v3395 = vpack.c.b16 %v3269, %v3263
    %v3396 = vpack.c.b16 %v3270, %v3264
    %v3397 = vpack.c.b16 %v3271, %v3265
    %v3398 = vpack.c.b16 %v3272, %v3266
    %v3399 = vpack.c.b16 %v3273, %v3267
    %v3400 = vpack.c.b16 %v3280, %v3274
    %v3401 = vpack.c.b16 %v3281, %v3275
    %v3402 = vpack.c.b16 %v3282, %v3276
    %v3403 = vpack.c.b16 %v3283, %v3277
    %v3404 = vpack.c.b16 %v3284, %v3278
    %v3405 = vpack.c.b16 %v3285, %v3279
    %v3406 = vpack.c.b16 %v3292, %v3286
    %v3407 = vpack.c.b16 %v3293, %v3287
    %v3408 = vpack.c.b16 %v3294, %v3288
    %v3409 = vpack.c.b16 %v3295, %v3289
    %v3410 = vpack.c.b16 %v3296, %v3290
    %v3411 = vpack.c.b16 %v3297, %v3291
    %v3412 = vpack.c.b16 %v3304, %v3298
    %v3413 = vpack.c.b16 %v3305, %v3299
    %v3414 = vpack.c.b16 %v3306, %v3300
    %v3415 = vpack.c.b16 %v3307, %v3301
    %v3416 = vpack.c.b16 %v3308, %v3302
    %v3417 = vpack.c.b16 %v3309, %v3303
    %v3418 = vpack.c.b16 %v3316, %v3310
    %v3419 = vpack.c.b16 %v3317, %v3311
    %v3420 = vpack.c.b16 %v3318, %v3312
    %v3421 = vpack.c.b16 %v3319, %v3313
    %v3422 = vpack.c.b16 %v3320, %v3314
    %v3423 = vpack.c.b16 %v3321, %v3315
    %v3424 = vpack.c.b16 %v3328, %v3322
    %v3425 = vpack.c.b16 %v3329, %v3323
    %v3426 = vpack.c.b16 %v3330, %v3324
    %v3427 = vpack.c.b16 %v3331, %v3325
    %v3428 = vpack.c.b16 %v3332, %v3326
    %v3429 = vpack.c.b16 %v3333, %v3327
    %3526 = vmatprep.subr.bf16.mxu0 %v3335
    %3527 = vmatpush1.bf16.msra.mxu0 %v3334
    %3528 = vmatprep.subr.bf16.mxu0 %v3341
    %3529 = vmatpush1.bf16.msra.mxu0 %v3340
    %3530 = vmatprep.subr.bf16.mxu0 %v3347
    %3531 = vmatpush1.bf16.msra.mxu0 %v3346
    %3532 = vmatprep.subr.bf16.mxu0 %v3353
    %3533 = vmatpush1.bf16.msra.mxu0 %v3352
    %3534 = vmatprep.subr.bf16.mxu0 %v3359
    %3535 = vmatpush1.bf16.msra.mxu0 %v3358
    %3536 = vmatprep.subr.bf16.mxu0 %v3365
    %3537 = vmatpush1.bf16.msra.mxu0 %v3364
    %3538 = vmatprep.subr.bf16.mxu0 %v3371
    %3539 = vmatpush1.bf16.msra.mxu0 %v3370
    %3540 = vmatprep.subr.bf16.mxu0 %v3377
    %3541 = vmatpush1.bf16.msra.mxu0 %v3376
    %3542 = vmatprep.subr.bf16.mxu0 %v3383
    %3543 = vmatpush1.bf16.msra.mxu0 %v3382
    %3544 = vmatprep.subr.bf16.mxu0 %v3389
    %3545 = vmatpush1.bf16.msra.mxu0 %v3388
    %3546 = vmatprep.subr.bf16.mxu0 %v3395
    %3547 = vmatpush1.bf16.msra.mxu0 %v3394
    %3548 = vmatprep.subr.bf16.mxu0 %v3401
    %3549 = vmatpush1.bf16.msra.mxu0 %v3400
    %3550 = vmatprep.subr.bf16.mxu0 %v3407
    %3551 = vmatpush1.bf16.msra.mxu0 %v3406
    %3552 = vmatprep.subr.bf16.mxu0 %v3413
    %3553 = vmatpush1.bf16.msra.mxu0 %v3412
    %3554 = vmatprep.subr.bf16.mxu0 %v3419
    %3555 = vmatpush1.bf16.msra.mxu0 %v3418
    %3556 = vmatprep.subr.bf16.mxu0 %v3425
    %3557 = vmatpush1.bf16.msra.mxu0 %v3424
    %3558 = vmatprep.mubr.bf16.mxu0 %v2917
    %3559 = vmatmul.mubr.bf16.gmra.mrb[0].mxu0 %v2916
    %v3560 = vpop.f32.mrb[0].mxu0
    %v3561 = vadd.f32 %v3019, %v3560
    %v3562 = vpop.f32.mrb[0].mxu0
    %v3563 = vadd.f32 %v3023, %v3562
    %v3564 = vpop.f32.mrb[0].mxu0
    %v3565 = vpop.f32.mrb[0].mxu0
    %3566 = vdwg.mxu0
    %3567 = vmatprep.subr.bf16.mxu0 %v3337
    %3568 = vmatpush1.bf16.msra.mxu0 %v3336
    %3569 = vmatprep.subr.bf16.mxu0 %v3343
    %3570 = vmatpush1.bf16.msra.mxu0 %v3342
    %3571 = vmatprep.subr.bf16.mxu0 %v3349
    %3572 = vmatpush1.bf16.msra.mxu0 %v3348
    %3573 = vmatprep.subr.bf16.mxu0 %v3355
    %3574 = vmatpush1.bf16.msra.mxu0 %v3354
    %3575 = vmatprep.subr.bf16.mxu0 %v3361
    %3576 = vmatpush1.bf16.msra.mxu0 %v3360
    %3577 = vmatprep.subr.bf16.mxu0 %v3367
    %3578 = vmatpush1.bf16.msra.mxu0 %v3366
    %3579 = vmatprep.subr.bf16.mxu0 %v3373
    %3580 = vmatpush1.bf16.msra.mxu0 %v3372
    %3581 = vmatprep.subr.bf16.mxu0 %v3379
    %3582 = vmatpush1.bf16.msra.mxu0 %v3378
    %3583 = vmatprep.subr.bf16.mxu0 %v3385
    %3584 = vmatpush1.bf16.msra.mxu0 %v3384
    %3585 = vmatprep.subr.bf16.mxu0 %v3391
    %3586 = vmatpush1.bf16.msra.mxu0 %v3390
    %3587 = vmatprep.subr.bf16.mxu0 %v3397
    %3588 = vmatpush1.bf16.msra.mxu0 %v3396
    %3589 = vmatprep.subr.bf16.mxu0 %v3403
    %3590 = vmatpush1.bf16.msra.mxu0 %v3402
    %3591 = vmatprep.subr.bf16.mxu0 %v3409
    %3592 = vmatpush1.bf16.msra.mxu0 %v3408
    %3593 = vmatprep.subr.bf16.mxu0 %v3415
    %3594 = vmatpush1.bf16.msra.mxu0 %v3414
    %3595 = vmatprep.subr.bf16.mxu0 %v3421
    %3596 = vmatpush1.bf16.msra.mxu0 %v3420
    %3597 = vmatprep.subr.bf16.mxu0 %v3427
    %3598 = vmatpush1.bf16.msra.mxu0 %v3426
    %3599 = vmatprep.mubr.bf16.mxu0 %v2917
    %3600 = vmatmul.mubr.bf16.gmra.mrb[0].mxu0 %v2916
    %v3601 = vpop.f32.mrb[0].mxu0
    %v3602 = vadd.f32 %v3027, %v3601
    %v3603 = vpop.f32.mrb[0].mxu0
    %v3604 = vadd.f32 %v3031, %v3603
    %v3605 = vpop.f32.mrb[0].mxu0
    %v3606 = vpop.f32.mrb[0].mxu0
    %3607 = vdwg.mxu0
    %3608 = vmatprep.subr.bf16.mxu0 %v3339
    %3609 = vmatpush1.bf16.msra.mxu0 %v3338
    %3610 = vmatprep.subr.bf16.mxu0 %v3345
    %3611 = vmatpush1.bf16.msra.mxu0 %v3344
    %3612 = vmatprep.subr.bf16.mxu0 %v3351
    %3613 = vmatpush1.bf16.msra.mxu0 %v3350
    %3614 = vmatprep.subr.bf16.mxu0 %v3357
    %3615 = vmatpush1.bf16.msra.mxu0 %v3356
    %3616 = vmatprep.subr.bf16.mxu0 %v3363
    %3617 = vmatpush1.bf16.msra.mxu0 %v3362
    %3618 = vmatprep.subr.bf16.mxu0 %v3369
    %3619 = vmatpush1.bf16.msra.mxu0 %v3368
    %3620 = vmatprep.subr.bf16.mxu0 %v3375
    %3621 = vmatpush1.bf16.msra.mxu0 %v3374
    %3622 = vmatprep.subr.bf16.mxu0 %v3381
    %3623 = vmatpush1.bf16.msra.mxu0 %v3380
    %3624 = vmatprep.subr.bf16.mxu0 %v3387
    %3625 = vmatpush1.bf16.msra.mxu0 %v3386
    %3626 = vmatprep.subr.bf16.mxu0 %v3393
    %3627 = vmatpush1.bf16.msra.mxu0 %v3392
    %3628 = vmatprep.subr.bf16.mxu0 %v3399
    %3629 = vmatpush1.bf16.msra.mxu0 %v3398
    %3630 = vmatprep.subr.bf16.mxu0 %v3405
    %3631 = vmatpush1.bf16.msra.mxu0 %v3404
    %3632 = vmatprep.subr.bf16.mxu0 %v3411
    %3633 = vmatpush1.bf16.msra.mxu0 %v3410
    %3634 = vmatprep.subr.bf16.mxu0 %v3417
    %3635 = vmatpush1.bf16.msra.mxu0 %v3416
    %3636 = vmatprep.subr.bf16.mxu0 %v3423
    %3637 = vmatpush1.bf16.msra.mxu0 %v3422
    %3638 = vmatprep.subr.bf16.mxu0 %v3429
    %3639 = vmatpush1.bf16.msra.mxu0 %v3428
    %3640 = vmatprep.mubr.bf16.mxu0 %v2917
    %3641 = vmatmul.mubr.bf16.gmra.mrb[0].mxu0 %v2916
    %v3642 = vpop.f32.mrb[0].mxu0
    %v3643 = vadd.f32 %v3035, %v3642
    %v3644 = vpop.f32.mrb[0].mxu0
    %v3645 = vadd.f32 %v3039, %v3644
    %v3646 = vpop.f32.mrb[0].mxu0
    %v3647 = vpop.f32.mrb[0].mxu0
    %3648 = vdwg.mxu0
    %v3649 = vmax.f32 %v3561, 0.0
    %v3650 = vmax.f32 %v3563, 0.0
    %v3651 = vmax.f32 %v3602, 0.0
    %v3652 = vmax.f32 %v3604, 0.0
    %v3653 = vmax.f32 %v3643, 0.0
    %v3654 = vmax.f32 %v3645, 0.0
    %v3655 = vpack.c.bf16 %v3649, %v3649
    %v3656 = vpack.c.bf16 %v3650, %v3650
    %v3657 = vpack.c.bf16 %v3651, %v3651
    %v3658 = vpack.c.bf16 %v3652, %v3652
    %v3659 = vpack.c.bf16 %v3653, %v3653
    %v3660 = vpack.c.bf16 %v3654, %v3654
    %v3661 = vld [vmem:[#allocation13] sm:$0xf]
    %v3662 = vld [vmem:[#allocation13 + $0x4] sm:$0xf]
    %v3663 = vld [vmem:[#allocation13 + $0x8] sm:$0xf]
    %v3664 = vld [vmem:[#allocation13 + $0xc] sm:$0xf]
    %v3665 = vld [vmem:[#allocation13 + $0x10] sm:$0xf]
    %v3666 = vld [vmem:[#allocation13 + $0x14] sm:$0xf]
    %v3667 = vld [vmem:[#allocation13 + $0x18] sm:$0xf]
    %v3668 = vld [vmem:[#allocation13 + $0x1c] sm:$0xf]
    %v3669 = vld [vmem:[#allocation13 + $0x20] sm:$0xf]
    %v3670 = vld [vmem:[#allocation13 + $0x24] sm:$0xf]
    %v3671 = vld [vmem:[#allocation13 + $0x28] sm:$0xf]
    %v3672 = vld [vmem:[#allocation13 + $0x2c] sm:$0xf]
    %v3673 = vld [vmem:[#allocation13 + $0x30] sm:$0xf]
    %v3674 = vld [vmem:[#allocation13 + $0x34] sm:$0xf]
    %v3675 = vld [vmem:[#allocation13 + $0x38] sm:$0xf]
    %v3676 = vld [vmem:[#allocation13 + $0x3c] sm:$0xf]
    %v3677 = vld [vmem:[#allocation13 + $0x40] sm:$0xf]
    %v3678 = vld [vmem:[#allocation13 + $0x44] sm:$0xf]
    %v3679 = vld [vmem:[#allocation13 + $0x48] sm:$0xf]
    %v3680 = vld [vmem:[#allocation13 + $0x4c] sm:$0xf]
    %v3681 = vld [vmem:[#allocation13 + $0x50] sm:$0xf]
    %v3682 = vld [vmem:[#allocation13 + $0x54] sm:$0xf]
    %v3683 = vld [vmem:[#allocation13 + $0x58] sm:$0xf]
    %v3684 = vld [vmem:[#allocation13 + $0x5c] sm:$0xf]
    %v3685 = vld [vmem:[#allocation13 + $0x60] sm:$0xf]
    %v3686 = vld [vmem:[#allocation13 + $0x64] sm:$0xf]
    %v3687 = vld [vmem:[#allocation13 + $0x68] sm:$0xf]
    %v3688 = vld [vmem:[#allocation13 + $0x6c] sm:$0xf]
    %v3689 = vld [vmem:[#allocation13 + $0x70] sm:$0xf]
    %v3690 = vld [vmem:[#allocation13 + $0x74] sm:$0xf]
    %v3691 = vld [vmem:[#allocation13 + $0x78] sm:$0xf]
    %v3692 = vld [vmem:[#allocation13 + $0x7c] sm:$0xf]
    %v3693 = vld [vmem:[#allocation13 + $0x80] sm:$0xf]
    %v3694 = vld [vmem:[#allocation13 + $0x84] sm:$0xf]
    %v3695 = vld [vmem:[#allocation13 + $0x88] sm:$0xf]
    %v3696 = vld [vmem:[#allocation13 + $0x8c] sm:$0xf]
    %v3697 = vld [vmem:[#allocation13 + $0x90] sm:$0xf]
    %v3698 = vld [vmem:[#allocation13 + $0x94] sm:$0xf]
    %v3699 = vld [vmem:[#allocation13 + $0x98] sm:$0xf]
    %v3700 = vld [vmem:[#allocation13 + $0x9c] sm:$0xf]
    %v3701 = vld [vmem:[#allocation13 + $0xa0] sm:$0xf]
    %v3702 = vld [vmem:[#allocation13 + $0xa4] sm:$0xf]
    %v3703 = vld [vmem:[#allocation13 + $0xa8] sm:$0xf]
    %v3704 = vld [vmem:[#allocation13 + $0xac] sm:$0xf]
    %v3705 = vld [vmem:[#allocation13 + $0xb0] sm:$0xf]
    %v3706 = vld [vmem:[#allocation13 + $0xb4] sm:$0xf]
    %v3707 = vld [vmem:[#allocation13 + $0xb8] sm:$0xf]
    %v3708 = vld [vmem:[#allocation13 + $0xbc] sm:$0xf]
    %v3709 = vld [vmem:[#allocation13 + $0xc0] sm:$0xf]
    %v3710 = vld [vmem:[#allocation13 + $0xc4] sm:$0xf]
    %v3711 = vld [vmem:[#allocation13 + $0xc8] sm:$0xf]
    %v3712 = vld [vmem:[#allocation13 + $0xcc] sm:$0xf]
    %v3713 = vld [vmem:[#allocation13 + $0xd0] sm:$0xf]
    %v3714 = vld [vmem:[#allocation13 + $0xd4] sm:$0xf]
    %v3715 = vld [vmem:[#allocation13 + $0xd8] sm:$0xf]
    %v3716 = vld [vmem:[#allocation13 + $0xdc] sm:$0xf]
    %v3717 = vld [vmem:[#allocation13 + $0xe0] sm:$0xf]
    %v3718 = vld [vmem:[#allocation13 + $0xe4] sm:$0xf]
    %v3719 = vld [vmem:[#allocation13 + $0xe8] sm:$0xf]
    %v3720 = vld [vmem:[#allocation13 + $0xec] sm:$0xf]
    %v3721 = vld [vmem:[#allocation13 + $0xf0] sm:$0xf]
    %v3722 = vld [vmem:[#allocation13 + $0xf4] sm:$0xf]
    %v3723 = vld [vmem:[#allocation13 + $0xf8] sm:$0xf]
    %v3724 = vld [vmem:[#allocation13 + $0xfc] sm:$0xf]
    %v3725 = vld [vmem:[#allocation13 + $0x100] sm:$0xf]
    %v3726 = vld [vmem:[#allocation13 + $0x104] sm:$0xf]
    %v3727 = vld [vmem:[#allocation13 + $0x108] sm:$0xf]
    %v3728 = vld [vmem:[#allocation13 + $0x10c] sm:$0xf]
    %v3729 = vld [vmem:[#allocation13 + $0x110] sm:$0xf]
    %v3730 = vld [vmem:[#allocation13 + $0x114] sm:$0xf]
    %v3731 = vld [vmem:[#allocation13 + $0x118] sm:$0xf]
    %v3732 = vld [vmem:[#allocation13 + $0x11c] sm:$0xf]
    %v3733 = vld [vmem:[#allocation13 + $0x120] sm:$0xf]
    %v3734 = vld [vmem:[#allocation13 + $0x124] sm:$0xf]
    %v3735 = vld [vmem:[#allocation13 + $0x128] sm:$0xf]
    %v3736 = vld [vmem:[#allocation13 + $0x12c] sm:$0xf]
    %v3737 = vld [vmem:[#allocation13 + $0x130] sm:$0xf]
    %v3738 = vld [vmem:[#allocation13 + $0x134] sm:$0xf]
    %v3739 = vld [vmem:[#allocation13 + $0x138] sm:$0xf]
    %v3740 = vld [vmem:[#allocation13 + $0x13c] sm:$0xf]
    %v3741 = vld [vmem:[#allocation13 + $0x140] sm:$0xf]
    %v3742 = vld [vmem:[#allocation13 + $0x144] sm:$0xf]
    %v3743 = vld [vmem:[#allocation13 + $0x148] sm:$0xf]
    %v3744 = vld [vmem:[#allocation13 + $0x14c] sm:$0xf]
    %v3745 = vld [vmem:[#allocation13 + $0x150] sm:$0xf]
    %v3746 = vld [vmem:[#allocation13 + $0x154] sm:$0xf]
    %v3747 = vld [vmem:[#allocation13 + $0x158] sm:$0xf]
    %v3748 = vld [vmem:[#allocation13 + $0x15c] sm:$0xf]
    %v3749 = vld [vmem:[#allocation13 + $0x160] sm:$0xf]
    %v3750 = vld [vmem:[#allocation13 + $0x164] sm:$0xf]
    %v3751 = vld [vmem:[#allocation13 + $0x168] sm:$0xf]
    %v3752 = vld [vmem:[#allocation13 + $0x16c] sm:$0xf]
    %v3753 = vld [vmem:[#allocation13 + $0x170] sm:$0xf]
    %v3754 = vld [vmem:[#allocation13 + $0x174] sm:$0xf]
    %v3755 = vld [vmem:[#allocation13 + $0x178] sm:$0xf]
    %v3756 = vld [vmem:[#allocation13 + $0x17c] sm:$0xf]
    %v3757 = vld [vmem:[%s12] sm:$0x1]
    %v3759 = vlaneseq
    %v3760 = vshrl.u32 %v3759, 7
    %v3761 = vsub.s32 0, %v3760
    %v3762 = vrot.slane %v3757, %v3761
    %v3860 = vunpack.c.l.b16 %v3661
    %v3861 = vunpack.c.l.b16 %v3662
    %v3862 = vunpack.c.l.b16 %v3663
    %v3863 = vunpack.c.l.b16 %v3664
    %v3864 = vunpack.c.l.b16 %v3665
    %v3865 = vunpack.c.l.b16 %v3666
    %v3866 = vunpack.c.l.b16 %v3667
    %v3867 = vunpack.c.l.b16 %v3668
    %v3868 = vunpack.c.l.b16 %v3669
    %v3869 = vunpack.c.l.b16 %v3670
    %v3870 = vunpack.c.l.b16 %v3671
    %v3871 = vunpack.c.l.b16 %v3672
    %v3872 = vunpack.c.l.b16 %v3673
    %v3873 = vunpack.c.l.b16 %v3674
    %v3874 = vunpack.c.l.b16 %v3675
    %v3875 = vunpack.c.l.b16 %v3676
    %v3876 = vunpack.c.l.b16 %v3677
    %v3877 = vunpack.c.l.b16 %v3678
    %v3878 = vunpack.c.l.b16 %v3679
    %v3879 = vunpack.c.l.b16 %v3680
    %v3880 = vunpack.c.l.b16 %v3681
    %v3881 = vunpack.c.l.b16 %v3682
    %v3882 = vunpack.c.l.b16 %v3683
    %v3883 = vunpack.c.l.b16 %v3684
    %v3884 = vunpack.c.l.b16 %v3685
    %v3885 = vunpack.c.l.b16 %v3686
    %v3886 = vunpack.c.l.b16 %v3687
    %v3887 = vunpack.c.l.b16 %v3688
    %v3888 = vunpack.c.l.b16 %v3689
    %v3889 = vunpack.c.l.b16 %v3690
    %v3890 = vunpack.c.l.b16 %v3691
    %v3891 = vunpack.c.l.b16 %v3692
    %v3892 = vunpack.c.l.b16 %v3693
    %v3893 = vunpack.c.l.b16 %v3694
    %v3894 = vunpack.c.l.b16 %v3695
    %v3895 = vunpack.c.l.b16 %v3696
    %v3896 = vunpack.c.l.b16 %v3697
    %v3897 = vunpack.c.l.b16 %v3698
    %v3898 = vunpack.c.l.b16 %v3699
    %v3899 = vunpack.c.l.b16 %v3700
    %v3900 = vunpack.c.l.b16 %v3701
    %v3901 = vunpack.c.l.b16 %v3702
    %v3902 = vunpack.c.l.b16 %v3703
    %v3903 = vunpack.c.l.b16 %v3704
    %v3904 = vunpack.c.l.b16 %v3705
    %v3905 = vunpack.c.l.b16 %v3706
    %v3906 = vunpack.c.l.b16 %v3707
    %v3907 = vunpack.c.l.b16 %v3708
    %v3908 = vunpack.c.l.b16 %v3709
    %v3909 = vunpack.c.l.b16 %v3710
    %v3910 = vunpack.c.l.b16 %v3711
    %v3911 = vunpack.c.l.b16 %v3712
    %v3912 = vunpack.c.l.b16 %v3713
    %v3913 = vunpack.c.l.b16 %v3714
    %v3914 = vunpack.c.l.b16 %v3715
    %v3915 = vunpack.c.l.b16 %v3716
    %v3916 = vunpack.c.l.b16 %v3717
    %v3917 = vunpack.c.l.b16 %v3718
    %v3918 = vunpack.c.l.b16 %v3719
    %v3919 = vunpack.c.l.b16 %v3720
    %v3920 = vunpack.c.l.b16 %v3721
    %v3921 = vunpack.c.l.b16 %v3722
    %v3922 = vunpack.c.l.b16 %v3723
    %v3923 = vunpack.c.l.b16 %v3724
    %v3924 = vunpack.c.l.b16 %v3725
    %v3925 = vunpack.c.l.b16 %v3726
    %v3926 = vunpack.c.l.b16 %v3727
    %v3927 = vunpack.c.l.b16 %v3728
    %v3928 = vunpack.c.l.b16 %v3729
    %v3929 = vunpack.c.l.b16 %v3730
    %v3930 = vunpack.c.l.b16 %v3731
    %v3931 = vunpack.c.l.b16 %v3732
    %v3932 = vunpack.c.l.b16 %v3733
    %v3933 = vunpack.c.l.b16 %v3734
    %v3934 = vunpack.c.l.b16 %v3735
    %v3935 = vunpack.c.l.b16 %v3736
    %v3936 = vunpack.c.l.b16 %v3737
    %v3937 = vunpack.c.l.b16 %v3738
    %v3938 = vunpack.c.l.b16 %v3739
    %v3939 = vunpack.c.l.b16 %v3740
    %v3940 = vunpack.c.l.b16 %v3741
    %v3941 = vunpack.c.l.b16 %v3742
    %v3942 = vunpack.c.l.b16 %v3743
    %v3943 = vunpack.c.l.b16 %v3744
    %v3944 = vunpack.c.l.b16 %v3745
    %v3945 = vunpack.c.l.b16 %v3746
    %v3946 = vunpack.c.l.b16 %v3747
    %v3947 = vunpack.c.l.b16 %v3748
    %v3948 = vunpack.c.l.b16 %v3749
    %v3949 = vunpack.c.l.b16 %v3750
    %v3950 = vunpack.c.l.b16 %v3751
    %v3951 = vunpack.c.l.b16 %v3752
    %v3952 = vunpack.c.l.b16 %v3753
    %v3953 = vunpack.c.l.b16 %v3754
    %v3954 = vunpack.c.l.b16 %v3755
    %v3955 = vunpack.c.l.b16 %v3756
    %v3956 = vpack.c.b16 %v3861, %v3860
    %v3957 = vpack.c.b16 %v3863, %v3862
    %v3958 = vpack.c.b16 %v3865, %v3864
    %v3959 = vpack.c.b16 %v3867, %v3866
    %v3960 = vpack.c.b16 %v3869, %v3868
    %v3961 = vpack.c.b16 %v3871, %v3870
    %v3962 = vpack.c.b16 %v3873, %v3872
    %v3963 = vpack.c.b16 %v3875, %v3874
    %v3964 = vpack.c.b16 %v3877, %v3876
    %v3965 = vpack.c.b16 %v3879, %v3878
    %v3966 = vpack.c.b16 %v3881, %v3880
    %v3967 = vpack.c.b16 %v3883, %v3882
    %v3968 = vpack.c.b16 %v3885, %v3884
    %v3969 = vpack.c.b16 %v3887, %v3886
    %v3970 = vpack.c.b16 %v3889, %v3888
    %v3971 = vpack.c.b16 %v3891, %v3890
    %v3972 = vpack.c.b16 %v3893, %v3892
    %v3973 = vpack.c.b16 %v3895, %v3894
    %v3974 = vpack.c.b16 %v3897, %v3896
    %v3975 = vpack.c.b16 %v3899, %v3898
    %v3976 = vpack.c.b16 %v3901, %v3900
    %v3977 = vpack.c.b16 %v3903, %v3902
    %v3978 = vpack.c.b16 %v3905, %v3904
    %v3979 = vpack.c.b16 %v3907, %v3906
    %v3980 = vpack.c.b16 %v3909, %v3908
    %v3981 = vpack.c.b16 %v3911, %v3910
    %v3982 = vpack.c.b16 %v3913, %v3912
    %v3983 = vpack.c.b16 %v3915, %v3914
    %v3984 = vpack.c.b16 %v3917, %v3916
    %v3985 = vpack.c.b16 %v3919, %v3918
    %v3986 = vpack.c.b16 %v3921, %v3920
    %v3987 = vpack.c.b16 %v3923, %v3922
    %v3988 = vpack.c.b16 %v3925, %v3924
    %v3989 = vpack.c.b16 %v3927, %v3926
    %v3990 = vpack.c.b16 %v3929, %v3928
    %v3991 = vpack.c.b16 %v3931, %v3930
    %v3992 = vpack.c.b16 %v3933, %v3932
    %v3993 = vpack.c.b16 %v3935, %v3934
    %v3994 = vpack.c.b16 %v3937, %v3936
    %v3995 = vpack.c.b16 %v3939, %v3938
    %v3996 = vpack.c.b16 %v3941, %v3940
    %v3997 = vpack.c.b16 %v3943, %v3942
    %v3998 = vpack.c.b16 %v3945, %v3944
    %v3999 = vpack.c.b16 %v3947, %v3946
    %v4000 = vpack.c.b16 %v3949, %v3948
    %v4001 = vpack.c.b16 %v3951, %v3950
    %v4002 = vpack.c.b16 %v3953, %v3952
    %v4003 = vpack.c.b16 %v3955, %v3954
    %4052 = vmatprep.subr.bf16.mxu0 0
    %4053 = vmatpush1.bf16.msra.mxu0 %v3956
    %4054 = vmatprep.subr.bf16.mxu0 0
    %4055 = vmatpush1.bf16.msra.mxu0 %v3957
    %4056 = vmatprep.subr.bf16.mxu0 0
    %4057 = vmatpush1.bf16.msra.mxu0 %v3958
    %4058 = vmatprep.subr.bf16.mxu0 0
    %4059 = vmatpush1.bf16.msra.mxu0 %v3959
    %4060 = vmatprep.subr.bf16.mxu0 0
    %4061 = vmatpush1.bf16.msra.mxu0 %v3960
    %4062 = vmatprep.subr.bf16.mxu0 0
    %4063 = vmatpush1.bf16.msra.mxu0 %v3961
    %4064 = vmatprep.subr.bf16.mxu0 0
    %4065 = vmatpush1.bf16.msra.mxu0 %v3962
    %4066 = vmatprep.subr.bf16.mxu0 0
    %4067 = vmatpush1.bf16.msra.mxu0 %v3963
    %4068 = vmatprep.subr.bf16.mxu0 0
    %4069 = vmatpush1.bf16.msra.mxu0 %v3964
    %4070 = vmatprep.subr.bf16.mxu0 0
    %4071 = vmatpush1.bf16.msra.mxu0 %v3965
    %4072 = vmatprep.subr.bf16.mxu0 0
    %4073 = vmatpush1.bf16.msra.mxu0 %v3966
    %4074 = vmatprep.subr.bf16.mxu0 0
    %4075 = vmatpush1.bf16.msra.mxu0 %v3967
    %4076 = vmatprep.subr.bf16.mxu0 0
    %4077 = vmatpush1.bf16.msra.mxu0 %v3968
    %4078 = vmatprep.subr.bf16.mxu0 0
    %4079 = vmatpush1.bf16.msra.mxu0 %v3969
    %4080 = vmatprep.subr.bf16.mxu0 0
    %4081 = vmatpush1.bf16.msra.mxu0 %v3970
    %4082 = vmatprep.subr.bf16.mxu0 0
    %4083 = vmatpush1.bf16.msra.mxu0 %v3971
    %4084 = vmatprep.mubr.bf16.mxu0 %v3656
    %4085 = vmatmul.mubr.bf16.gmra.mrb[0].mxu0 %v3655
    %v4086 = vpop.f32.mrb[0].mxu0
    %v4087 = vadd.f32 %v3762, %v4086
    %v4088 = vpop.f32.mrb[0].mxu0
    %v4089 = vpop.f32.mrb[0].mxu0
    %v4090 = vpop.f32.mrb[0].mxu0
    %4091 = vdwg.mxu0
    %4092 = vmatprep.subr.bf16.mxu0 0
    %4093 = vmatpush1.bf16.msra.mxu0 %v3972
    %4094 = vmatprep.subr.bf16.mxu0 0
    %4095 = vmatpush1.bf16.msra.mxu0 %v3973
    %4096 = vmatprep.subr.bf16.mxu0 0
    %4097 = vmatpush1.bf16.msra.mxu0 %v3974
    %4098 = vmatprep.subr.bf16.mxu0 0
    %4099 = vmatpush1.bf16.msra.mxu0 %v3975
    %4100 = vmatprep.subr.bf16.mxu0 0
    %4101 = vmatpush1.bf16.msra.mxu0 %v3976
    %4102 = vmatprep.subr.bf16.mxu0 0
    %4103 = vmatpush1.bf16.msra.mxu0 %v3977
    %4104 = vmatprep.subr.bf16.mxu0 0
    %4105 = vmatpush1.bf16.msra.mxu0 %v3978
    %4106 = vmatprep.subr.bf16.mxu0 0
    %4107 = vmatpush1.bf16.msra.mxu0 %v3979
    %4108 = vmatprep.subr.bf16.mxu0 0
    %4109 = vmatpush1.bf16.msra.mxu0 %v3980
    %4110 = vmatprep.subr.bf16.mxu0 0
    %4111 = vmatpush1.bf16.msra.mxu0 %v3981
    %4112 = vmatprep.subr.bf16.mxu0 0
    %4113 = vmatpush1.bf16.msra.mxu0 %v3982
    %4114 = vmatprep.subr.bf16.mxu0 0
    %4115 = vmatpush1.bf16.msra.mxu0 %v3983
    %4116 = vmatprep.subr.bf16.mxu0 0
    %4117 = vmatpush1.bf16.msra.mxu0 %v3984
    %4118 = vmatprep.subr.bf16.mxu0 0
    %4119 = vmatpush1.bf16.msra.mxu0 %v3985
    %4120 = vmatprep.subr.bf16.mxu0 0
    %4121 = vmatpush1.bf16.msra.mxu0 %v3986
    %4122 = vmatprep.subr.bf16.mxu0 0
    %4123 = vmatpush1.bf16.msra.mxu0 %v3987
    %4124 = vmatprep.mubr.bf16.mxu0 %v3658
    %4125 = vmatmul.mubr.bf16.gmra.mrb[0].mxu0 %v3657
    %v4126 = vpop.f32.mrb[0].mxu0
    %v4127 = vadd.f32 %v4087, %v4126
    %v4128 = vpop.f32.mrb[0].mxu0
    %v4129 = vpop.f32.mrb[0].mxu0
    %v4130 = vpop.f32.mrb[0].mxu0
    %4131 = vdwg.mxu0
    %4132 = vmatprep.subr.bf16.mxu0 0
    %4133 = vmatpush1.bf16.msra.mxu0 %v3988
    %4134 = vmatprep.subr.bf16.mxu0 0
    %4135 = vmatpush1.bf16.msra.mxu0 %v3989
    %4136 = vmatprep.subr.bf16.mxu0 0
    %4137 = vmatpush1.bf16.msra.mxu0 %v3990
    %4138 = vmatprep.subr.bf16.mxu0 0
    %4139 = vmatpush1.bf16.msra.mxu0 %v3991
    %4140 = vmatprep.subr.bf16.mxu0 0
    %4141 = vmatpush1.bf16.msra.mxu0 %v3992
    %4142 = vmatprep.subr.bf16.mxu0 0
    %4143 = vmatpush1.bf16.msra.mxu0 %v3993
    %4144 = vmatprep.subr.bf16.mxu0 0
    %4145 = vmatpush1.bf16.msra.mxu0 %v3994
    %4146 = vmatprep.subr.bf16.mxu0 0
    %4147 = vmatpush1.bf16.msra.mxu0 %v3995
    %4148 = vmatprep.subr.bf16.mxu0 0
    %4149 = vmatpush1.bf16.msra.mxu0 %v3996
    %4150 = vmatprep.subr.bf16.mxu0 0
    %4151 = vmatpush1.bf16.msra.mxu0 %v3997
    %4152 = vmatprep.subr.bf16.mxu0 0
    %4153 = vmatpush1.bf16.msra.mxu0 %v3998
    %4154 = vmatprep.subr.bf16.mxu0 0
    %4155 = vmatpush1.bf16.msra.mxu0 %v3999
    %4156 = vmatprep.subr.bf16.mxu0 0
    %4157 = vmatpush1.bf16.msra.mxu0 %v4000
    %4158 = vmatprep.subr.bf16.mxu0 0
    %4159 = vmatpush1.bf16.msra.mxu0 %v4001
    %4160 = vmatprep.subr.bf16.mxu0 0
    %4161 = vmatpush1.bf16.msra.mxu0 %v4002
    %4162 = vmatprep.subr.bf16.mxu0 0
    %4163 = vmatpush1.bf16.msra.mxu0 %v4003
    %4164 = vmatprep.mubr.bf16.mxu0 %v3660
    %4165 = vmatmul.mubr.bf16.gmra.mrb[0].mxu0 %v3659
    %v4166 = vpop.f32.mrb[0].mxu0
    %v4167 = vadd.f32 %v4127, %v4166
    %v4168 = vpop.f32.mrb[0].mxu0
    %v4169 = vpop.f32.mrb[0].mxu0
    %v4170 = vpop.f32.mrb[0].mxu0
    %4171 = vdwg.mxu0
    %4172 = vst [vmem:[#allocation14] sm:$0x3] %v4167
    // Predicated region
    $region82: #{tpu_custom_call.1} parent=1 // pred_check
      _
    $region83: #{tpu_custom_call.1} parent=1 // pred_check_branch
      %4174 = sbr.rel (0) target = $region85
    $region84: #{tpu_custom_call.1} parent=1 // pred_region
      %s4176 = ssub.s32 32, 32
      %4177 = vsyncadd [#allocation4], %s4176
      %s4179 = sshll.u32 [#allocation14], 4
      %s4180 = int_to_ptr.vmem [resolvable:$true] %s4179
      %4182 = dma.vmem_to_hbm [thread:$0]  %s4180, 32, %s13, [#allocation4]
    $region85: #{tpu_custom_call.1} parent=1 // pred_fallthru
      _
    // Predicated region
    $region86: #{tpu_custom_call.1} parent=1 // pred_check
      _
    $region87: #{tpu_custom_call.1} parent=1 // pred_check_branch
      %4184 = sbr.rel (0) target = $region89
    $region88: #{tpu_custom_call.1} parent=1 // pred_region
      %4185 = dma.done [#allocation4], 32
    $region89: #{tpu_custom_call.1} parent=1 // pred_fallthru
      _
    %4186 = vsyncpa [#allocation3], 1
    %4187 = vsyncpa [#allocation6], 1
    %4188 = vsyncpa [#allocation9], 1
    %4189 = vsyncpa [#allocation12], 1
    %4190 = vsyncpa [#allocation4], 1

</llo_original>
